<compile_context>
chip_gen: v6e
topology: v6e:2x2x1
jax: 0.10.0
libtpu: 0.0.40
codegen_flags: <defaults>
</compile_context>

<pallas_src>
from functools import partial

import jax
import jax.numpy as jnp
from jax import lax
from jax.experimental import pallas as pl
from jax.experimental.pallas import tpu as pltpu


def _layer_norm(x, gamma, beta, eps):
    mu = jnp.mean(x, axis=-1, keepdims=True)
    xc = x - mu
    var = jnp.mean(xc * xc, axis=-1, keepdims=True)
    return xc * lax.rsqrt(var + eps) * gamma + beta


def transformer_kernel(x_ref,                     # (R, D) f32, R = batch_block * N
                       ln1_g_ref, ln1_b_ref,      # (depth, 1, D) f32
                       wqkv_ref,                  # (depth, D, 3*heads*dh) bf16
                       wo_ref, bo_ref,            # (depth, heads*dh, D) bf16 / (depth, 1, D) f32
                       ln2_g_ref, ln2_b_ref,      # (depth, 1, D) f32
                       w1_ref, b1_ref,            # (depth, D, Fp) bf16 / (depth, 1, Fp) f32
                       w2_ref, b2_ref,            # (depth, Fp, D) bf16 / (depth, 1, D) f32
                       lnf_g_ref, lnf_b_ref,      # (1, D) f32
                       o_ref, *,
                       depth: int, batch_block: int, seq_len: int,
                       heads: int, dim_head: int, eps: float):
    Bb, N, H, dh = batch_block, seq_len, heads, dim_head
    R, D = x_ref.shape                            # R = Bb * N
    scale = dim_head ** (-0.5)

    x = x_ref[...].astype(jnp.float32)            # residual stream, f32, stays on-chip

    for l in range(depth):                        # static unroll (toy depth)
        # ---------------- pre-norm attention ----------------
        h = _layer_norm(x, ln1_g_ref[l], ln1_b_ref[l], eps)          # (R, D)
        # one wide MXU pass: (R, D) @ (D, 3*H*dh), lane width 3*H*dh
        qkv = jnp.dot(h.astype(jnp.bfloat16), wqkv_ref[l],
                      preferred_element_type=jnp.float32)            # (R, 3*H*dh)
        qkv = qkv.reshape(Bb, N, 3 * H * dh)                         # major-dim split (free)

        ctx_heads = []
        for hd in range(H):                       # static lane slices, no broadcast copies
            q_h = qkv[:, :, (0 * H + hd) * dh:(0 * H + hd + 1) * dh]
            k_h = qkv[:, :, (1 * H + hd) * dh:(1 * H + hd + 1) * dh]
            v_h = qkv[:, :, (2 * H + hd) * dh:(2 * H + hd + 1) * dh]

            s = jnp.einsum("bqd,bkd->bqk",
                           q_h.astype(jnp.bfloat16), k_h.astype(jnp.bfloat16),
                           preferred_element_type=jnp.float32) * scale   # (Bb, N, N) f32

            # softmax over keys, f32, exact divide (EUP is not the binding slot)
            s = s - jnp.max(s, axis=-1, keepdims=True)
            p = jnp.exp(s)
            p = p / jnp.sum(p, axis=-1, keepdims=True)

            ctx_heads.append(jnp.einsum("bqk,bkd->bqd",
                                        p.astype(jnp.bfloat16),
                                        v_h.astype(jnp.bfloat16),
                                        preferred_element_type=jnp.float32))  # (Bb, N, dh)

        # one fused output projection: lane-concat heads, single K = H*dh matmul
        ctx = jnp.concatenate(ctx_heads, axis=-1).reshape(R, H * dh)  # (R, H*dh)
        y = jnp.dot(ctx.astype(jnp.bfloat16), wo_ref[l],
                    preferred_element_type=jnp.float32) + bo_ref[l]   # (R, D)
        x = x + y

        # ---------------- pre-norm feed-forward ----------------
        h = _layer_norm(x, ln2_g_ref[l], ln2_b_ref[l], eps)
        m = jnp.dot(h.astype(jnp.bfloat16), w1_ref[l],
                    preferred_element_type=jnp.float32) + b1_ref[l]   # (R, Fp) full-lane
        m = jnp.tanh(m)
        f = jnp.dot(m.astype(jnp.bfloat16), w2_ref[l],
                    preferred_element_type=jnp.float32) + b2_ref[l]   # (R, D)
        x = x + f

    # final LayerNorm
    x = _layer_norm(x, lnf_g_ref[...], lnf_b_ref[...], eps)
    o_ref[...] = x.astype(o_ref.dtype)


def pack_params(layers, final_ln_g, final_ln_b, *, heads: int, dim_head: int):
    """Repack per-layer 'math layout' f32 params into kernel-friendly stacked slabs.

    Layout work happens host-side: stacking over depth, bf16 cast of matmul
    weights, zero-padding the FF hidden dim up to a multiple of 128 lanes.
    The softmax scale is NOT folded into the weights (applied exactly on the
    f32 scores in-kernel).
    """
    depth = len(layers)
    F = layers[0]["w1"].shape[1]
    Fp = ((F + 127) // 128) * 128                 # pad FF hidden dim to full lanes

    def stack(key):
        return jnp.stack([lyr[key] for lyr in layers], axis=0)

    w1 = stack("w1")                              # (depth, D, F)
    b1 = stack("b1")                              # (depth, F)
    w2 = stack("w2")                              # (depth, F, D)
    if Fp != F:
        w1 = jnp.pad(w1, ((0, 0), (0, 0), (0, Fp - F)))
        b1 = jnp.pad(b1, ((0, 0), (0, Fp - F)))
        w2 = jnp.pad(w2, ((0, 0), (0, Fp - F), (0, 0)))

    return dict(
        ln1_g=stack("ln1_g")[:, None, :], ln1_b=stack("ln1_b")[:, None, :],
        # (depth, D, 3*heads*dh); columns are [q | k | v], each head-major
        w_qkv=stack("w_qkv").astype(jnp.bfloat16),
        w_out=stack("w_out").astype(jnp.bfloat16),          # (depth, heads*dh, D)
        b_out=stack("b_out")[:, None, :],
        ln2_g=stack("ln2_g")[:, None, :], ln2_b=stack("ln2_b")[:, None, :],
        w1=w1.astype(jnp.bfloat16), b1=b1[:, None, :],
        w2=w2.astype(jnp.bfloat16), b2=stack("b2")[:, None, :],
        lnf_g=final_ln_g[None, :], lnf_b=final_ln_b[None, :],
    )


_PARAM_ORDER = ("ln1_g", "ln1_b", "w_qkv", "w_out", "b_out",
                "ln2_g", "ln2_b", "w1", "b1", "w2", "b2", "lnf_g", "lnf_b")


def transformer_pallas(x, packed, *, heads: int, dim_head: int,
                       eps: float = 1e-5, batch_block: int | None = None):
    B, N, D = x.shape
    depth = packed["w_qkv"].shape[0]

    # Default: whole batch in ONE grid step (best on single-TC v5e/v6e: no
    # per-step overhead, no duplicate weight pipelining, double sublane
    # occupancy).  On v7x pass batch_block=B//2 so both TensorCores get work.
    if batch_block is None:
        batch_block = B
    assert B % batch_block == 0, "batch_block must divide batch"
    num_blocks = B // batch_block
    R = batch_block * N

    x2 = x.reshape(B * N, D)                      # free reshape; batch folded into rows

    w_args = [packed[k] for k in _PARAM_ORDER]

    def whole_spec(arr):
        nd = arr.ndim
        return pl.BlockSpec(arr.shape, lambda b, _nd=nd: (0,) * _nd)

    kernel = partial(transformer_kernel, depth=depth, batch_block=batch_block,
                     seq_len=N, heads=heads, dim_head=dim_head, eps=eps)

    out2 = pl.pallas_call(
        kernel,
        out_shape=jax.ShapeDtypeStruct((B * N, D), x.dtype),
        grid=(num_blocks,),
        in_specs=[pl.BlockSpec((R, D), lambda b: (b, 0))]
                 + [whole_spec(a) for a in w_args],
        out_specs=pl.BlockSpec((R, D), lambda b: (b, 0)),
        compiler_params=pltpu.CompilerParams(
            dimension_semantics=("parallel",),
            # explicit scoped-VMEM budget; safe for v7x (64 MiB physical) too
            vmem_limit_bytes=32 * 1024 * 1024),
    )(x2, *w_args)
    return out2.reshape(B, N, D)


def transformer_reference(x, layers, final_ln_g, final_ln_b, *,
                          heads: int, dim_head: int, eps: float = 1e-5):
    """Plain-JAX reference mirroring the PyTorch Transformer.forward exactly."""
    B, N, D = x.shape
    inner = heads * dim_head
    scale = dim_head ** (-0.5)

    def ln(t, g, b):
        mu = t.mean(-1, keepdims=True)
        var = ((t - mu) ** 2).mean(-1, keepdims=True)
        return (t - mu) / jnp.sqrt(var + eps) * g + b

    def to_heads(t):  # 'b n (head dim) -> b head n dim'
        return t.reshape(B, N, heads, dim_head).transpose(0, 2, 1, 3)

    for lyr in layers:
        h = ln(x, lyr["ln1_g"], lyr["ln1_b"])
        qkv = h @ lyr["w_qkv"]
        q, k, v = map(to_heads, jnp.split(qkv, 3, axis=-1))
        attn = jnp.einsum("bhqd,bhkd->bhqk", q, k) * scale
        attn = jax.nn.softmax(attn, axis=-1)
        out = jnp.einsum("bhqk,bhkd->bhqd", attn, v)
        out = out.transpose(0, 2, 1, 3).reshape(B, N, inner)
        x = x + (out @ lyr["w_out"] + lyr["b_out"])

        h = ln(x, lyr["ln2_g"], lyr["ln2_b"])
        x = x + (jnp.tanh(h @ lyr["w1"] + lyr["b1"]) @ lyr["w2"] + lyr["b2"])

    return ln(x, final_ln_g, final_ln_b)


if __name__ == "__main__":
    # Small shapes consistent with the module: dim=32, depth=2, heads=4,
    # dim_head=16, mlp_dim=64, seq = d*h*w = 2*2*4 = 16, batch = 2.
    B = 2
    N = 2 * 2 * 4
    dim, depth, heads, dim_head, mlp_dim = 32, 2, 4, 16, 64
    inner = heads * dim_head

    key = jax.random.PRNGKey(0)
    keys = jax.random.split(key, depth + 2)

    def bf16_round(w):
        # Matmul weights are stored in bf16 for the kernel; give the reference
        # the identical (bf16-rounded) values so the comparison only measures
        # the kernel's own compute path.
        return w.astype(jnp.bfloat16).astype(jnp.float32)

    x = jax.random.normal(keys[0], (B, N, dim), dtype=jnp.float32)

    layers = []
    for l in range(depth):
        ks = jax.random.split(keys[1 + l], 11)
        layers.append(dict(
            ln1_g=1.0 + 0.1 * jax.random.normal(ks[0], (dim,), jnp.float32),
            ln1_b=0.05 * jax.random.normal(ks[1], (dim,), jnp.float32),
            w_qkv=bf16_round(jax.random.normal(ks[2], (dim, 3 * inner), jnp.float32) * dim ** -0.5),
            w_out=bf16_round(jax.random.normal(ks[3], (inner, dim), jnp.float32) * inner ** -0.5),
            b_out=0.02 * jax.random.normal(ks[4], (dim,), jnp.float32),
            ln2_g=1.0 + 0.1 * jax.random.normal(ks[5], (dim,), jnp.float32),
            ln2_b=0.05 * jax.random.normal(ks[6], (dim,), jnp.float32),
            w1=bf16_round(jax.random.normal(ks[7], (dim, mlp_dim), jnp.float32) * dim ** -0.5),
            b1=0.02 * jax.random.normal(ks[8], (mlp_dim,), jnp.float32),
            w2=bf16_round(jax.random.normal(ks[9], (mlp_dim, dim), jnp.float32) * mlp_dim ** -0.5),
            b2=0.02 * jax.random.normal(ks[10], (dim,), jnp.float32),
        ))

    kfa, kfb = jax.random.split(keys[depth + 1])
    lnf_g = 1.0 + 0.1 * jax.random.normal(kfa, (dim,), jnp.float32)
    lnf_b = 0.05 * jax.random.normal(kfb, (dim,), jnp.float32)

    packed = pack_params(layers, lnf_g, lnf_b, heads=heads, dim_head=dim_head)

    y = transformer_pallas(x, packed, heads=heads, dim_head=dim_head)
    y = jax.block_until_ready(y)

    y_ref = transformer_reference(x, layers, lnf_g, lnf_b, heads=heads, dim_head=dim_head)
    assert y.shape == (B, N, dim)
    max_err = float(jnp.max(jnp.abs(y - y_ref)))
    # Tolerance accounts for bf16 MXU operands (q/k/v/p/ctx/weights in bf16).
    assert jnp.allclose(y, y_ref, atol=5e-2, rtol=5e-2), \
        f"mismatch vs reference (max abs err {max_err})"

    print("KERNEL_OK")
</pallas_src>

<mosaic_0001>
module attributes {stable_mosaic.version = 11 : i64} {
  func.func @transformer_kernel(%arg0: i32, %arg1: memref<32x32xf32, #tpu.memory_space<vmem>>, %arg2: memref<2x1x32xf32, #tpu.memory_space<vmem>>, %arg3: memref<2x1x32xf32, #tpu.memory_space<vmem>>, %arg4: memref<2x32x192xbf16, #tpu.memory_space<vmem>>, %arg5: memref<2x64x32xbf16, #tpu.memory_space<vmem>>, %arg6: memref<2x1x32xf32, #tpu.memory_space<vmem>>, %arg7: memref<2x1x32xf32, #tpu.memory_space<vmem>>, %arg8: memref<2x1x32xf32, #tpu.memory_space<vmem>>, %arg9: memref<2x32x128xbf16, #tpu.memory_space<vmem>>, %arg10: memref<2x1x128xf32, #tpu.memory_space<vmem>>, %arg11: memref<2x128x32xbf16, #tpu.memory_space<vmem>>, %arg12: memref<2x1x32xf32, #tpu.memory_space<vmem>>, %arg13: memref<1x32xf32, #tpu.memory_space<vmem>>, %arg14: memref<1x32xf32, #tpu.memory_space<vmem>>, %arg15: memref<32x32xf32, #tpu.memory_space<vmem>>) attributes {dimension_semantics = [#tpu.dimension_semantics<parallel>], iteration_bounds = array<i64: 1>, scalar_prefetch = 0 : i64, scratch_operands = 0 : i64, tpu.core_type = #tpu.core_type<tc>, window_params = [{transform_indices = @transform_0, window_bounds = array<i64: 32, 32>}, {pipeline_mode = #tpu.pipeline_mode<synchronous>, transform_indices = @transform_1, window_bounds = array<i64: 2, 1, 32>}, {pipeline_mode = #tpu.pipeline_mode<synchronous>, transform_indices = @transform_2, window_bounds = array<i64: 2, 1, 32>}, {pipeline_mode = #tpu.pipeline_mode<synchronous>, transform_indices = @transform_3, window_bounds = array<i64: 2, 32, 192>}, {pipeline_mode = #tpu.pipeline_mode<synchronous>, transform_indices = @transform_4, window_bounds = array<i64: 2, 64, 32>}, {pipeline_mode = #tpu.pipeline_mode<synchronous>, transform_indices = @transform_5, window_bounds = array<i64: 2, 1, 32>}, {pipeline_mode = #tpu.pipeline_mode<synchronous>, transform_indices = @transform_6, window_bounds = array<i64: 2, 1, 32>}, {pipeline_mode = #tpu.pipeline_mode<synchronous>, transform_indices = @transform_7, window_bounds = array<i64: 2, 1, 32>}, {pipeline_mode = #tpu.pipeline_mode<synchronous>, transform_indices = @transform_8, window_bounds = array<i64: 2, 32, 128>}, {pipeline_mode = #tpu.pipeline_mode<synchronous>, transform_indices = @transform_9, window_bounds = array<i64: 2, 1, 128>}, {pipeline_mode = #tpu.pipeline_mode<synchronous>, transform_indices = @transform_10, window_bounds = array<i64: 2, 128, 32>}, {pipeline_mode = #tpu.pipeline_mode<synchronous>, transform_indices = @transform_11, window_bounds = array<i64: 2, 1, 32>}, {pipeline_mode = #tpu.pipeline_mode<synchronous>, transform_indices = @transform_12, window_bounds = array<i64: 1, 32>}, {pipeline_mode = #tpu.pipeline_mode<synchronous>, transform_indices = @transform_13, window_bounds = array<i64: 1, 32>}, {transform_indices = @transform_14, window_bounds = array<i64: 32, 32>}]} {
    %c0 = arith.constant 0 : index
    %c0_0 = arith.constant 0 : index
    %0 = vector.load %arg1[%c0, %c0_0] : memref<32x32xf32, #tpu.memory_space<vmem>>, vector<32x32xf32>
    %c0_1 = arith.constant 0 : index
    %c0_2 = arith.constant 0 : index
    %c0_3 = arith.constant 0 : index
    %1 = vector.load %arg2[%c0_1, %c0_2, %c0_3] : memref<2x1x32xf32, #tpu.memory_space<vmem>>, vector<1x1x32xf32>
    %2 = vector.shape_cast %1 : vector<1x1x32xf32> to vector<1x32xf32>
    %c0_4 = arith.constant 0 : index
    %c0_5 = arith.constant 0 : index
    %c0_6 = arith.constant 0 : index
    %3 = vector.load %arg3[%c0_4, %c0_5, %c0_6] : memref<2x1x32xf32, #tpu.memory_space<vmem>>, vector<1x1x32xf32>
    %4 = vector.shape_cast %3 : vector<1x1x32xf32> to vector<1x32xf32>
    %cst = arith.constant dense<0.000000e+00> : vector<32xf32>
    %5 = vector.multi_reduction <add>, %0, %cst [1] : vector<32x32xf32> to vector<32xf32>
    %6 = vector.shape_cast %5 : vector<32xf32> to vector<32x1xf32>
    %cst_7 = arith.constant 3.200000e+01 : f32
    %7 = vector.broadcast %cst_7 : f32 to vector<32x1xf32>
    %8 = arith.divf %6, %7 : vector<32x1xf32>
    %9 = vector.broadcast %8 : vector<32x1xf32> to vector<32x32xf32>
    %10 = arith.subf %0, %9 : vector<32x32xf32>
    %11 = arith.mulf %10, %10 : vector<32x32xf32>
    %cst_8 = arith.constant dense<0.000000e+00> : vector<32xf32>
    %12 = vector.multi_reduction <add>, %11, %cst_8 [1] : vector<32x32xf32> to vector<32xf32>
    %13 = vector.shape_cast %12 : vector<32xf32> to vector<32x1xf32>
    %cst_9 = arith.constant 3.200000e+01 : f32
    %14 = vector.broadcast %cst_9 : f32 to vector<32x1xf32>
    %15 = arith.divf %13, %14 : vector<32x1xf32>
    %cst_10 = arith.constant 9.99999974E-6 : f32
    %16 = vector.broadcast %cst_10 : f32 to vector<32x1xf32>
    %17 = arith.addf %15, %16 : vector<32x1xf32>
    %18 = math.rsqrt %17 : vector<32x1xf32>
    %19 = vector.broadcast %18 : vector<32x1xf32> to vector<32x32xf32>
    %20 = arith.mulf %10, %19 : vector<32x32xf32>
    %21 = vector.broadcast %2 : vector<1x32xf32> to vector<32x32xf32>
    %22 = arith.mulf %20, %21 : vector<32x32xf32>
    %23 = vector.broadcast %4 : vector<1x32xf32> to vector<32x32xf32>
    %24 = arith.addf %22, %23 : vector<32x32xf32>
    %25 = arith.truncf %24 : vector<32x32xf32> to vector<32x32xbf16>
    %c0_11 = arith.constant 0 : index
    %c0_12 = arith.constant 0 : index
    %c0_13 = arith.constant 0 : index
    %26 = vector.load %arg4[%c0_11, %c0_12, %c0_13] : memref<2x32x192xbf16, #tpu.memory_space<vmem>>, vector<1x32x192xbf16>
    %27 = vector.shape_cast %26 : vector<1x32x192xbf16> to vector<32x192xbf16>
    %cst_14 = arith.constant dense<0.000000e+00> : vector<32x192xf32>
    %28 = tpu.matmul %25, %27, %cst_14 {dimension_numbers = #tpu.dot_dimension_numbers<[1], [0], [0], [1], [0, 0, 1, 1], [], []>} : vector<32x32xbf16>, vector<32x192xbf16>, vector<32x192xf32> -> vector<32x192xf32>
    %29 = vector.shape_cast %28 : vector<32x192xf32> to vector<2x16x192xf32>
    %30 = vector.extract_strided_slice %29 {offsets = [0, 0, 0], sizes = [2, 16, 16], strides = [1, 1, 1]} : vector<2x16x192xf32> to vector<2x16x16xf32>
    %31 = vector.extract_strided_slice %29 {offsets = [0, 0, 64], sizes = [2, 16, 16], strides = [1, 1, 1]} : vector<2x16x192xf32> to vector<2x16x16xf32>
    %32 = vector.extract_strided_slice %29 {offsets = [0, 0, 128], sizes = [2, 16, 16], strides = [1, 1, 1]} : vector<2x16x192xf32> to vector<2x16x16xf32>
    %33 = arith.truncf %30 : vector<2x16x16xf32> to vector<2x16x16xbf16>
    %34 = arith.truncf %31 : vector<2x16x16xf32> to vector<2x16x16xbf16>
    "tpu.trace_start"() <{level = 10 : i32, message = "bqd,bkd->bqk"}> : () -> ()
    %cst_15 = arith.constant dense<0.000000e+00> : vector<2x16x16xf32>
    %35 = tpu.matmul %33, %34, %cst_15 {dimension_numbers = #tpu.dot_dimension_numbers<[2], [2], [1], [1], [0, 0, 0, 1, 1, 1], [0], [0]>} : vector<2x16x16xbf16>, vector<2x16x16xbf16>, vector<2x16x16xf32> -> vector<2x16x16xf32>
    "tpu.trace_stop"() : () -> ()
    %cst_16 = arith.constant 2.500000e-01 : f32
    %36 = vector.broadcast %cst_16 : f32 to vector<2x16x16xf32>
    %37 = arith.mulf %35, %36 : vector<2x16x16xf32>
    %cst_17 = arith.constant dense<0xFF800000> : vector<2x16xf32>
    %38 = vector.multi_reduction <maximumf>, %37, %cst_17 [2] : vector<2x16x16xf32> to vector<2x16xf32>
    %39 = vector.shape_cast %38 : vector<2x16xf32> to vector<2x16x1xf32>
    %40 = vector.broadcast %39 : vector<2x16x1xf32> to vector<2x16x16xf32>
    %41 = arith.subf %37, %40 : vector<2x16x16xf32>
    %42 = math.exp %41 : vector<2x16x16xf32>
    %cst_18 = arith.constant dense<0.000000e+00> : vector<2x16xf32>
    %43 = vector.multi_reduction <add>, %42, %cst_18 [2] : vector<2x16x16xf32> to vector<2x16xf32>
    %44 = vector.shape_cast %43 : vector<2x16xf32> to vector<2x16x1xf32>
    %45 = vector.broadcast %44 : vector<2x16x1xf32> to vector<2x16x16xf32>
    %46 = arith.divf %42, %45 : vector<2x16x16xf32>
    %47 = arith.truncf %46 : vector<2x16x16xf32> to vector<2x16x16xbf16>
    %48 = arith.truncf %32 : vector<2x16x16xf32> to vector<2x16x16xbf16>
    "tpu.trace_start"() <{level = 10 : i32, message = "bqk,bkd->bqd"}> : () -> ()
    %cst_19 = arith.constant dense<0.000000e+00> : vector<2x16x16xf32>
    %49 = tpu.matmul %47, %48, %cst_19 {dimension_numbers = #tpu.dot_dimension_numbers<[2], [1], [1], [2], [0, 0, 0, 1, 1, 2], [0], [0]>} : vector<2x16x16xbf16>, vector<2x16x16xbf16>, vector<2x16x16xf32> -> vector<2x16x16xf32>
    "tpu.trace_stop"() : () -> ()
    %50 = vector.extract_strided_slice %29 {offsets = [0, 0, 16], sizes = [2, 16, 16], strides = [1, 1, 1]} : vector<2x16x192xf32> to vector<2x16x16xf32>
    %51 = vector.extract_strided_slice %29 {offsets = [0, 0, 80], sizes = [2, 16, 16], strides = [1, 1, 1]} : vector<2x16x192xf32> to vector<2x16x16xf32>
    %52 = vector.extract_strided_slice %29 {offsets = [0, 0, 144], sizes = [2, 16, 16], strides = [1, 1, 1]} : vector<2x16x192xf32> to vector<2x16x16xf32>
    %53 = arith.truncf %50 : vector<2x16x16xf32> to vector<2x16x16xbf16>
    %54 = arith.truncf %51 : vector<2x16x16xf32> to vector<2x16x16xbf16>
    "tpu.trace_start"() <{level = 10 : i32, message = "bqd,bkd->bqk"}> : () -> ()
    %cst_20 = arith.constant dense<0.000000e+00> : vector<2x16x16xf32>
    %55 = tpu.matmul %53, %54, %cst_20 {dimension_numbers = #tpu.dot_dimension_numbers<[2], [2], [1], [1], [0, 0, 0, 1, 1, 1], [0], [0]>} : vector<2x16x16xbf16>, vector<2x16x16xbf16>, vector<2x16x16xf32> -> vector<2x16x16xf32>
    "tpu.trace_stop"() : () -> ()
    %cst_21 = arith.constant 2.500000e-01 : f32
    %56 = vector.broadcast %cst_21 : f32 to vector<2x16x16xf32>
    %57 = arith.mulf %55, %56 : vector<2x16x16xf32>
    %cst_22 = arith.constant dense<0xFF800000> : vector<2x16xf32>
    %58 = vector.multi_reduction <maximumf>, %57, %cst_22 [2] : vector<2x16x16xf32> to vector<2x16xf32>
    %59 = vector.shape_cast %58 : vector<2x16xf32> to vector<2x16x1xf32>
    %60 = vector.broadcast %59 : vector<2x16x1xf32> to vector<2x16x16xf32>
    %61 = arith.subf %57, %60 : vector<2x16x16xf32>
    %62 = math.exp %61 : vector<2x16x16xf32>
    %cst_23 = arith.constant dense<0.000000e+00> : vector<2x16xf32>
    %63 = vector.multi_reduction <add>, %62, %cst_23 [2] : vector<2x16x16xf32> to vector<2x16xf32>
    %64 = vector.shape_cast %63 : vector<2x16xf32> to vector<2x16x1xf32>
    %65 = vector.broadcast %64 : vector<2x16x1xf32> to vector<2x16x16xf32>
    %66 = arith.divf %62, %65 : vector<2x16x16xf32>
    %67 = arith.truncf %66 : vector<2x16x16xf32> to vector<2x16x16xbf16>
    %68 = arith.truncf %52 : vector<2x16x16xf32> to vector<2x16x16xbf16>
    "tpu.trace_start"() <{level = 10 : i32, message = "bqk,bkd->bqd"}> : () -> ()
    %cst_24 = arith.constant dense<0.000000e+00> : vector<2x16x16xf32>
    %69 = tpu.matmul %67, %68, %cst_24 {dimension_numbers = #tpu.dot_dimension_numbers<[2], [1], [1], [2], [0, 0, 0, 1, 1, 2], [0], [0]>} : vector<2x16x16xbf16>, vector<2x16x16xbf16>, vector<2x16x16xf32> -> vector<2x16x16xf32>
    "tpu.trace_stop"() : () -> ()
    %70 = vector.extract_strided_slice %29 {offsets = [0, 0, 32], sizes = [2, 16, 16], strides = [1, 1, 1]} : vector<2x16x192xf32> to vector<2x16x16xf32>
    %71 = vector.extract_strided_slice %29 {offsets = [0, 0, 96], sizes = [2, 16, 16], strides = [1, 1, 1]} : vector<2x16x192xf32> to vector<2x16x16xf32>
    %72 = vector.extract_strided_slice %29 {offsets = [0, 0, 160], sizes = [2, 16, 16], strides = [1, 1, 1]} : vector<2x16x192xf32> to vector<2x16x16xf32>
    %73 = arith.truncf %70 : vector<2x16x16xf32> to vector<2x16x16xbf16>
    %74 = arith.truncf %71 : vector<2x16x16xf32> to vector<2x16x16xbf16>
    "tpu.trace_start"() <{level = 10 : i32, message = "bqd,bkd->bqk"}> : () -> ()
    %cst_25 = arith.constant dense<0.000000e+00> : vector<2x16x16xf32>
    %75 = tpu.matmul %73, %74, %cst_25 {dimension_numbers = #tpu.dot_dimension_numbers<[2], [2], [1], [1], [0, 0, 0, 1, 1, 1], [0], [0]>} : vector<2x16x16xbf16>, vector<2x16x16xbf16>, vector<2x16x16xf32> -> vector<2x16x16xf32>
    "tpu.trace_stop"() : () -> ()
    %cst_26 = arith.constant 2.500000e-01 : f32
    %76 = vector.broadcast %cst_26 : f32 to vector<2x16x16xf32>
    %77 = arith.mulf %75, %76 : vector<2x16x16xf32>
    %cst_27 = arith.constant dense<0xFF800000> : vector<2x16xf32>
    %78 = vector.multi_reduction <maximumf>, %77, %cst_27 [2] : vector<2x16x16xf32> to vector<2x16xf32>
    %79 = vector.shape_cast %78 : vector<2x16xf32> to vector<2x16x1xf32>
    %80 = vector.broadcast %79 : vector<2x16x1xf32> to vector<2x16x16xf32>
    %81 = arith.subf %77, %80 : vector<2x16x16xf32>
    %82 = math.exp %81 : vector<2x16x16xf32>
    %cst_28 = arith.constant dense<0.000000e+00> : vector<2x16xf32>
    %83 = vector.multi_reduction <add>, %82, %cst_28 [2] : vector<2x16x16xf32> to vector<2x16xf32>
    %84 = vector.shape_cast %83 : vector<2x16xf32> to vector<2x16x1xf32>
    %85 = vector.broadcast %84 : vector<2x16x1xf32> to vector<2x16x16xf32>
    %86 = arith.divf %82, %85 : vector<2x16x16xf32>
    %87 = arith.truncf %86 : vector<2x16x16xf32> to vector<2x16x16xbf16>
    %88 = arith.truncf %72 : vector<2x16x16xf32> to vector<2x16x16xbf16>
    "tpu.trace_start"() <{level = 10 : i32, message = "bqk,bkd->bqd"}> : () -> ()
    %cst_29 = arith.constant dense<0.000000e+00> : vector<2x16x16xf32>
    %89 = tpu.matmul %87, %88, %cst_29 {dimension_numbers = #tpu.dot_dimension_numbers<[2], [1], [1], [2], [0, 0, 0, 1, 1, 2], [0], [0]>} : vector<2x16x16xbf16>, vector<2x16x16xbf16>, vector<2x16x16xf32> -> vector<2x16x16xf32>
    "tpu.trace_stop"() : () -> ()
    %90 = vector.extract_strided_slice %29 {offsets = [0, 0, 48], sizes = [2, 16, 16], strides = [1, 1, 1]} : vector<2x16x192xf32> to vector<2x16x16xf32>
    %91 = vector.extract_strided_slice %29 {offsets = [0, 0, 112], sizes = [2, 16, 16], strides = [1, 1, 1]} : vector<2x16x192xf32> to vector<2x16x16xf32>
    %92 = vector.extract_strided_slice %29 {offsets = [0, 0, 176], sizes = [2, 16, 16], strides = [1, 1, 1]} : vector<2x16x192xf32> to vector<2x16x16xf32>
    %93 = arith.truncf %90 : vector<2x16x16xf32> to vector<2x16x16xbf16>
    %94 = arith.truncf %91 : vector<2x16x16xf32> to vector<2x16x16xbf16>
    "tpu.trace_start"() <{level = 10 : i32, message = "bqd,bkd->bqk"}> : () -> ()
    %cst_30 = arith.constant dense<0.000000e+00> : vector<2x16x16xf32>
    %95 = tpu.matmul %93, %94, %cst_30 {dimension_numbers = #tpu.dot_dimension_numbers<[2], [2], [1], [1], [0, 0, 0, 1, 1, 1], [0], [0]>} : vector<2x16x16xbf16>, vector<2x16x16xbf16>, vector<2x16x16xf32> -> vector<2x16x16xf32>
    "tpu.trace_stop"() : () -> ()
    %cst_31 = arith.constant 2.500000e-01 : f32
    %96 = vector.broadcast %cst_31 : f32 to vector<2x16x16xf32>
    %97 = arith.mulf %95, %96 : vector<2x16x16xf32>
    %cst_32 = arith.constant dense<0xFF800000> : vector<2x16xf32>
    %98 = vector.multi_reduction <maximumf>, %97, %cst_32 [2] : vector<2x16x16xf32> to vector<2x16xf32>
    %99 = vector.shape_cast %98 : vector<2x16xf32> to vector<2x16x1xf32>
    %100 = vector.broadcast %99 : vector<2x16x1xf32> to vector<2x16x16xf32>
    %101 = arith.subf %97, %100 : vector<2x16x16xf32>
    %102 = math.exp %101 : vector<2x16x16xf32>
    %cst_33 = arith.constant dense<0.000000e+00> : vector<2x16xf32>
    %103 = vector.multi_reduction <add>, %102, %cst_33 [2] : vector<2x16x16xf32> to vector<2x16xf32>
    %104 = vector.shape_cast %103 : vector<2x16xf32> to vector<2x16x1xf32>
    %105 = vector.broadcast %104 : vector<2x16x1xf32> to vector<2x16x16xf32>
    %106 = arith.divf %102, %105 : vector<2x16x16xf32>
    %107 = arith.truncf %106 : vector<2x16x16xf32> to vector<2x16x16xbf16>
    %108 = arith.truncf %92 : vector<2x16x16xf32> to vector<2x16x16xbf16>
    "tpu.trace_start"() <{level = 10 : i32, message = "bqk,bkd->bqd"}> : () -> ()
    %cst_34 = arith.constant dense<0.000000e+00> : vector<2x16x16xf32>
    %109 = tpu.matmul %107, %108, %cst_34 {dimension_numbers = #tpu.dot_dimension_numbers<[2], [1], [1], [2], [0, 0, 0, 1, 1, 2], [0], [0]>} : vector<2x16x16xbf16>, vector<2x16x16xbf16>, vector<2x16x16xf32> -> vector<2x16x16xf32>
    "tpu.trace_stop"() : () -> ()
    %110 = tpu.concatenate %49, %69, %89, %109 in 2 : vector<2x16x16xf32>, vector<2x16x16xf32>, vector<2x16x16xf32>, vector<2x16x16xf32> -> vector<2x16x64xf32>
    %111 = vector.shape_cast %110 : vector<2x16x64xf32> to vector<32x64xf32>
    %112 = arith.truncf %111 : vector<32x64xf32> to vector<32x64xbf16>
    %c0_35 = arith.constant 0 : index
    %c0_36 = arith.constant 0 : index
    %c0_37 = arith.constant 0 : index
    %113 = vector.load %arg5[%c0_35, %c0_36, %c0_37] : memref<2x64x32xbf16, #tpu.memory_space<vmem>>, vector<1x64x32xbf16>
    %114 = vector.shape_cast %113 : vector<1x64x32xbf16> to vector<64x32xbf16>
    %cst_38 = arith.constant dense<0.000000e+00> : vector<32x32xf32>
    %115 = tpu.matmul %112, %114, %cst_38 {dimension_numbers = #tpu.dot_dimension_numbers<[1], [0], [0], [1], [0, 0, 1, 1], [], []>} : vector<32x64xbf16>, vector<64x32xbf16>, vector<32x32xf32> -> vector<32x32xf32>
    %c0_39 = arith.constant 0 : index
    %c0_40 = arith.constant 0 : index
    %c0_41 = arith.constant 0 : index
    %116 = vector.load %arg6[%c0_39, %c0_40, %c0_41] : memref<2x1x32xf32, #tpu.memory_space<vmem>>, vector<1x1x32xf32>
    %117 = vector.shape_cast %116 : vector<1x1x32xf32> to vector<1x32xf32>
    %118 = vector.broadcast %117 : vector<1x32xf32> to vector<32x32xf32>
    %119 = arith.addf %115, %118 : vector<32x32xf32>
    %120 = arith.addf %0, %119 : vector<32x32xf32>
    %c0_42 = arith.constant 0 : index
    %c0_43 = arith.constant 0 : index
    %c0_44 = arith.constant 0 : index
    %121 = vector.load %arg7[%c0_42, %c0_43, %c0_44] : memref<2x1x32xf32, #tpu.memory_space<vmem>>, vector<1x1x32xf32>
    %122 = vector.shape_cast %121 : vector<1x1x32xf32> to vector<1x32xf32>
    %c0_45 = arith.constant 0 : index
    %c0_46 = arith.constant 0 : index
    %c0_47 = arith.constant 0 : index
    %123 = vector.load %arg8[%c0_45, %c0_46, %c0_47] : memref<2x1x32xf32, #tpu.memory_space<vmem>>, vector<1x1x32xf32>
    %124 = vector.shape_cast %123 : vector<1x1x32xf32> to vector<1x32xf32>
    %cst_48 = arith.constant dense<0.000000e+00> : vector<32xf32>
    %125 = vector.multi_reduction <add>, %120, %cst_48 [1] : vector<32x32xf32> to vector<32xf32>
    %126 = vector.shape_cast %125 : vector<32xf32> to vector<32x1xf32>
    %cst_49 = arith.constant 3.200000e+01 : f32
    %127 = vector.broadcast %cst_49 : f32 to vector<32x1xf32>
    %128 = arith.divf %126, %127 : vector<32x1xf32>
    %129 = vector.broadcast %128 : vector<32x1xf32> to vector<32x32xf32>
    %130 = arith.subf %120, %129 : vector<32x32xf32>
    %131 = arith.mulf %130, %130 : vector<32x32xf32>
    %cst_50 = arith.constant dense<0.000000e+00> : vector<32xf32>
    %132 = vector.multi_reduction <add>, %131, %cst_50 [1] : vector<32x32xf32> to vector<32xf32>
    %133 = vector.shape_cast %132 : vector<32xf32> to vector<32x1xf32>
    %cst_51 = arith.constant 3.200000e+01 : f32
    %134 = vector.broadcast %cst_51 : f32 to vector<32x1xf32>
    %135 = arith.divf %133, %134 : vector<32x1xf32>
    %cst_52 = arith.constant 9.99999974E-6 : f32
    %136 = vector.broadcast %cst_52 : f32 to vector<32x1xf32>
    %137 = arith.addf %135, %136 : vector<32x1xf32>
    %138 = math.rsqrt %137 : vector<32x1xf32>
    %139 = vector.broadcast %138 : vector<32x1xf32> to vector<32x32xf32>
    %140 = arith.mulf %130, %139 : vector<32x32xf32>
    %141 = vector.broadcast %122 : vector<1x32xf32> to vector<32x32xf32>
    %142 = arith.mulf %140, %141 : vector<32x32xf32>
    %143 = vector.broadcast %124 : vector<1x32xf32> to vector<32x32xf32>
    %144 = arith.addf %142, %143 : vector<32x32xf32>
    %145 = arith.truncf %144 : vector<32x32xf32> to vector<32x32xbf16>
    %c0_53 = arith.constant 0 : index
    %c0_54 = arith.constant 0 : index
    %c0_55 = arith.constant 0 : index
    %146 = vector.load %arg9[%c0_53, %c0_54, %c0_55] : memref<2x32x128xbf16, #tpu.memory_space<vmem>>, vector<1x32x128xbf16>
    %147 = vector.shape_cast %146 : vector<1x32x128xbf16> to vector<32x128xbf16>
    %cst_56 = arith.constant dense<0.000000e+00> : vector<32x128xf32>
    %148 = tpu.matmul %145, %147, %cst_56 {dimension_numbers = #tpu.dot_dimension_numbers<[1], [0], [0], [1], [0, 0, 1, 1], [], []>} : vector<32x32xbf16>, vector<32x128xbf16>, vector<32x128xf32> -> vector<32x128xf32>
    %c0_57 = arith.constant 0 : index
    %c0_58 = arith.constant 0 : index
    %c0_59 = arith.constant 0 : index
    %149 = vector.load %arg10[%c0_57, %c0_58, %c0_59] : memref<2x1x128xf32, #tpu.memory_space<vmem>>, vector<1x1x128xf32>
    %150 = vector.shape_cast %149 : vector<1x1x128xf32> to vector<1x128xf32>
    %151 = vector.broadcast %150 : vector<1x128xf32> to vector<32x128xf32>
    %152 = arith.addf %148, %151 : vector<32x128xf32>
    %153 = math.tanh %152 : vector<32x128xf32>
    %154 = arith.truncf %153 : vector<32x128xf32> to vector<32x128xbf16>
    %c0_60 = arith.constant 0 : index
    %c0_61 = arith.constant 0 : index
    %c0_62 = arith.constant 0 : index
    %155 = vector.load %arg11[%c0_60, %c0_61, %c0_62] : memref<2x128x32xbf16, #tpu.memory_space<vmem>>, vector<1x128x32xbf16>
    %156 = vector.shape_cast %155 : vector<1x128x32xbf16> to vector<128x32xbf16>
    %cst_63 = arith.constant dense<0.000000e+00> : vector<32x32xf32>
    %157 = tpu.matmul %154, %156, %cst_63 {dimension_numbers = #tpu.dot_dimension_numbers<[1], [0], [0], [1], [0, 0, 1, 1], [], []>} : vector<32x128xbf16>, vector<128x32xbf16>, vector<32x32xf32> -> vector<32x32xf32>
    %c0_64 = arith.constant 0 : index
    %c0_65 = arith.constant 0 : index
    %c0_66 = arith.constant 0 : index
    %158 = vector.load %arg12[%c0_64, %c0_65, %c0_66] : memref<2x1x32xf32, #tpu.memory_space<vmem>>, vector<1x1x32xf32>
    %159 = vector.shape_cast %158 : vector<1x1x32xf32> to vector<1x32xf32>
    %160 = vector.broadcast %159 : vector<1x32xf32> to vector<32x32xf32>
    %161 = arith.addf %157, %160 : vector<32x32xf32>
    %162 = arith.addf %120, %161 : vector<32x32xf32>
    %c1 = arith.constant 1 : index
    %c0_67 = arith.constant 0 : index
    %c0_68 = arith.constant 0 : index
    %163 = vector.load %arg2[%c1, %c0_67, %c0_68] : memref<2x1x32xf32, #tpu.memory_space<vmem>>, vector<1x1x32xf32>
    %164 = vector.shape_cast %163 : vector<1x1x32xf32> to vector<1x32xf32>
    %c1_69 = arith.constant 1 : index
    %c0_70 = arith.constant 0 : index
    %c0_71 = arith.constant 0 : index
    %165 = vector.load %arg3[%c1_69, %c0_70, %c0_71] : memref<2x1x32xf32, #tpu.memory_space<vmem>>, vector<1x1x32xf32>
    %166 = vector.shape_cast %165 : vector<1x1x32xf32> to vector<1x32xf32>
    %cst_72 = arith.constant dense<0.000000e+00> : vector<32xf32>
    %167 = vector.multi_reduction <add>, %162, %cst_72 [1] : vector<32x32xf32> to vector<32xf32>
    %168 = vector.shape_cast %167 : vector<32xf32> to vector<32x1xf32>
    %cst_73 = arith.constant 3.200000e+01 : f32
    %169 = vector.broadcast %cst_73 : f32 to vector<32x1xf32>
    %170 = arith.divf %168, %169 : vector<32x1xf32>
    %171 = vector.broadcast %170 : vector<32x1xf32> to vector<32x32xf32>
    %172 = arith.subf %162, %171 : vector<32x32xf32>
    %173 = arith.mulf %172, %172 : vector<32x32xf32>
    %cst_74 = arith.constant dense<0.000000e+00> : vector<32xf32>
    %174 = vector.multi_reduction <add>, %173, %cst_74 [1] : vector<32x32xf32> to vector<32xf32>
    %175 = vector.shape_cast %174 : vector<32xf32> to vector<32x1xf32>
    %cst_75 = arith.constant 3.200000e+01 : f32
    %176 = vector.broadcast %cst_75 : f32 to vector<32x1xf32>
    %177 = arith.divf %175, %176 : vector<32x1xf32>
    %cst_76 = arith.constant 9.99999974E-6 : f32
    %178 = vector.broadcast %cst_76 : f32 to vector<32x1xf32>
    %179 = arith.addf %177, %178 : vector<32x1xf32>
    %180 = math.rsqrt %179 : vector<32x1xf32>
    %181 = vector.broadcast %180 : vector<32x1xf32> to vector<32x32xf32>
    %182 = arith.mulf %172, %181 : vector<32x32xf32>
    %183 = vector.broadcast %164 : vector<1x32xf32> to vector<32x32xf32>
    %184 = arith.mulf %182, %183 : vector<32x32xf32>
    %185 = vector.broadcast %166 : vector<1x32xf32> to vector<32x32xf32>
    %186 = arith.addf %184, %185 : vector<32x32xf32>
    %187 = arith.truncf %186 : vector<32x32xf32> to vector<32x32xbf16>
    %c1_77 = arith.constant 1 : index
    %c0_78 = arith.constant 0 : index
    %c0_79 = arith.constant 0 : index
    %188 = vector.load %arg4[%c1_77, %c0_78, %c0_79] : memref<2x32x192xbf16, #tpu.memory_space<vmem>>, vector<1x32x192xbf16>
    %189 = vector.shape_cast %188 : vector<1x32x192xbf16> to vector<32x192xbf16>
    %cst_80 = arith.constant dense<0.000000e+00> : vector<32x192xf32>
    %190 = tpu.matmul %187, %189, %cst_80 {dimension_numbers = #tpu.dot_dimension_numbers<[1], [0], [0], [1], [0, 0, 1, 1], [], []>} : vector<32x32xbf16>, vector<32x192xbf16>, vector<32x192xf32> -> vector<32x192xf32>
    %191 = vector.shape_cast %190 : vector<32x192xf32> to vector<2x16x192xf32>
    %192 = vector.extract_strided_slice %191 {offsets = [0, 0, 0], sizes = [2, 16, 16], strides = [1, 1, 1]} : vector<2x16x192xf32> to vector<2x16x16xf32>
    %193 = vector.extract_strided_slice %191 {offsets = [0, 0, 64], sizes = [2, 16, 16], strides = [1, 1, 1]} : vector<2x16x192xf32> to vector<2x16x16xf32>
    %194 = vector.extract_strided_slice %191 {offsets = [0, 0, 128], sizes = [2, 16, 16], strides = [1, 1, 1]} : vector<2x16x192xf32> to vector<2x16x16xf32>
    %195 = arith.truncf %192 : vector<2x16x16xf32> to vector<2x16x16xbf16>
    %196 = arith.truncf %193 : vector<2x16x16xf32> to vector<2x16x16xbf16>
    "tpu.trace_start"() <{level = 10 : i32, message = "bqd,bkd->bqk"}> : () -> ()
    %cst_81 = arith.constant dense<0.000000e+00> : vector<2x16x16xf32>
    %197 = tpu.matmul %195, %196, %cst_81 {dimension_numbers = #tpu.dot_dimension_numbers<[2], [2], [1], [1], [0, 0, 0, 1, 1, 1], [0], [0]>} : vector<2x16x16xbf16>, vector<2x16x16xbf16>, vector<2x16x16xf32> -> vector<2x16x16xf32>
    "tpu.trace_stop"() : () -> ()
    %cst_82 = arith.constant 2.500000e-01 : f32
    %198 = vector.broadcast %cst_82 : f32 to vector<2x16x16xf32>
    %199 = arith.mulf %197, %198 : vector<2x16x16xf32>
    %cst_83 = arith.constant dense<0xFF800000> : vector<2x16xf32>
    %200 = vector.multi_reduction <maximumf>, %199, %cst_83 [2] : vector<2x16x16xf32> to vector<2x16xf32>
    %201 = vector.shape_cast %200 : vector<2x16xf32> to vector<2x16x1xf32>
    %202 = vector.broadcast %201 : vector<2x16x1xf32> to vector<2x16x16xf32>
    %203 = arith.subf %199, %202 : vector<2x16x16xf32>
    %204 = math.exp %203 : vector<2x16x16xf32>
    %cst_84 = arith.constant dense<0.000000e+00> : vector<2x16xf32>
    %205 = vector.multi_reduction <add>, %204, %cst_84 [2] : vector<2x16x16xf32> to vector<2x16xf32>
    %206 = vector.shape_cast %205 : vector<2x16xf32> to vector<2x16x1xf32>
    %207 = vector.broadcast %206 : vector<2x16x1xf32> to vector<2x16x16xf32>
    %208 = arith.divf %204, %207 : vector<2x16x16xf32>
    %209 = arith.truncf %208 : vector<2x16x16xf32> to vector<2x16x16xbf16>
    %210 = arith.truncf %194 : vector<2x16x16xf32> to vector<2x16x16xbf16>
    "tpu.trace_start"() <{level = 10 : i32, message = "bqk,bkd->bqd"}> : () -> ()
    %cst_85 = arith.constant dense<0.000000e+00> : vector<2x16x16xf32>
    %211 = tpu.matmul %209, %210, %cst_85 {dimension_numbers = #tpu.dot_dimension_numbers<[2], [1], [1], [2], [0, 0, 0, 1, 1, 2], [0], [0]>} : vector<2x16x16xbf16>, vector<2x16x16xbf16>, vector<2x16x16xf32> -> vector<2x16x16xf32>
    "tpu.trace_stop"() : () -> ()
    %212 = vector.extract_strided_slice %191 {offsets = [0, 0, 16], sizes = [2, 16, 16], strides = [1, 1, 1]} : vector<2x16x192xf32> to vector<2x16x16xf32>
    %213 = vector.extract_strided_slice %191 {offsets = [0, 0, 80], sizes = [2, 16, 16], strides = [1, 1, 1]} : vector<2x16x192xf32> to vector<2x16x16xf32>
    %214 = vector.extract_strided_slice %191 {offsets = [0, 0, 144], sizes = [2, 16, 16], strides = [1, 1, 1]} : vector<2x16x192xf32> to vector<2x16x16xf32>
    %215 = arith.truncf %212 : vector<2x16x16xf32> to vector<2x16x16xbf16>
    %216 = arith.truncf %213 : vector<2x16x16xf32> to vector<2x16x16xbf16>
    "tpu.trace_start"() <{level = 10 : i32, message = "bqd,bkd->bqk"}> : () -> ()
    %cst_86 = arith.constant dense<0.000000e+00> : vector<2x16x16xf32>
    %217 = tpu.matmul %215, %216, %cst_86 {dimension_numbers = #tpu.dot_dimension_numbers<[2], [2], [1], [1], [0, 0, 0, 1, 1, 1], [0], [0]>} : vector<2x16x16xbf16>, vector<2x16x16xbf16>, vector<2x16x16xf32> -> vector<2x16x16xf32>
    "tpu.trace_stop"() : () -> ()
    %cst_87 = arith.constant 2.500000e-01 : f32
    %218 = vector.broadcast %cst_87 : f32 to vector<2x16x16xf32>
    %219 = arith.mulf %217, %218 : vector<2x16x16xf32>
    %cst_88 = arith.constant dense<0xFF800000> : vector<2x16xf32>
    %220 = vector.multi_reduction <maximumf>, %219, %cst_88 [2] : vector<2x16x16xf32> to vector<2x16xf32>
    %221 = vector.shape_cast %220 : vector<2x16xf32> to vector<2x16x1xf32>
    %222 = vector.broadcast %221 : vector<2x16x1xf32> to vector<2x16x16xf32>
    %223 = arith.subf %219, %222 : vector<2x16x16xf32>
    %224 = math.exp %223 : vector<2x16x16xf32>
    %cst_89 = arith.constant dense<0.000000e+00> : vector<2x16xf32>
    %225 = vector.multi_reduction <add>, %224, %cst_89 [2] : vector<2x16x16xf32> to vector<2x16xf32>
    %226 = vector.shape_cast %225 : vector<2x16xf32> to vector<2x16x1xf32>
    %227 = vector.broadcast %226 : vector<2x16x1xf32> to vector<2x16x16xf32>
    %228 = arith.divf %224, %227 : vector<2x16x16xf32>
    %229 = arith.truncf %228 : vector<2x16x16xf32> to vector<2x16x16xbf16>
    %230 = arith.truncf %214 : vector<2x16x16xf32> to vector<2x16x16xbf16>
    "tpu.trace_start"() <{level = 10 : i32, message = "bqk,bkd->bqd"}> : () -> ()
    %cst_90 = arith.constant dense<0.000000e+00> : vector<2x16x16xf32>
    %231 = tpu.matmul %229, %230, %cst_90 {dimension_numbers = #tpu.dot_dimension_numbers<[2], [1], [1], [2], [0, 0, 0, 1, 1, 2], [0], [0]>} : vector<2x16x16xbf16>, vector<2x16x16xbf16>, vector<2x16x16xf32> -> vector<2x16x16xf32>
    "tpu.trace_stop"() : () -> ()
    %232 = vector.extract_strided_slice %191 {offsets = [0, 0, 32], sizes = [2, 16, 16], strides = [1, 1, 1]} : vector<2x16x192xf32> to vector<2x16x16xf32>
    %233 = vector.extract_strided_slice %191 {offsets = [0, 0, 96], sizes = [2, 16, 16], strides = [1, 1, 1]} : vector<2x16x192xf32> to vector<2x16x16xf32>
    %234 = vector.extract_strided_slice %191 {offsets = [0, 0, 160], sizes = [2, 16, 16], strides = [1, 1, 1]} : vector<2x16x192xf32> to vector<2x16x16xf32>
    %235 = arith.truncf %232 : vector<2x16x16xf32> to vector<2x16x16xbf16>
    %236 = arith.truncf %233 : vector<2x16x16xf32> to vector<2x16x16xbf16>
    "tpu.trace_start"() <{level = 10 : i32, message = "bqd,bkd->bqk"}> : () -> ()
    %cst_91 = arith.constant dense<0.000000e+00> : vector<2x16x16xf32>
    %237 = tpu.matmul %235, %236, %cst_91 {dimension_numbers = #tpu.dot_dimension_numbers<[2], [2], [1], [1], [0, 0, 0, 1, 1, 1], [0], [0]>} : vector<2x16x16xbf16>, vector<2x16x16xbf16>, vector<2x16x16xf32> -> vector<2x16x16xf32>
    "tpu.trace_stop"() : () -> ()
    %cst_92 = arith.constant 2.500000e-01 : f32
    %238 = vector.broadcast %cst_92 : f32 to vector<2x16x16xf32>
    %239 = arith.mulf %237, %238 : vector<2x16x16xf32>
    %cst_93 = arith.constant dense<0xFF800000> : vector<2x16xf32>
    %240 = vector.multi_reduction <maximumf>, %239, %cst_93 [2] : vector<2x16x16xf32> to vector<2x16xf32>
    %241 = vector.shape_cast %240 : vector<2x16xf32> to vector<2x16x1xf32>
    %242 = vector.broadcast %241 : vector<2x16x1xf32> to vector<2x16x16xf32>
    %243 = arith.subf %239, %242 : vector<2x16x16xf32>
    %244 = math.exp %243 : vector<2x16x16xf32>
    %cst_94 = arith.constant dense<0.000000e+00> : vector<2x16xf32>
    %245 = vector.multi_reduction <add>, %244, %cst_94 [2] : vector<2x16x16xf32> to vector<2x16xf32>
    %246 = vector.shape_cast %245 : vector<2x16xf32> to vector<2x16x1xf32>
    %247 = vector.broadcast %246 : vector<2x16x1xf32> to vector<2x16x16xf32>
    %248 = arith.divf %244, %247 : vector<2x16x16xf32>
    %249 = arith.truncf %248 : vector<2x16x16xf32> to vector<2x16x16xbf16>
    %250 = arith.truncf %234 : vector<2x16x16xf32> to vector<2x16x16xbf16>
    "tpu.trace_start"() <{level = 10 : i32, message = "bqk,bkd->bqd"}> : () -> ()
    %cst_95 = arith.constant dense<0.000000e+00> : vector<2x16x16xf32>
    %251 = tpu.matmul %249, %250, %cst_95 {dimension_numbers = #tpu.dot_dimension_numbers<[2], [1], [1], [2], [0, 0, 0, 1, 1, 2], [0], [0]>} : vector<2x16x16xbf16>, vector<2x16x16xbf16>, vector<2x16x16xf32> -> vector<2x16x16xf32>
    "tpu.trace_stop"() : () -> ()
    %252 = vector.extract_strided_slice %191 {offsets = [0, 0, 48], sizes = [2, 16, 16], strides = [1, 1, 1]} : vector<2x16x192xf32> to vector<2x16x16xf32>
    %253 = vector.extract_strided_slice %191 {offsets = [0, 0, 112], sizes = [2, 16, 16], strides = [1, 1, 1]} : vector<2x16x192xf32> to vector<2x16x16xf32>
    %254 = vector.extract_strided_slice %191 {offsets = [0, 0, 176], sizes = [2, 16, 16], strides = [1, 1, 1]} : vector<2x16x192xf32> to vector<2x16x16xf32>
    %255 = arith.truncf %252 : vector<2x16x16xf32> to vector<2x16x16xbf16>
    %256 = arith.truncf %253 : vector<2x16x16xf32> to vector<2x16x16xbf16>
    "tpu.trace_start"() <{level = 10 : i32, message = "bqd,bkd->bqk"}> : () -> ()
    %cst_96 = arith.constant dense<0.000000e+00> : vector<2x16x16xf32>
    %257 = tpu.matmul %255, %256, %cst_96 {dimension_numbers = #tpu.dot_dimension_numbers<[2], [2], [1], [1], [0, 0, 0, 1, 1, 1], [0], [0]>} : vector<2x16x16xbf16>, vector<2x16x16xbf16>, vector<2x16x16xf32> -> vector<2x16x16xf32>
    "tpu.trace_stop"() : () -> ()
    %cst_97 = arith.constant 2.500000e-01 : f32
    %258 = vector.broadcast %cst_97 : f32 to vector<2x16x16xf32>
    %259 = arith.mulf %257, %258 : vector<2x16x16xf32>
    %cst_98 = arith.constant dense<0xFF800000> : vector<2x16xf32>
    %260 = vector.multi_reduction <maximumf>, %259, %cst_98 [2] : vector<2x16x16xf32> to vector<2x16xf32>
    %261 = vector.shape_cast %260 : vector<2x16xf32> to vector<2x16x1xf32>
    %262 = vector.broadcast %261 : vector<2x16x1xf32> to vector<2x16x16xf32>
    %263 = arith.subf %259, %262 : vector<2x16x16xf32>
    %264 = math.exp %263 : vector<2x16x16xf32>
    %cst_99 = arith.constant dense<0.000000e+00> : vector<2x16xf32>
    %265 = vector.multi_reduction <add>, %264, %cst_99 [2] : vector<2x16x16xf32> to vector<2x16xf32>
    %266 = vector.shape_cast %265 : vector<2x16xf32> to vector<2x16x1xf32>
    %267 = vector.broadcast %266 : vector<2x16x1xf32> to vector<2x16x16xf32>
    %268 = arith.divf %264, %267 : vector<2x16x16xf32>
    %269 = arith.truncf %268 : vector<2x16x16xf32> to vector<2x16x16xbf16>
    %270 = arith.truncf %254 : vector<2x16x16xf32> to vector<2x16x16xbf16>
    "tpu.trace_start"() <{level = 10 : i32, message = "bqk,bkd->bqd"}> : () -> ()
    %cst_100 = arith.constant dense<0.000000e+00> : vector<2x16x16xf32>
    %271 = tpu.matmul %269, %270, %cst_100 {dimension_numbers = #tpu.dot_dimension_numbers<[2], [1], [1], [2], [0, 0, 0, 1, 1, 2], [0], [0]>} : vector<2x16x16xbf16>, vector<2x16x16xbf16>, vector<2x16x16xf32> -> vector<2x16x16xf32>
    "tpu.trace_stop"() : () -> ()
    %272 = tpu.concatenate %211, %231, %251, %271 in 2 : vector<2x16x16xf32>, vector<2x16x16xf32>, vector<2x16x16xf32>, vector<2x16x16xf32> -> vector<2x16x64xf32>
    %273 = vector.shape_cast %272 : vector<2x16x64xf32> to vector<32x64xf32>
    %274 = arith.truncf %273 : vector<32x64xf32> to vector<32x64xbf16>
    %c1_101 = arith.constant 1 : index
    %c0_102 = arith.constant 0 : index
    %c0_103 = arith.constant 0 : index
    %275 = vector.load %arg5[%c1_101, %c0_102, %c0_103] : memref<2x64x32xbf16, #tpu.memory_space<vmem>>, vector<1x64x32xbf16>
    %276 = vector.shape_cast %275 : vector<1x64x32xbf16> to vector<64x32xbf16>
    %cst_104 = arith.constant dense<0.000000e+00> : vector<32x32xf32>
    %277 = tpu.matmul %274, %276, %cst_104 {dimension_numbers = #tpu.dot_dimension_numbers<[1], [0], [0], [1], [0, 0, 1, 1], [], []>} : vector<32x64xbf16>, vector<64x32xbf16>, vector<32x32xf32> -> vector<32x32xf32>
    %c1_105 = arith.constant 1 : index
    %c0_106 = arith.constant 0 : index
    %c0_107 = arith.constant 0 : index
    %278 = vector.load %arg6[%c1_105, %c0_106, %c0_107] : memref<2x1x32xf32, #tpu.memory_space<vmem>>, vector<1x1x32xf32>
    %279 = vector.shape_cast %278 : vector<1x1x32xf32> to vector<1x32xf32>
    %280 = vector.broadcast %279 : vector<1x32xf32> to vector<32x32xf32>
    %281 = arith.addf %277, %280 : vector<32x32xf32>
    %282 = arith.addf %162, %281 : vector<32x32xf32>
    %c1_108 = arith.constant 1 : index
    %c0_109 = arith.constant 0 : index
    %c0_110 = arith.constant 0 : index
    %283 = vector.load %arg7[%c1_108, %c0_109, %c0_110] : memref<2x1x32xf32, #tpu.memory_space<vmem>>, vector<1x1x32xf32>
    %284 = vector.shape_cast %283 : vector<1x1x32xf32> to vector<1x32xf32>
    %c1_111 = arith.constant 1 : index
    %c0_112 = arith.constant 0 : index
    %c0_113 = arith.constant 0 : index
    %285 = vector.load %arg8[%c1_111, %c0_112, %c0_113] : memref<2x1x32xf32, #tpu.memory_space<vmem>>, vector<1x1x32xf32>
    %286 = vector.shape_cast %285 : vector<1x1x32xf32> to vector<1x32xf32>
    %cst_114 = arith.constant dense<0.000000e+00> : vector<32xf32>
    %287 = vector.multi_reduction <add>, %282, %cst_114 [1] : vector<32x32xf32> to vector<32xf32>
    %288 = vector.shape_cast %287 : vector<32xf32> to vector<32x1xf32>
    %cst_115 = arith.constant 3.200000e+01 : f32
    %289 = vector.broadcast %cst_115 : f32 to vector<32x1xf32>
    %290 = arith.divf %288, %289 : vector<32x1xf32>
    %291 = vector.broadcast %290 : vector<32x1xf32> to vector<32x32xf32>
    %292 = arith.subf %282, %291 : vector<32x32xf32>
    %293 = arith.mulf %292, %292 : vector<32x32xf32>
    %cst_116 = arith.constant dense<0.000000e+00> : vector<32xf32>
    %294 = vector.multi_reduction <add>, %293, %cst_116 [1] : vector<32x32xf32> to vector<32xf32>
    %295 = vector.shape_cast %294 : vector<32xf32> to vector<32x1xf32>
    %cst_117 = arith.constant 3.200000e+01 : f32
    %296 = vector.broadcast %cst_117 : f32 to vector<32x1xf32>
    %297 = arith.divf %295, %296 : vector<32x1xf32>
    %cst_118 = arith.constant 9.99999974E-6 : f32
    %298 = vector.broadcast %cst_118 : f32 to vector<32x1xf32>
    %299 = arith.addf %297, %298 : vector<32x1xf32>
    %300 = math.rsqrt %299 : vector<32x1xf32>
    %301 = vector.broadcast %300 : vector<32x1xf32> to vector<32x32xf32>
    %302 = arith.mulf %292, %301 : vector<32x32xf32>
    %303 = vector.broadcast %284 : vector<1x32xf32> to vector<32x32xf32>
    %304 = arith.mulf %302, %303 : vector<32x32xf32>
    %305 = vector.broadcast %286 : vector<1x32xf32> to vector<32x32xf32>
    %306 = arith.addf %304, %305 : vector<32x32xf32>
    %307 = arith.truncf %306 : vector<32x32xf32> to vector<32x32xbf16>
    %c1_119 = arith.constant 1 : index
    %c0_120 = arith.constant 0 : index
    %c0_121 = arith.constant 0 : index
    %308 = vector.load %arg9[%c1_119, %c0_120, %c0_121] : memref<2x32x128xbf16, #tpu.memory_space<vmem>>, vector<1x32x128xbf16>
    %309 = vector.shape_cast %308 : vector<1x32x128xbf16> to vector<32x128xbf16>
    %cst_122 = arith.constant dense<0.000000e+00> : vector<32x128xf32>
    %310 = tpu.matmul %307, %309, %cst_122 {dimension_numbers = #tpu.dot_dimension_numbers<[1], [0], [0], [1], [0, 0, 1, 1], [], []>} : vector<32x32xbf16>, vector<32x128xbf16>, vector<32x128xf32> -> vector<32x128xf32>
    %c1_123 = arith.constant 1 : index
    %c0_124 = arith.constant 0 : index
    %c0_125 = arith.constant 0 : index
    %311 = vector.load %arg10[%c1_123, %c0_124, %c0_125] : memref<2x1x128xf32, #tpu.memory_space<vmem>>, vector<1x1x128xf32>
    %312 = vector.shape_cast %311 : vector<1x1x128xf32> to vector<1x128xf32>
    %313 = vector.broadcast %312 : vector<1x128xf32> to vector<32x128xf32>
    %314 = arith.addf %310, %313 : vector<32x128xf32>
    %315 = math.tanh %314 : vector<32x128xf32>
    %316 = arith.truncf %315 : vector<32x128xf32> to vector<32x128xbf16>
    %c1_126 = arith.constant 1 : index
    %c0_127 = arith.constant 0 : index
    %c0_128 = arith.constant 0 : index
    %317 = vector.load %arg11[%c1_126, %c0_127, %c0_128] : memref<2x128x32xbf16, #tpu.memory_space<vmem>>, vector<1x128x32xbf16>
    %318 = vector.shape_cast %317 : vector<1x128x32xbf16> to vector<128x32xbf16>
    %cst_129 = arith.constant dense<0.000000e+00> : vector<32x32xf32>
    %319 = tpu.matmul %316, %318, %cst_129 {dimension_numbers = #tpu.dot_dimension_numbers<[1], [0], [0], [1], [0, 0, 1, 1], [], []>} : vector<32x128xbf16>, vector<128x32xbf16>, vector<32x32xf32> -> vector<32x32xf32>
    %c1_130 = arith.constant 1 : index
    %c0_131 = arith.constant 0 : index
    %c0_132 = arith.constant 0 : index
    %320 = vector.load %arg12[%c1_130, %c0_131, %c0_132] : memref<2x1x32xf32, #tpu.memory_space<vmem>>, vector<1x1x32xf32>
    %321 = vector.shape_cast %320 : vector<1x1x32xf32> to vector<1x32xf32>
    %322 = vector.broadcast %321 : vector<1x32xf32> to vector<32x32xf32>
    %323 = arith.addf %319, %322 : vector<32x32xf32>
    %324 = arith.addf %282, %323 : vector<32x32xf32>
    %c0_133 = arith.constant 0 : index
    %c0_134 = arith.constant 0 : index
    %325 = vector.load %arg13[%c0_133, %c0_134] : memref<1x32xf32, #tpu.memory_space<vmem>>, vector<1x32xf32>
    %c0_135 = arith.constant 0 : index
    %c0_136 = arith.constant 0 : index
    %326 = vector.load %arg14[%c0_135, %c0_136] : memref<1x32xf32, #tpu.memory_space<vmem>>, vector<1x32xf32>
    %cst_137 = arith.constant dense<0.000000e+00> : vector<32xf32>
    %327 = vector.multi_reduction <add>, %324, %cst_137 [1] : vector<32x32xf32> to vector<32xf32>
    %328 = vector.shape_cast %327 : vector<32xf32> to vector<32x1xf32>
    %cst_138 = arith.constant 3.200000e+01 : f32
    %329 = vector.broadcast %cst_138 : f32 to vector<32x1xf32>
    %330 = arith.divf %328, %329 : vector<32x1xf32>
    %331 = vector.broadcast %330 : vector<32x1xf32> to vector<32x32xf32>
    %332 = arith.subf %324, %331 : vector<32x32xf32>
    %333 = arith.mulf %332, %332 : vector<32x32xf32>
    %cst_139 = arith.constant dense<0.000000e+00> : vector<32xf32>
    %334 = vector.multi_reduction <add>, %333, %cst_139 [1] : vector<32x32xf32> to vector<32xf32>
    %335 = vector.shape_cast %334 : vector<32xf32> to vector<32x1xf32>
    %cst_140 = arith.constant 3.200000e+01 : f32
    %336 = vector.broadcast %cst_140 : f32 to vector<32x1xf32>
    %337 = arith.divf %335, %336 : vector<32x1xf32>
    %cst_141 = arith.constant 9.99999974E-6 : f32
    %338 = vector.broadcast %cst_141 : f32 to vector<32x1xf32>
    %339 = arith.addf %337, %338 : vector<32x1xf32>
    %340 = math.rsqrt %339 : vector<32x1xf32>
    %341 = vector.broadcast %340 : vector<32x1xf32> to vector<32x32xf32>
    %342 = arith.mulf %332, %341 : vector<32x32xf32>
    %343 = vector.broadcast %325 : vector<1x32xf32> to vector<32x32xf32>
    %344 = arith.mulf %342, %343 : vector<32x32xf32>
    %345 = vector.broadcast %326 : vector<1x32xf32> to vector<32x32xf32>
    %346 = arith.addf %344, %345 : vector<32x32xf32>
    %c0_142 = arith.constant 0 : index
    %c0_143 = arith.constant 0 : index
    %347 = vector.load %arg15[%c0_142, %c0_143] : memref<32x32xf32, #tpu.memory_space<vmem>>, vector<32x32xf32>
    tpu.vector_store %arg15[%c0_142, %c0_143], %346 {strides = array<i32>} : memref<32x32xf32, #tpu.memory_space<vmem>>, vector<32x32xf32>,
    return
  }
  func.func @transform_0(%arg0: i32) -> (i32, i32) {
    %c0_i32 = arith.constant 0 : i32
    %c0_i32_0 = arith.constant 0 : i32
    return %arg0, %c0_i32 : i32, i32
  }
  func.func @transform_1(%arg0: i32) -> (i32, i32, i32) {
    %c0_i32 = arith.constant 0 : i32
    %c0_i32_0 = arith.constant 0 : i32
    %c0_i32_1 = arith.constant 0 : i32
    %c0_i32_2 = arith.constant 0 : i32
    return %c0_i32, %c0_i32_0, %c0_i32_1 : i32, i32, i32
  }
  func.func @transform_2(%arg0: i32) -> (i32, i32, i32) {
    %c0_i32 = arith.constant 0 : i32
    %c0_i32_0 = arith.constant 0 : i32
    %c0_i32_1 = arith.constant 0 : i32
    %c0_i32_2 = arith.constant 0 : i32
    return %c0_i32, %c0_i32_0, %c0_i32_1 : i32, i32, i32
  }
  func.func @transform_3(%arg0: i32) -> (i32, i32, i32) {
    %c0_i32 = arith.constant 0 : i32
    %c0_i32_0 = arith.constant 0 : i32
    %c0_i32_1 = arith.constant 0 : i32
    %c0_i32_2 = arith.constant 0 : i32
    return %c0_i32, %c0_i32_0, %c0_i32_1 : i32, i32, i32
  }
  func.func @transform_4(%arg0: i32) -> (i32, i32, i32) {
    %c0_i32 = arith.constant 0 : i32
    %c0_i32_0 = arith.constant 0 : i32
    %c0_i32_1 = arith.constant 0 : i32
    %c0_i32_2 = arith.constant 0 : i32
    return %c0_i32, %c0_i32_0, %c0_i32_1 : i32, i32, i32
  }
  func.func @transform_5(%arg0: i32) -> (i32, i32, i32) {
    %c0_i32 = arith.constant 0 : i32
    %c0_i32_0 = arith.constant 0 : i32
    %c0_i32_1 = arith.constant 0 : i32
    %c0_i32_2 = arith.constant 0 : i32
    return %c0_i32, %c0_i32_0, %c0_i32_1 : i32, i32, i32
  }
  func.func @transform_6(%arg0: i32) -> (i32, i32, i32) {
    %c0_i32 = arith.constant 0 : i32
    %c0_i32_0 = arith.constant 0 : i32
    %c0_i32_1 = arith.constant 0 : i32
    %c0_i32_2 = arith.constant 0 : i32
    return %c0_i32, %c0_i32_0, %c0_i32_1 : i32, i32, i32
  }
  func.func @transform_7(%arg0: i32) -> (i32, i32, i32) {
    %c0_i32 = arith.constant 0 : i32
    %c0_i32_0 = arith.constant 0 : i32
    %c0_i32_1 = arith.constant 0 : i32
    %c0_i32_2 = arith.constant 0 : i32
    return %c0_i32, %c0_i32_0, %c0_i32_1 : i32, i32, i32
  }
  func.func @transform_8(%arg0: i32) -> (i32, i32, i32) {
    %c0_i32 = arith.constant 0 : i32
    %c0_i32_0 = arith.constant 0 : i32
    %c0_i32_1 = arith.constant 0 : i32
    %c0_i32_2 = arith.constant 0 : i32
    return %c0_i32, %c0_i32_0, %c0_i32_1 : i32, i32, i32
  }
  func.func @transform_9(%arg0: i32) -> (i32, i32, i32) {
    %c0_i32 = arith.constant 0 : i32
    %c0_i32_0 = arith.constant 0 : i32
    %c0_i32_1 = arith.constant 0 : i32
    %c0_i32_2 = arith.constant 0 : i32
    return %c0_i32, %c0_i32_0, %c0_i32_1 : i32, i32, i32
  }
  func.func @transform_10(%arg0: i32) -> (i32, i32, i32) {
    %c0_i32 = arith.constant 0 : i32
    %c0_i32_0 = arith.constant 0 : i32
    %c0_i32_1 = arith.constant 0 : i32
    %c0_i32_2 = arith.constant 0 : i32
    return %c0_i32, %c0_i32_0, %c0_i32_1 : i32, i32, i32
  }
  func.func @transform_11(%arg0: i32) -> (i32, i32, i32) {
    %c0_i32 = arith.constant 0 : i32
    %c0_i32_0 = arith.constant 0 : i32
    %c0_i32_1 = arith.constant 0 : i32
    %c0_i32_2 = arith.constant 0 : i32
    return %c0_i32, %c0_i32_0, %c0_i32_1 : i32, i32, i32
  }
  func.func @transform_12(%arg0: i32) -> (i32, i32) {
    %c0_i32 = arith.constant 0 : i32
    %c0_i32_0 = arith.constant 0 : i32
    %c0_i32_1 = arith.constant 0 : i32
    return %c0_i32, %c0_i32_0 : i32, i32
  }
  func.func @transform_13(%arg0: i32) -> (i32, i32) {
    %c0_i32 = arith.constant 0 : i32
    %c0_i32_0 = arith.constant 0 : i32
    %c0_i32_1 = arith.constant 0 : i32
    return %c0_i32, %c0_i32_0 : i32, i32
  }
  func.func @transform_14(%arg0: i32) -> (i32, i32) {
    %c0_i32 = arith.constant 0 : i32
    %c0_i32_0 = arith.constant 0 : i32
    return %arg0, %c0_i32 : i32, i32
  }
}

</mosaic_0001>

<llo_original>
// kernel: tpu_custom_call.1
$region0: #{tpu_custom_call.1}
  #allocation0 [shape = 'u32[]', space=smem, size = 0x4, offset = 0x4, fixed_abs, tag = 'smem constant byte address 0x4 - core index']
  #allocation1 [shape = 'u32[144,128]{1,0:T(1,128)}', space=vmem, size = 0x12000, scoped, tag = 'internal scratch']
  %s0 = inlined_call_operand.vmem [shape: f32[32,32], index: 0, kind: input, shape index: {}]
  %s1 = inlined_call_operand.vmem [shape: f32[2,1,32], index: 1, kind: input, shape index: {}]
  %s2 = inlined_call_operand.vmem [shape: f32[2,1,32], index: 2, kind: input, shape index: {}]
  %s3 = inlined_call_operand.vmem [shape: bf16[2,32,192], index: 3, kind: input, shape index: {}]
  %s4 = inlined_call_operand.vmem [shape: bf16[2,64,32], index: 4, kind: input, shape index: {}]
  %s5 = inlined_call_operand.vmem [shape: f32[2,1,32], index: 5, kind: input, shape index: {}]
  %s6 = inlined_call_operand.vmem [shape: f32[2,1,32], index: 6, kind: input, shape index: {}]
  %s7 = inlined_call_operand.vmem [shape: f32[2,1,32], index: 7, kind: input, shape index: {}]
  %s8 = inlined_call_operand.vmem [shape: bf16[2,32,128], index: 8, kind: input, shape index: {}]
  %s9 = inlined_call_operand.vmem [shape: f32[2,1,128], index: 9, kind: input, shape index: {}]
  %s10 = inlined_call_operand.vmem [shape: bf16[2,128,32], index: 10, kind: input, shape index: {}]
  %s11 = inlined_call_operand.vmem [shape: f32[2,1,32], index: 11, kind: input, shape index: {}]
  %s12 = inlined_call_operand.vmem [shape: f32[1,32], index: 12, kind: input, shape index: {}]
  %s13 = inlined_call_operand.vmem [shape: f32[1,32], index: 13, kind: input, shape index: {}]
  %s14 = inlined_call_operand.hbm [shape: f32[32,32], index: 14, kind: output, shape index: {}]
  %s15 = sld [smem:[#allocation0]]
  $region66: #{tpu_custom_call.1} parent=0
    _
  %s17 = ssub.s32 1, %s15
  %s18 = scalar_select 0, %s17, %s15
  $region1: #{tpu_custom_call.1} parent=0
    #allocation2 [shape = 'u8[16384]{0}', space=vmem, size = 0x4000, scoped, tag = 'output window, operand 0, single buffered']
    #allocation3 [shape = 's32[1]{0}', space=sflag, size = 0x4, scoped, tag = 'scoped memory for tpu_custom_call.1']
    %19 = vsyncpa [#allocation3], 0
    // Predicated region
    $region2: #{tpu_custom_call.1} parent=1 // pred_check
      _
    $region3: #{tpu_custom_call.1} parent=1 // pred_check_branch
      %21 = sbr.rel (0) target = $region5
    $region4: #{tpu_custom_call.1} parent=1 // pred_region
      _
    $region5: #{tpu_custom_call.1} parent=1 // pred_fallthru
      _
    // Predicated region
    $region6: #{tpu_custom_call.1} parent=1 // pred_check
      _
    $region7: #{tpu_custom_call.1} parent=1 // pred_check_branch
      %23 = sbr.rel (0) target = $region9
    $region8: #{tpu_custom_call.1} parent=1 // pred_region
      _
    $region9: #{tpu_custom_call.1} parent=1 // pred_fallthru
      _
    // Predicated region
    $region10: #{tpu_custom_call.1} parent=1 // pred_check
      _
    $region11: #{tpu_custom_call.1} parent=1 // pred_check_branch
      %25 = sbr.rel (0) target = $region13
    $region12: #{tpu_custom_call.1} parent=1 // pred_region
      _
    $region13: #{tpu_custom_call.1} parent=1 // pred_fallthru
      _
    // Predicated region
    $region14: #{tpu_custom_call.1} parent=1 // pred_check
      _
    $region15: #{tpu_custom_call.1} parent=1 // pred_check_branch
      %27 = sbr.rel (0) target = $region17
    $region16: #{tpu_custom_call.1} parent=1 // pred_region
      _
    $region17: #{tpu_custom_call.1} parent=1 // pred_fallthru
      _
    // Predicated region
    $region18: #{tpu_custom_call.1} parent=1 // pred_check
      _
    $region19: #{tpu_custom_call.1} parent=1 // pred_check_branch
      %29 = sbr.rel (0) target = $region21
    $region20: #{tpu_custom_call.1} parent=1 // pred_region
      _
    $region21: #{tpu_custom_call.1} parent=1 // pred_fallthru
      _
    // Predicated region
    $region22: #{tpu_custom_call.1} parent=1 // pred_check
      _
    $region23: #{tpu_custom_call.1} parent=1 // pred_check_branch
      %31 = sbr.rel (0) target = $region25
    $region24: #{tpu_custom_call.1} parent=1 // pred_region
      _
    $region25: #{tpu_custom_call.1} parent=1 // pred_fallthru
      _
    // Predicated region
    $region26: #{tpu_custom_call.1} parent=1 // pred_check
      _
    $region27: #{tpu_custom_call.1} parent=1 // pred_check_branch
      %33 = sbr.rel (0) target = $region29
    $region28: #{tpu_custom_call.1} parent=1 // pred_region
      _
    $region29: #{tpu_custom_call.1} parent=1 // pred_fallthru
      _
    // Predicated region
    $region30: #{tpu_custom_call.1} parent=1 // pred_check
      _
    $region31: #{tpu_custom_call.1} parent=1 // pred_check_branch
      %35 = sbr.rel (0) target = $region33
    $region32: #{tpu_custom_call.1} parent=1 // pred_region
      _
    $region33: #{tpu_custom_call.1} parent=1 // pred_fallthru
      _
    // Predicated region
    $region34: #{tpu_custom_call.1} parent=1 // pred_check
      _
    $region35: #{tpu_custom_call.1} parent=1 // pred_check_branch
      %37 = sbr.rel (0) target = $region37
    $region36: #{tpu_custom_call.1} parent=1 // pred_region
      _
    $region37: #{tpu_custom_call.1} parent=1 // pred_fallthru
      _
    // Predicated region
    $region38: #{tpu_custom_call.1} parent=1 // pred_check
      _
    $region39: #{tpu_custom_call.1} parent=1 // pred_check_branch
      %39 = sbr.rel (0) target = $region41
    $region40: #{tpu_custom_call.1} parent=1 // pred_region
      _
    $region41: #{tpu_custom_call.1} parent=1 // pred_fallthru
      _
    // Predicated region
    $region42: #{tpu_custom_call.1} parent=1 // pred_check
      _
    $region43: #{tpu_custom_call.1} parent=1 // pred_check_branch
      %41 = sbr.rel (0) target = $region45
    $region44: #{tpu_custom_call.1} parent=1 // pred_region
      _
    $region45: #{tpu_custom_call.1} parent=1 // pred_fallthru
      _
    // Predicated region
    $region46: #{tpu_custom_call.1} parent=1 // pred_check
      _
    $region47: #{tpu_custom_call.1} parent=1 // pred_check_branch
      %43 = sbr.rel (0) target = $region49
    $region48: #{tpu_custom_call.1} parent=1 // pred_region
      _
    $region49: #{tpu_custom_call.1} parent=1 // pred_fallthru
      _
    // Predicated region
    $region50: #{tpu_custom_call.1} parent=1 // pred_check
      _
    $region51: #{tpu_custom_call.1} parent=1 // pred_check_branch
      %45 = sbr.rel (0) target = $region53
    $region52: #{tpu_custom_call.1} parent=1 // pred_region
      _
    $region53: #{tpu_custom_call.1} parent=1 // pred_fallthru
      _
    // Predicated region
    $region54: #{tpu_custom_call.1} parent=1 // pred_check
      _
    $region55: #{tpu_custom_call.1} parent=1 // pred_check_branch
      %47 = sbr.rel (0) target = $region57
    $region56: #{tpu_custom_call.1} parent=1 // pred_region
      _
    $region57: #{tpu_custom_call.1} parent=1 // pred_fallthru
      _
    %v49 = vld [vmem:[%s0] sm:$0xff]
    %v50 = vld [vmem:[%s0 + $0x8] sm:$0xff]
    %v51 = vld [vmem:[%s0 + $0x10] sm:$0xff]
    %v52 = vld [vmem:[%s0 + $0x18] sm:$0xff]
    %v53 = vld [vmem:[%s1] sm:$0x1]
    %v54 = vld [vmem:[%s2] sm:$0x1]
    %vm55 = vcmask 261120
    %v56 = vsel %vm55, %v49, 0.0
    %57 = vadd.xlane.f32.xlu0 %v56
    %v58 = vpop.xlane.xlu0 %57
    %v59 = vsel %vm55, %v50, 0.0
    %60 = vadd.xlane.f32.xlu0 %v59
    %v61 = vpop.xlane.xlu0 %60
    %v62 = vsel %vm55, %v51, 0.0
    %63 = vadd.xlane.f32.xlu0 %v62
    %v64 = vpop.xlane.xlu0 %63
    %v65 = vsel %vm55, %v52, 0.0
    %66 = vadd.xlane.f32.xlu0 %v65
    %v67 = vpop.xlane.xlu0 %66
    %v68 = vrcp.pop 32.0
    %v69 = vmul.f32 %v58, %v68
    %v70 = vmul.f32 %v61, %v68
    %v71 = vmul.f32 %v64, %v68
    %v72 = vmul.f32 %v67, %v68
    %v73 = vsub.f32 %v49, %v69
    %v74 = vsub.f32 %v50, %v70
    %v75 = vsub.f32 %v51, %v71
    %v76 = vsub.f32 %v52, %v72
    %v77 = vmul.f32 %v73, %v73
    %v78 = vmul.f32 %v74, %v74
    %v79 = vmul.f32 %v75, %v75
    %v80 = vmul.f32 %v76, %v76
    %v81 = vsel %vm55, %v77, 0.0
    %82 = vadd.xlane.f32.xlu0 %v81
    %v83 = vpop.xlane.xlu0 %82
    %v84 = vsel %vm55, %v78, 0.0
    %85 = vadd.xlane.f32.xlu0 %v84
    %v86 = vpop.xlane.xlu0 %85
    %v87 = vsel %vm55, %v79, 0.0
    %88 = vadd.xlane.f32.xlu0 %v87
    %v89 = vpop.xlane.xlu0 %88
    %v90 = vsel %vm55, %v80, 0.0
    %91 = vadd.xlane.f32.xlu0 %v90
    %v92 = vpop.xlane.xlu0 %91
    %v93 = vmul.f32 %v83, %v68
    %v94 = vmul.f32 %v86, %v68
    %v95 = vmul.f32 %v89, %v68
    %v96 = vmul.f32 %v92, %v68
    %v97 = vadd.f32 %v93, 1e-05
    %v98 = vadd.f32 %v94, 1e-05
    %v99 = vadd.f32 %v95, 1e-05
    %v100 = vadd.f32 %v96, 1e-05
    %v101 = vrsqrt.pop %v97
    %v102 = vrsqrt.pop %v98
    %v103 = vrsqrt.pop %v99
    %v104 = vrsqrt.pop %v100
    %v105 = vmul.f32 %v73, %v101
    %v106 = vmul.f32 %v74, %v102
    %v107 = vmul.f32 %v75, %v103
    %v108 = vmul.f32 %v76, %v104
    %v110 = vlaneseq
    %v111 = vshrl.u32 %v110, 7
    %v112 = vsub.s32 0, %v111
    %v113 = vrot.slane %v53, %v112
    %v115 = vmul.f32 %v105, %v113
    %v116 = vmul.f32 %v106, %v113
    %v117 = vmul.f32 %v107, %v113
    %v118 = vmul.f32 %v108, %v113
    %v120 = vlaneseq
    %v121 = vshrl.u32 %v120, 7
    %v122 = vsub.s32 0, %v121
    %v123 = vrot.slane %v54, %v122
    %v125 = vadd.f32 %v115, %v123
    %v126 = vadd.f32 %v116, %v123
    %v127 = vadd.f32 %v117, %v123
    %v128 = vadd.f32 %v118, %v123
    %v129 = vpack.c.bf16 %v126, %v125
    %v130 = vpack.c.bf16 %v128, %v127
    %v131 = vld [vmem:[%s3] sm:$0xff]
    %v132 = vld [vmem:[%s3 + $0x8] sm:$0xff]
    %v133 = vld [vmem:[%s3 + $0x10] sm:$0xff]
    %v134 = vld [vmem:[%s3 + $0x18] sm:$0xff]
    %v139 = vunpack.c.l.b16 %v131
    %v140 = vunpack.c.h.b16 %v131
    %v141 = vunpack.c.l.b16 %v132
    %v142 = vunpack.c.h.b16 %v132
    %v143 = vunpack.c.l.b16 %v133
    %v144 = vunpack.c.h.b16 %v133
    %v145 = vunpack.c.l.b16 %v134
    %v146 = vunpack.c.h.b16 %v134
    %v147 = vpack.c.b16 %v141, %v139
    %v148 = vpack.c.b16 %v142, %v140
    %v149 = vpack.c.b16 %v145, %v143
    %v150 = vpack.c.b16 %v146, %v144
    %v156 = vsel %vm55, %v129, 0
    %v159 = vsel %vm55, %v130, 0
    %161 = vmatprep.subr.bf16.mxu0 0
    %162 = vmatpush1.bf16.msra.mxu0 0
    %163 = vmatprep.subr.bf16.mxu0 0
    %164 = vmatpush1.bf16.msra.mxu0 0
    %165 = vmatprep.subr.bf16.mxu0 0
    %166 = vmatpush1.bf16.msra.mxu0 0
    %167 = vmatprep.subr.bf16.mxu0 0
    %168 = vmatpush1.bf16.msra.mxu0 0
    %169 = vmatprep.subr.bf16.mxu0 0
    %170 = vmatpush1.bf16.msra.mxu0 0
    %171 = vmatprep.subr.bf16.mxu0 0
    %172 = vmatpush1.bf16.msra.mxu0 0
    %173 = vmatprep.subr.bf16.mxu0 %v150
    %174 = vmatpush1.bf16.msra.mxu0 %v149
    %175 = vmatprep.subr.bf16.mxu0 %v148
    %176 = vmatpush1.bf16.msra.mxu0 %v147
    %177 = vmatprep.subr.bf16.mxu0 0
    %178 = vmatpush2.bf16.msra.mxu0 0
    %179 = vmatprep.subr.bf16.mxu0 0
    %180 = vmatpush2.bf16.msra.mxu0 0
    %181 = vmatprep.subr.bf16.mxu0 0
    %182 = vmatpush2.bf16.msra.mxu0 0
    %183 = vmatprep.subr.bf16.mxu0 0
    %184 = vmatpush2.bf16.msra.mxu0 0
    %185 = vmatprep.subr.bf16.mxu0 0
    %186 = vmatpush2.bf16.msra.mxu0 0
    %187 = vmatprep.subr.bf16.mxu0 0
    %188 = vmatpush2.bf16.msra.mxu0 0
    %189 = vmatprep.subr.bf16.mxu0 0
    %190 = vmatpush2.bf16.msra.mxu0 0
    %191 = vmatprep.subr.bf16.mxu0 0
    %192 = vmatpush2.bf16.msra.mxu0 0
    %193 = vmatprep.mubr.bf16.mxu0 0
    %194 = vmatmul.mubr.bf16.gmra.mxu0 %v156
    %v195 = vpop.f32.mrf.mxu0
    %v196 = vadd.f32 0.0, %v195
    %v197 = vpop.f32.mrf.mxu0
    %v198 = vadd.f32 0.0, %v197
    %v199 = vpop.f32.mrf.mxu0
    %v200 = vadd.f32 0.0, %v199
    %v201 = vpop.f32.mrf.mxu0
    %v202 = vadd.f32 0.0, %v201
    %203 = vmatprep.mubr.bf16.mxu0 0
    %204 = vmatmul.mubr.bf16.gmra.mxu0 %v159
    %v205 = vpop.f32.mrf.mxu0
    %v206 = vadd.f32 0.0, %v205
    %v207 = vpop.f32.mrf.mxu0
    %v208 = vadd.f32 0.0, %v207
    %v209 = vpop.f32.mrf.mxu0
    %v210 = vadd.f32 0.0, %v209
    %v211 = vpop.f32.mrf.mxu0
    %v212 = vadd.f32 0.0, %v211
    %213 = vdwg.mxu0
    %v214 = vpack.c.bf16 %v200, %v196
    %v215 = vpack.c.bf16 %v210, %v206
    %217 = vrot.lane.b32.xlu0 %v214, 64
    %v218 = vpop.permute.xlu0 %217
    %vm219 = vcmask 130048
    %v221 = vsel %vm219, %v214, 0
    %v224 = vsel %vm219, %v218, 0
    %226 = vmatprep.subr.bf16.mxu0 0
    %227 = vmatpush1.bf16.xpose.msra.mxu0 0
    %228 = vmatprep.subr.bf16.mxu0 0
    %229 = vmatpush1.bf16.xpose.msra.mxu0 0
    %230 = vmatprep.subr.bf16.mxu0 0
    %231 = vmatpush1.bf16.xpose.msra.mxu0 0
    %232 = vmatprep.subr.bf16.mxu0 0
    %233 = vmatpush1.bf16.xpose.msra.mxu0 0
    %234 = vmatprep.subr.bf16.mxu0 0
    %235 = vmatpush1.bf16.xpose.msra.mxu0 0
    %236 = vmatprep.subr.bf16.mxu0 0
    %237 = vmatpush1.bf16.xpose.msra.mxu0 0
    %238 = vmatprep.subr.bf16.mxu0 0
    %239 = vmatpush1.bf16.xpose.msra.mxu0 0
    %240 = vmatprep.subr.bf16.mxu0 0
    %241 = vmatpush1.bf16.xpose.msra.mxu0 %v224
    %242 = vmatprep.subr.bf16.mxu0 0
    %243 = vmatpush2.bf16.xpose.msra.mxu0 0
    %244 = vmatprep.subr.bf16.mxu0 0
    %245 = vmatpush2.bf16.xpose.msra.mxu0 0
    %246 = vmatprep.subr.bf16.mxu0 0
    %247 = vmatpush2.bf16.xpose.msra.mxu0 0
    %248 = vmatprep.subr.bf16.mxu0 0
    %249 = vmatpush2.bf16.xpose.msra.mxu0 0
    %250 = vmatprep.subr.bf16.mxu0 0
    %251 = vmatpush2.bf16.xpose.msra.mxu0 0
    %252 = vmatprep.subr.bf16.mxu0 0
    %253 = vmatpush2.bf16.xpose.msra.mxu0 0
    %254 = vmatprep.subr.bf16.mxu0 0
    %255 = vmatpush2.bf16.xpose.msra.mxu0 0
    %256 = vmatprep.subr.bf16.mxu0 0
    %257 = vmatpush2.bf16.xpose.msra.mxu0 0
    %258 = vmatprep.mubr.bf16.mxu0 0
    %259 = vmatmul.mubr.bf16.gmra.mxu0 %v221
    %v260 = vpop.f32.mrf.mxu0
    %v261 = vadd.f32 0.0, %v260
    %v262 = vpop.f32.mrf.mxu0
    %v263 = vpop.f32.mrf.mxu0
    %v264 = vadd.f32 0.0, %v263
    %v265 = vpop.f32.mrf.mxu0
    %266 = vdwg.mxu0
    %268 = vrot.lane.b32.xlu0 %v215, 64
    %v269 = vpop.permute.xlu0 %268
    %v271 = vsel %vm219, %v215, 0
    %v274 = vsel %vm219, %v269, 0
    %276 = vmatprep.subr.bf16.mxu0 0
    %277 = vmatpush1.bf16.xpose.msra.mxu0 0
    %278 = vmatprep.subr.bf16.mxu0 0
    %279 = vmatpush1.bf16.xpose.msra.mxu0 0
    %280 = vmatprep.subr.bf16.mxu0 0
    %281 = vmatpush1.bf16.xpose.msra.mxu0 0
    %282 = vmatprep.subr.bf16.mxu0 0
    %283 = vmatpush1.bf16.xpose.msra.mxu0 0
    %284 = vmatprep.subr.bf16.mxu0 0
    %285 = vmatpush1.bf16.xpose.msra.mxu0 0
    %286 = vmatprep.subr.bf16.mxu0 0
    %287 = vmatpush1.bf16.xpose.msra.mxu0 0
    %288 = vmatprep.subr.bf16.mxu0 0
    %289 = vmatpush1.bf16.xpose.msra.mxu0 0
    %290 = vmatprep.subr.bf16.mxu0 0
    %291 = vmatpush1.bf16.xpose.msra.mxu0 %v274
    %292 = vmatprep.subr.bf16.mxu0 0
    %293 = vmatpush2.bf16.xpose.msra.mxu0 0
    %294 = vmatprep.subr.bf16.mxu0 0
    %295 = vmatpush2.bf16.xpose.msra.mxu0 0
    %296 = vmatprep.subr.bf16.mxu0 0
    %297 = vmatpush2.bf16.xpose.msra.mxu0 0
    %298 = vmatprep.subr.bf16.mxu0 0
    %299 = vmatpush2.bf16.xpose.msra.mxu0 0
    %300 = vmatprep.subr.bf16.mxu0 0
    %301 = vmatpush2.bf16.xpose.msra.mxu0 0
    %302 = vmatprep.subr.bf16.mxu0 0
    %303 = vmatpush2.bf16.xpose.msra.mxu0 0
    %304 = vmatprep.subr.bf16.mxu0 0
    %305 = vmatpush2.bf16.xpose.msra.mxu0 0
    %306 = vmatprep.subr.bf16.mxu0 0
    %307 = vmatpush2.bf16.xpose.msra.mxu0 0
    %308 = vmatprep.mubr.bf16.mxu0 0
    %309 = vmatmul.mubr.bf16.gmra.mxu0 %v271
    %v310 = vpop.f32.mrf.mxu0
    %v311 = vadd.f32 0.0, %v310
    %v312 = vpop.f32.mrf.mxu0
    %v313 = vpop.f32.mrf.mxu0
    %v314 = vadd.f32 0.0, %v313
    %v315 = vpop.f32.mrf.mxu0
    %316 = vdwg.mxu0
    %v317 = vmul.f32 %v261, 0.25
    %v318 = vmul.f32 %v264, 0.25
    %v319 = vmul.f32 %v311, 0.25
    %v320 = vmul.f32 %v314, 0.25
    %v321 = vsel %vm219, %v317, -inf
    %322 = vmax.xlane.f32.xlu0 %v321
    %v323 = vpop.xlane.xlu0 %322
    %v324 = vsel %vm219, %v318, -inf
    %325 = vmax.xlane.f32.xlu0 %v324
    %v326 = vpop.xlane.xlu0 %325
    %v327 = vsel %vm219, %v319, -inf
    %328 = vmax.xlane.f32.xlu0 %v327
    %v329 = vpop.xlane.xlu0 %328
    %v330 = vsel %vm219, %v320, -inf
    %331 = vmax.xlane.f32.xlu0 %v330
    %v332 = vpop.xlane.xlu0 %331
    %v333 = vsub.f32 %v317, %v323
    %v334 = vsub.f32 %v318, %v326
    %v335 = vsub.f32 %v319, %v329
    %v336 = vsub.f32 %v320, %v332
    %v337 = vmul.f32 %v333, 1.442695
    %v338 = vpow.pop %v337
    %v339 = vmul.f32 %v334, 1.442695
    %v340 = vpow.pop %v339
    %v341 = vmul.f32 %v335, 1.442695
    %v342 = vpow.pop %v341
    %v343 = vmul.f32 %v336, 1.442695
    %v344 = vpow.pop %v343
    %v345 = vsel %vm219, %v338, 0.0
    %346 = vadd.xlane.f32.xlu0 %v345
    %v347 = vpop.xlane.xlu0 %346
    %v348 = vsel %vm219, %v340, 0.0
    %349 = vadd.xlane.f32.xlu0 %v348
    %v350 = vpop.xlane.xlu0 %349
    %v351 = vsel %vm219, %v342, 0.0
    %352 = vadd.xlane.f32.xlu0 %v351
    %v353 = vpop.xlane.xlu0 %352
    %v354 = vsel %vm219, %v344, 0.0
    %355 = vadd.xlane.f32.xlu0 %v354
    %v356 = vpop.xlane.xlu0 %355
    %v357 = vrcp.pop %v347
    %v358 = vmul.f32 %v338, %v357
    %v359 = vrcp.pop %v350
    %v360 = vmul.f32 %v340, %v359
    %v361 = vrcp.pop %v353
    %v362 = vmul.f32 %v342, %v361
    %v363 = vrcp.pop %v356
    %v364 = vmul.f32 %v344, %v363
    %v365 = vpack.c.bf16 %v360, %v358
    %v366 = vpack.c.bf16 %v364, %v362
    %v367 = vpack.c.bf16 %v202, %v198
    %v368 = vpack.c.bf16 %v212, %v208
    %v370 = vsel %vm219, %v365, 0
    %372 = vmatprep.subr.bf16.mxu0 0
    %373 = vmatpush1.bf16.msra.mxu0 0
    %374 = vmatprep.subr.bf16.mxu0 0
    %375 = vmatpush1.bf16.msra.mxu0 0
    %376 = vmatprep.subr.bf16.mxu0 0
    %377 = vmatpush1.bf16.msra.mxu0 0
    %378 = vmatprep.subr.bf16.mxu0 0
    %379 = vmatpush1.bf16.msra.mxu0 0
    %380 = vmatprep.subr.bf16.mxu0 0
    %381 = vmatpush1.bf16.msra.mxu0 0
    %382 = vmatprep.subr.bf16.mxu0 0
    %383 = vmatpush1.bf16.msra.mxu0 0
    %384 = vmatprep.subr.bf16.mxu0 0
    %385 = vmatpush1.bf16.msra.mxu0 0
    %386 = vmatprep.subr.bf16.mxu0 0
    %387 = vmatpush1.bf16.msra.mxu0 %v367
    %388 = vmatprep.subr.bf16.mxu0 0
    %389 = vmatpush2.bf16.msra.mxu0 0
    %390 = vmatprep.subr.bf16.mxu0 0
    %391 = vmatpush2.bf16.msra.mxu0 0
    %392 = vmatprep.subr.bf16.mxu0 0
    %393 = vmatpush2.bf16.msra.mxu0 0
    %394 = vmatprep.subr.bf16.mxu0 0
    %395 = vmatpush2.bf16.msra.mxu0 0
    %396 = vmatprep.subr.bf16.mxu0 0
    %397 = vmatpush2.bf16.msra.mxu0 0
    %398 = vmatprep.subr.bf16.mxu0 0
    %399 = vmatpush2.bf16.msra.mxu0 0
    %400 = vmatprep.subr.bf16.mxu0 0
    %401 = vmatpush2.bf16.msra.mxu0 0
    %402 = vmatprep.subr.bf16.mxu0 0
    %403 = vmatpush2.bf16.msra.mxu0 0
    %404 = vmatprep.mubr.bf16.mxu0 0
    %405 = vmatmul.mubr.bf16.gmra.mxu0 %v370
    %v406 = vpop.f32.mrf.mxu0
    %v407 = vadd.f32 0.0, %v406
    %v408 = vpop.f32.mrf.mxu0
    %v409 = vpop.f32.mrf.mxu0
    %v410 = vadd.f32 0.0, %v409
    %v411 = vpop.f32.mrf.mxu0
    %412 = vdwg.mxu0
    %v414 = vsel %vm219, %v366, 0
    %416 = vmatprep.subr.bf16.mxu0 0
    %417 = vmatpush1.bf16.msra.mxu0 0
    %418 = vmatprep.subr.bf16.mxu0 0
    %419 = vmatpush1.bf16.msra.mxu0 0
    %420 = vmatprep.subr.bf16.mxu0 0
    %421 = vmatpush1.bf16.msra.mxu0 0
    %422 = vmatprep.subr.bf16.mxu0 0
    %423 = vmatpush1.bf16.msra.mxu0 0
    %424 = vmatprep.subr.bf16.mxu0 0
    %425 = vmatpush1.bf16.msra.mxu0 0
    %426 = vmatprep.subr.bf16.mxu0 0
    %427 = vmatpush1.bf16.msra.mxu0 0
    %428 = vmatprep.subr.bf16.mxu0 0
    %429 = vmatpush1.bf16.msra.mxu0 0
    %430 = vmatprep.subr.bf16.mxu0 0
    %431 = vmatpush1.bf16.msra.mxu0 %v368
    %432 = vmatprep.subr.bf16.mxu0 0
    %433 = vmatpush2.bf16.msra.mxu0 0
    %434 = vmatprep.subr.bf16.mxu0 0
    %435 = vmatpush2.bf16.msra.mxu0 0
    %436 = vmatprep.subr.bf16.mxu0 0
    %437 = vmatpush2.bf16.msra.mxu0 0
    %438 = vmatprep.subr.bf16.mxu0 0
    %439 = vmatpush2.bf16.msra.mxu0 0
    %440 = vmatprep.subr.bf16.mxu0 0
    %441 = vmatpush2.bf16.msra.mxu0 0
    %442 = vmatprep.subr.bf16.mxu0 0
    %443 = vmatpush2.bf16.msra.mxu0 0
    %444 = vmatprep.subr.bf16.mxu0 0
    %445 = vmatpush2.bf16.msra.mxu0 0
    %446 = vmatprep.subr.bf16.mxu0 0
    %447 = vmatpush2.bf16.msra.mxu0 0
    %448 = vmatprep.mubr.bf16.mxu0 0
    %449 = vmatmul.mubr.bf16.gmra.mxu0 %v414
    %v450 = vpop.f32.mrf.mxu0
    %v451 = vadd.f32 0.0, %v450
    %v452 = vpop.f32.mrf.mxu0
    %v453 = vpop.f32.mrf.mxu0
    %v454 = vadd.f32 0.0, %v453
    %v455 = vpop.f32.mrf.mxu0
    %456 = vdwg.mxu0
    %457 = vrot.lane.b32.xlu0 %v214, 112
    %v458 = vpop.permute.xlu0 %457
    %459 = vrot.lane.b32.xlu0 %v214, 48
    %v460 = vpop.permute.xlu0 %459
    %v462 = vsel %vm219, %v458, 0
    %v465 = vsel %vm219, %v460, 0
    %467 = vmatprep.subr.bf16.mxu0 0
    %468 = vmatpush1.bf16.xpose.msra.mxu0 0
    %469 = vmatprep.subr.bf16.mxu0 0
    %470 = vmatpush1.bf16.xpose.msra.mxu0 0
    %471 = vmatprep.subr.bf16.mxu0 0
    %472 = vmatpush1.bf16.xpose.msra.mxu0 0
    %473 = vmatprep.subr.bf16.mxu0 0
    %474 = vmatpush1.bf16.xpose.msra.mxu0 0
    %475 = vmatprep.subr.bf16.mxu0 0
    %476 = vmatpush1.bf16.xpose.msra.mxu0 0
    %477 = vmatprep.subr.bf16.mxu0 0
    %478 = vmatpush1.bf16.xpose.msra.mxu0 0
    %479 = vmatprep.subr.bf16.mxu0 0
    %480 = vmatpush1.bf16.xpose.msra.mxu0 0
    %481 = vmatprep.subr.bf16.mxu0 0
    %482 = vmatpush1.bf16.xpose.msra.mxu0 %v465
    %483 = vmatprep.subr.bf16.mxu0 0
    %484 = vmatpush2.bf16.xpose.msra.mxu0 0
    %485 = vmatprep.subr.bf16.mxu0 0
    %486 = vmatpush2.bf16.xpose.msra.mxu0 0
    %487 = vmatprep.subr.bf16.mxu0 0
    %488 = vmatpush2.bf16.xpose.msra.mxu0 0
    %489 = vmatprep.subr.bf16.mxu0 0
    %490 = vmatpush2.bf16.xpose.msra.mxu0 0
    %491 = vmatprep.subr.bf16.mxu0 0
    %492 = vmatpush2.bf16.xpose.msra.mxu0 0
    %493 = vmatprep.subr.bf16.mxu0 0
    %494 = vmatpush2.bf16.xpose.msra.mxu0 0
    %495 = vmatprep.subr.bf16.mxu0 0
    %496 = vmatpush2.bf16.xpose.msra.mxu0 0
    %497 = vmatprep.subr.bf16.mxu0 0
    %498 = vmatpush2.bf16.xpose.msra.mxu0 0
    %499 = vmatprep.mubr.bf16.mxu0 0
    %500 = vmatmul.mubr.bf16.gmra.mxu0 %v462
    %v501 = vpop.f32.mrf.mxu0
    %v502 = vadd.f32 0.0, %v501
    %v503 = vpop.f32.mrf.mxu0
    %v504 = vpop.f32.mrf.mxu0
    %v505 = vadd.f32 0.0, %v504
    %v506 = vpop.f32.mrf.mxu0
    %507 = vdwg.mxu0
    %508 = vrot.lane.b32.xlu0 %v215, 112
    %v509 = vpop.permute.xlu0 %508
    %510 = vrot.lane.b32.xlu0 %v215, 48
    %v511 = vpop.permute.xlu0 %510
    %v513 = vsel %vm219, %v509, 0
    %v516 = vsel %vm219, %v511, 0
    %518 = vmatprep.subr.bf16.mxu0 0
    %519 = vmatpush1.bf16.xpose.msra.mxu0 0
    %520 = vmatprep.subr.bf16.mxu0 0
    %521 = vmatpush1.bf16.xpose.msra.mxu0 0
    %522 = vmatprep.subr.bf16.mxu0 0
    %523 = vmatpush1.bf16.xpose.msra.mxu0 0
    %524 = vmatprep.subr.bf16.mxu0 0
    %525 = vmatpush1.bf16.xpose.msra.mxu0 0
    %526 = vmatprep.subr.bf16.mxu0 0
    %527 = vmatpush1.bf16.xpose.msra.mxu0 0
    %528 = vmatprep.subr.bf16.mxu0 0
    %529 = vmatpush1.bf16.xpose.msra.mxu0 0
    %530 = vmatprep.subr.bf16.mxu0 0
    %531 = vmatpush1.bf16.xpose.msra.mxu0 0
    %532 = vmatprep.subr.bf16.mxu0 0
    %533 = vmatpush1.bf16.xpose.msra.mxu0 %v516
    %534 = vmatprep.subr.bf16.mxu0 0
    %535 = vmatpush2.bf16.xpose.msra.mxu0 0
    %536 = vmatprep.subr.bf16.mxu0 0
    %537 = vmatpush2.bf16.xpose.msra.mxu0 0
    %538 = vmatprep.subr.bf16.mxu0 0
    %539 = vmatpush2.bf16.xpose.msra.mxu0 0
    %540 = vmatprep.subr.bf16.mxu0 0
    %541 = vmatpush2.bf16.xpose.msra.mxu0 0
    %542 = vmatprep.subr.bf16.mxu0 0
    %543 = vmatpush2.bf16.xpose.msra.mxu0 0
    %544 = vmatprep.subr.bf16.mxu0 0
    %545 = vmatpush2.bf16.xpose.msra.mxu0 0
    %546 = vmatprep.subr.bf16.mxu0 0
    %547 = vmatpush2.bf16.xpose.msra.mxu0 0
    %548 = vmatprep.subr.bf16.mxu0 0
    %549 = vmatpush2.bf16.xpose.msra.mxu0 0
    %550 = vmatprep.mubr.bf16.mxu0 0
    %551 = vmatmul.mubr.bf16.gmra.mxu0 %v513
    %v552 = vpop.f32.mrf.mxu0
    %v553 = vadd.f32 0.0, %v552
    %v554 = vpop.f32.mrf.mxu0
    %v555 = vpop.f32.mrf.mxu0
    %v556 = vadd.f32 0.0, %v555
    %v557 = vpop.f32.mrf.mxu0
    %558 = vdwg.mxu0
    %v559 = vmul.f32 %v502, 0.25
    %v560 = vmul.f32 %v505, 0.25
    %v561 = vmul.f32 %v553, 0.25
    %v562 = vmul.f32 %v556, 0.25
    %v563 = vsel %vm219, %v559, -inf
    %564 = vmax.xlane.f32.xlu0 %v563
    %v565 = vpop.xlane.xlu0 %564
    %v566 = vsel %vm219, %v560, -inf
    %567 = vmax.xlane.f32.xlu0 %v566
    %v568 = vpop.xlane.xlu0 %567
    %v569 = vsel %vm219, %v561, -inf
    %570 = vmax.xlane.f32.xlu0 %v569
    %v571 = vpop.xlane.xlu0 %570
    %v572 = vsel %vm219, %v562, -inf
    %573 = vmax.xlane.f32.xlu0 %v572
    %v574 = vpop.xlane.xlu0 %573
    %v575 = vsub.f32 %v559, %v565
    %v576 = vsub.f32 %v560, %v568
    %v577 = vsub.f32 %v561, %v571
    %v578 = vsub.f32 %v562, %v574
    %v579 = vmul.f32 %v575, 1.442695
    %v580 = vpow.pop %v579
    %v581 = vmul.f32 %v576, 1.442695
    %v582 = vpow.pop %v581
    %v583 = vmul.f32 %v577, 1.442695
    %v584 = vpow.pop %v583
    %v585 = vmul.f32 %v578, 1.442695
    %v586 = vpow.pop %v585
    %v587 = vsel %vm219, %v580, 0.0
    %588 = vadd.xlane.f32.xlu0 %v587
    %v589 = vpop.xlane.xlu0 %588
    %v590 = vsel %vm219, %v582, 0.0
    %591 = vadd.xlane.f32.xlu0 %v590
    %v592 = vpop.xlane.xlu0 %591
    %v593 = vsel %vm219, %v584, 0.0
    %594 = vadd.xlane.f32.xlu0 %v593
    %v595 = vpop.xlane.xlu0 %594
    %v596 = vsel %vm219, %v586, 0.0
    %597 = vadd.xlane.f32.xlu0 %v596
    %v598 = vpop.xlane.xlu0 %597
    %v599 = vrcp.pop %v589
    %v600 = vmul.f32 %v580, %v599
    %v601 = vrcp.pop %v592
    %v602 = vmul.f32 %v582, %v601
    %v603 = vrcp.pop %v595
    %v604 = vmul.f32 %v584, %v603
    %v605 = vrcp.pop %v598
    %v606 = vmul.f32 %v586, %v605
    %v607 = vpack.c.bf16 %v602, %v600
    %v608 = vpack.c.bf16 %v606, %v604
    %610 = vrot.lane.b32.xlu0 %v367, 112
    %v611 = vpop.permute.xlu0 %610
    %v614 = vsel %vm219, %v607, 0
    %616 = vmatprep.subr.bf16.mxu0 0
    %617 = vmatpush1.bf16.msra.mxu0 0
    %618 = vmatprep.subr.bf16.mxu0 0
    %619 = vmatpush1.bf16.msra.mxu0 0
    %620 = vmatprep.subr.bf16.mxu0 0
    %621 = vmatpush1.bf16.msra.mxu0 0
    %622 = vmatprep.subr.bf16.mxu0 0
    %623 = vmatpush1.bf16.msra.mxu0 0
    %624 = vmatprep.subr.bf16.mxu0 0
    %625 = vmatpush1.bf16.msra.mxu0 0
    %626 = vmatprep.subr.bf16.mxu0 0
    %627 = vmatpush1.bf16.msra.mxu0 0
    %628 = vmatprep.subr.bf16.mxu0 0
    %629 = vmatpush1.bf16.msra.mxu0 0
    %630 = vmatprep.subr.bf16.mxu0 0
    %631 = vmatpush1.bf16.msra.mxu0 %v611
    %632 = vmatprep.subr.bf16.mxu0 0
    %633 = vmatpush2.bf16.msra.mxu0 0
    %634 = vmatprep.subr.bf16.mxu0 0
    %635 = vmatpush2.bf16.msra.mxu0 0
    %636 = vmatprep.subr.bf16.mxu0 0
    %637 = vmatpush2.bf16.msra.mxu0 0
    %638 = vmatprep.subr.bf16.mxu0 0
    %639 = vmatpush2.bf16.msra.mxu0 0
    %640 = vmatprep.subr.bf16.mxu0 0
    %641 = vmatpush2.bf16.msra.mxu0 0
    %642 = vmatprep.subr.bf16.mxu0 0
    %643 = vmatpush2.bf16.msra.mxu0 0
    %644 = vmatprep.subr.bf16.mxu0 0
    %645 = vmatpush2.bf16.msra.mxu0 0
    %646 = vmatprep.subr.bf16.mxu0 0
    %647 = vmatpush2.bf16.msra.mxu0 0
    %648 = vmatprep.mubr.bf16.mxu0 0
    %649 = vmatmul.mubr.bf16.gmra.mxu0 %v614
    %v650 = vpop.f32.mrf.mxu0
    %v651 = vadd.f32 0.0, %v650
    %v652 = vpop.f32.mrf.mxu0
    %v653 = vpop.f32.mrf.mxu0
    %v654 = vadd.f32 0.0, %v653
    %v655 = vpop.f32.mrf.mxu0
    %656 = vdwg.mxu0
    %658 = vrot.lane.b32.xlu0 %v368, 112
    %v659 = vpop.permute.xlu0 %658
    %v662 = vsel %vm219, %v608, 0
    %664 = vmatprep.subr.bf16.mxu0 0
    %665 = vmatpush1.bf16.msra.mxu0 0
    %666 = vmatprep.subr.bf16.mxu0 0
    %667 = vmatpush1.bf16.msra.mxu0 0
    %668 = vmatprep.subr.bf16.mxu0 0
    %669 = vmatpush1.bf16.msra.mxu0 0
    %670 = vmatprep.subr.bf16.mxu0 0
    %671 = vmatpush1.bf16.msra.mxu0 0
    %672 = vmatprep.subr.bf16.mxu0 0
    %673 = vmatpush1.bf16.msra.mxu0 0
    %674 = vmatprep.subr.bf16.mxu0 0
    %675 = vmatpush1.bf16.msra.mxu0 0
    %676 = vmatprep.subr.bf16.mxu0 0
    %677 = vmatpush1.bf16.msra.mxu0 0
    %678 = vmatprep.subr.bf16.mxu0 0
    %679 = vmatpush1.bf16.msra.mxu0 %v659
    %680 = vmatprep.subr.bf16.mxu0 0
    %681 = vmatpush2.bf16.msra.mxu0 0
    %682 = vmatprep.subr.bf16.mxu0 0
    %683 = vmatpush2.bf16.msra.mxu0 0
    %684 = vmatprep.subr.bf16.mxu0 0
    %685 = vmatpush2.bf16.msra.mxu0 0
    %686 = vmatprep.subr.bf16.mxu0 0
    %687 = vmatpush2.bf16.msra.mxu0 0
    %688 = vmatprep.subr.bf16.mxu0 0
    %689 = vmatpush2.bf16.msra.mxu0 0
    %690 = vmatprep.subr.bf16.mxu0 0
    %691 = vmatpush2.bf16.msra.mxu0 0
    %692 = vmatprep.subr.bf16.mxu0 0
    %693 = vmatpush2.bf16.msra.mxu0 0
    %694 = vmatprep.subr.bf16.mxu0 0
    %695 = vmatpush2.bf16.msra.mxu0 0
    %696 = vmatprep.mubr.bf16.mxu0 0
    %697 = vmatmul.mubr.bf16.gmra.mxu0 %v662
    %v698 = vpop.f32.mrf.mxu0
    %v699 = vadd.f32 0.0, %v698
    %v700 = vpop.f32.mrf.mxu0
    %v701 = vpop.f32.mrf.mxu0
    %v702 = vadd.f32 0.0, %v701
    %v703 = vpop.f32.mrf.mxu0
    %704 = vdwg.mxu0
    %705 = vrot.lane.b32.xlu0 %v214, 96
    %v706 = vpop.permute.xlu0 %705
    %707 = vrot.lane.b32.xlu0 %v214, 32
    %v708 = vpop.permute.xlu0 %707
    %v710 = vsel %vm219, %v706, 0
    %v713 = vsel %vm219, %v708, 0
    %715 = vmatprep.subr.bf16.mxu0 0
    %716 = vmatpush1.bf16.xpose.msra.mxu0 0
    %717 = vmatprep.subr.bf16.mxu0 0
    %718 = vmatpush1.bf16.xpose.msra.mxu0 0
    %719 = vmatprep.subr.bf16.mxu0 0
    %720 = vmatpush1.bf16.xpose.msra.mxu0 0
    %721 = vmatprep.subr.bf16.mxu0 0
    %722 = vmatpush1.bf16.xpose.msra.mxu0 0
    %723 = vmatprep.subr.bf16.mxu0 0
    %724 = vmatpush1.bf16.xpose.msra.mxu0 0
    %725 = vmatprep.subr.bf16.mxu0 0
    %726 = vmatpush1.bf16.xpose.msra.mxu0 0
    %727 = vmatprep.subr.bf16.mxu0 0
    %728 = vmatpush1.bf16.xpose.msra.mxu0 0
    %729 = vmatprep.subr.bf16.mxu0 0
    %730 = vmatpush1.bf16.xpose.msra.mxu0 %v713
    %731 = vmatprep.subr.bf16.mxu0 0
    %732 = vmatpush2.bf16.xpose.msra.mxu0 0
    %733 = vmatprep.subr.bf16.mxu0 0
    %734 = vmatpush2.bf16.xpose.msra.mxu0 0
    %735 = vmatprep.subr.bf16.mxu0 0
    %736 = vmatpush2.bf16.xpose.msra.mxu0 0
    %737 = vmatprep.subr.bf16.mxu0 0
    %738 = vmatpush2.bf16.xpose.msra.mxu0 0
    %739 = vmatprep.subr.bf16.mxu0 0
    %740 = vmatpush2.bf16.xpose.msra.mxu0 0
    %741 = vmatprep.subr.bf16.mxu0 0
    %742 = vmatpush2.bf16.xpose.msra.mxu0 0
    %743 = vmatprep.subr.bf16.mxu0 0
    %744 = vmatpush2.bf16.xpose.msra.mxu0 0
    %745 = vmatprep.subr.bf16.mxu0 0
    %746 = vmatpush2.bf16.xpose.msra.mxu0 0
    %747 = vmatprep.mubr.bf16.mxu0 0
    %748 = vmatmul.mubr.bf16.gmra.mxu0 %v710
    %v749 = vpop.f32.mrf.mxu0
    %v750 = vadd.f32 0.0, %v749
    %v751 = vpop.f32.mrf.mxu0
    %v752 = vpop.f32.mrf.mxu0
    %v753 = vadd.f32 0.0, %v752
    %v754 = vpop.f32.mrf.mxu0
    %755 = vdwg.mxu0
    %756 = vrot.lane.b32.xlu0 %v215, 96
    %v757 = vpop.permute.xlu0 %756
    %758 = vrot.lane.b32.xlu0 %v215, 32
    %v759 = vpop.permute.xlu0 %758
    %v761 = vsel %vm219, %v757, 0
    %v764 = vsel %vm219, %v759, 0
    %766 = vmatprep.subr.bf16.mxu0 0
    %767 = vmatpush1.bf16.xpose.msra.mxu0 0
    %768 = vmatprep.subr.bf16.mxu0 0
    %769 = vmatpush1.bf16.xpose.msra.mxu0 0
    %770 = vmatprep.subr.bf16.mxu0 0
    %771 = vmatpush1.bf16.xpose.msra.mxu0 0
    %772 = vmatprep.subr.bf16.mxu0 0
    %773 = vmatpush1.bf16.xpose.msra.mxu0 0
    %774 = vmatprep.subr.bf16.mxu0 0
    %775 = vmatpush1.bf16.xpose.msra.mxu0 0
    %776 = vmatprep.subr.bf16.mxu0 0
    %777 = vmatpush1.bf16.xpose.msra.mxu0 0
    %778 = vmatprep.subr.bf16.mxu0 0
    %779 = vmatpush1.bf16.xpose.msra.mxu0 0
    %780 = vmatprep.subr.bf16.mxu0 0
    %781 = vmatpush1.bf16.xpose.msra.mxu0 %v764
    %782 = vmatprep.subr.bf16.mxu0 0
    %783 = vmatpush2.bf16.xpose.msra.mxu0 0
    %784 = vmatprep.subr.bf16.mxu0 0
    %785 = vmatpush2.bf16.xpose.msra.mxu0 0
    %786 = vmatprep.subr.bf16.mxu0 0
    %787 = vmatpush2.bf16.xpose.msra.mxu0 0
    %788 = vmatprep.subr.bf16.mxu0 0
    %789 = vmatpush2.bf16.xpose.msra.mxu0 0
    %790 = vmatprep.subr.bf16.mxu0 0
    %791 = vmatpush2.bf16.xpose.msra.mxu0 0
    %792 = vmatprep.subr.bf16.mxu0 0
    %793 = vmatpush2.bf16.xpose.msra.mxu0 0
    %794 = vmatprep.subr.bf16.mxu0 0
    %795 = vmatpush2.bf16.xpose.msra.mxu0 0
    %796 = vmatprep.subr.bf16.mxu0 0
    %797 = vmatpush2.bf16.xpose.msra.mxu0 0
    %798 = vmatprep.mubr.bf16.mxu0 0
    %799 = vmatmul.mubr.bf16.gmra.mxu0 %v761
    %v800 = vpop.f32.mrf.mxu0
    %v801 = vadd.f32 0.0, %v800
    %v802 = vpop.f32.mrf.mxu0
    %v803 = vpop.f32.mrf.mxu0
    %v804 = vadd.f32 0.0, %v803
    %v805 = vpop.f32.mrf.mxu0
    %806 = vdwg.mxu0
    %v807 = vmul.f32 %v750, 0.25
    %v808 = vmul.f32 %v753, 0.25
    %v809 = vmul.f32 %v801, 0.25
    %v810 = vmul.f32 %v804, 0.25
    %v811 = vsel %vm219, %v807, -inf
    %812 = vmax.xlane.f32.xlu0 %v811
    %v813 = vpop.xlane.xlu0 %812
    %v814 = vsel %vm219, %v808, -inf
    %815 = vmax.xlane.f32.xlu0 %v814
    %v816 = vpop.xlane.xlu0 %815
    %v817 = vsel %vm219, %v809, -inf
    %818 = vmax.xlane.f32.xlu0 %v817
    %v819 = vpop.xlane.xlu0 %818
    %v820 = vsel %vm219, %v810, -inf
    %821 = vmax.xlane.f32.xlu0 %v820
    %v822 = vpop.xlane.xlu0 %821
    %v823 = vsub.f32 %v807, %v813
    %v824 = vsub.f32 %v808, %v816
    %v825 = vsub.f32 %v809, %v819
    %v826 = vsub.f32 %v810, %v822
    %v827 = vmul.f32 %v823, 1.442695
    %v828 = vpow.pop %v827
    %v829 = vmul.f32 %v824, 1.442695
    %v830 = vpow.pop %v829
    %v831 = vmul.f32 %v825, 1.442695
    %v832 = vpow.pop %v831
    %v833 = vmul.f32 %v826, 1.442695
    %v834 = vpow.pop %v833
    %v835 = vsel %vm219, %v828, 0.0
    %836 = vadd.xlane.f32.xlu0 %v835
    %v837 = vpop.xlane.xlu0 %836
    %v838 = vsel %vm219, %v830, 0.0
    %839 = vadd.xlane.f32.xlu0 %v838
    %v840 = vpop.xlane.xlu0 %839
    %v841 = vsel %vm219, %v832, 0.0
    %842 = vadd.xlane.f32.xlu0 %v841
    %v843 = vpop.xlane.xlu0 %842
    %v844 = vsel %vm219, %v834, 0.0
    %845 = vadd.xlane.f32.xlu0 %v844
    %v846 = vpop.xlane.xlu0 %845
    %v847 = vrcp.pop %v837
    %v848 = vmul.f32 %v828, %v847
    %v849 = vrcp.pop %v840
    %v850 = vmul.f32 %v830, %v849
    %v851 = vrcp.pop %v843
    %v852 = vmul.f32 %v832, %v851
    %v853 = vrcp.pop %v846
    %v854 = vmul.f32 %v834, %v853
    %v855 = vpack.c.bf16 %v850, %v848
    %v856 = vpack.c.bf16 %v854, %v852
    %857 = vrot.lane.b32.xlu0 %v367, 96
    %v858 = vpop.permute.xlu0 %857
    %v861 = vsel %vm219, %v855, 0
    %863 = vmatprep.subr.bf16.mxu0 0
    %864 = vmatpush1.bf16.msra.mxu0 0
    %865 = vmatprep.subr.bf16.mxu0 0
    %866 = vmatpush1.bf16.msra.mxu0 0
    %867 = vmatprep.subr.bf16.mxu0 0
    %868 = vmatpush1.bf16.msra.mxu0 0
    %869 = vmatprep.subr.bf16.mxu0 0
    %870 = vmatpush1.bf16.msra.mxu0 0
    %871 = vmatprep.subr.bf16.mxu0 0
    %872 = vmatpush1.bf16.msra.mxu0 0
    %873 = vmatprep.subr.bf16.mxu0 0
    %874 = vmatpush1.bf16.msra.mxu0 0
    %875 = vmatprep.subr.bf16.mxu0 0
    %876 = vmatpush1.bf16.msra.mxu0 0
    %877 = vmatprep.subr.bf16.mxu0 0
    %878 = vmatpush1.bf16.msra.mxu0 %v858
    %879 = vmatprep.subr.bf16.mxu0 0
    %880 = vmatpush2.bf16.msra.mxu0 0
    %881 = vmatprep.subr.bf16.mxu0 0
    %882 = vmatpush2.bf16.msra.mxu0 0
    %883 = vmatprep.subr.bf16.mxu0 0
    %884 = vmatpush2.bf16.msra.mxu0 0
    %885 = vmatprep.subr.bf16.mxu0 0
    %886 = vmatpush2.bf16.msra.mxu0 0
    %887 = vmatprep.subr.bf16.mxu0 0
    %888 = vmatpush2.bf16.msra.mxu0 0
    %889 = vmatprep.subr.bf16.mxu0 0
    %890 = vmatpush2.bf16.msra.mxu0 0
    %891 = vmatprep.subr.bf16.mxu0 0
    %892 = vmatpush2.bf16.msra.mxu0 0
    %893 = vmatprep.subr.bf16.mxu0 0
    %894 = vmatpush2.bf16.msra.mxu0 0
    %895 = vmatprep.mubr.bf16.mxu0 0
    %896 = vmatmul.mubr.bf16.gmra.mxu0 %v861
    %v897 = vpop.f32.mrf.mxu0
    %v898 = vadd.f32 0.0, %v897
    %v899 = vpop.f32.mrf.mxu0
    %v900 = vpop.f32.mrf.mxu0
    %v901 = vadd.f32 0.0, %v900
    %v902 = vpop.f32.mrf.mxu0
    %903 = vdwg.mxu0
    %904 = vrot.lane.b32.xlu0 %v368, 96
    %v905 = vpop.permute.xlu0 %904
    %v908 = vsel %vm219, %v856, 0
    %910 = vmatprep.subr.bf16.mxu0 0
    %911 = vmatpush1.bf16.msra.mxu0 0
    %912 = vmatprep.subr.bf16.mxu0 0
    %913 = vmatpush1.bf16.msra.mxu0 0
    %914 = vmatprep.subr.bf16.mxu0 0
    %915 = vmatpush1.bf16.msra.mxu0 0
    %916 = vmatprep.subr.bf16.mxu0 0
    %917 = vmatpush1.bf16.msra.mxu0 0
    %918 = vmatprep.subr.bf16.mxu0 0
    %919 = vmatpush1.bf16.msra.mxu0 0
    %920 = vmatprep.subr.bf16.mxu0 0
    %921 = vmatpush1.bf16.msra.mxu0 0
    %922 = vmatprep.subr.bf16.mxu0 0
    %923 = vmatpush1.bf16.msra.mxu0 0
    %924 = vmatprep.subr.bf16.mxu0 0
    %925 = vmatpush1.bf16.msra.mxu0 %v905
    %926 = vmatprep.subr.bf16.mxu0 0
    %927 = vmatpush2.bf16.msra.mxu0 0
    %928 = vmatprep.subr.bf16.mxu0 0
    %929 = vmatpush2.bf16.msra.mxu0 0
    %930 = vmatprep.subr.bf16.mxu0 0
    %931 = vmatpush2.bf16.msra.mxu0 0
    %932 = vmatprep.subr.bf16.mxu0 0
    %933 = vmatpush2.bf16.msra.mxu0 0
    %934 = vmatprep.subr.bf16.mxu0 0
    %935 = vmatpush2.bf16.msra.mxu0 0
    %936 = vmatprep.subr.bf16.mxu0 0
    %937 = vmatpush2.bf16.msra.mxu0 0
    %938 = vmatprep.subr.bf16.mxu0 0
    %939 = vmatpush2.bf16.msra.mxu0 0
    %940 = vmatprep.subr.bf16.mxu0 0
    %941 = vmatpush2.bf16.msra.mxu0 0
    %942 = vmatprep.mubr.bf16.mxu0 0
    %943 = vmatmul.mubr.bf16.gmra.mxu0 %v908
    %v944 = vpop.f32.mrf.mxu0
    %v945 = vadd.f32 0.0, %v944
    %v946 = vpop.f32.mrf.mxu0
    %v947 = vpop.f32.mrf.mxu0
    %v948 = vadd.f32 0.0, %v947
    %v949 = vpop.f32.mrf.mxu0
    %950 = vdwg.mxu0
    %951 = vrot.lane.b32.xlu0 %v214, 80
    %v952 = vpop.permute.xlu0 %951
    %953 = vrot.lane.b32.xlu0 %v214, 16
    %v954 = vpop.permute.xlu0 %953
    %v956 = vsel %vm219, %v952, 0
    %v959 = vsel %vm219, %v954, 0
    %961 = vmatprep.subr.bf16.mxu0 0
    %962 = vmatpush1.bf16.xpose.msra.mxu0 0
    %963 = vmatprep.subr.bf16.mxu0 0
    %964 = vmatpush1.bf16.xpose.msra.mxu0 0
    %965 = vmatprep.subr.bf16.mxu0 0
    %966 = vmatpush1.bf16.xpose.msra.mxu0 0
    %967 = vmatprep.subr.bf16.mxu0 0
    %968 = vmatpush1.bf16.xpose.msra.mxu0 0
    %969 = vmatprep.subr.bf16.mxu0 0
    %970 = vmatpush1.bf16.xpose.msra.mxu0 0
    %971 = vmatprep.subr.bf16.mxu0 0
    %972 = vmatpush1.bf16.xpose.msra.mxu0 0
    %973 = vmatprep.subr.bf16.mxu0 0
    %974 = vmatpush1.bf16.xpose.msra.mxu0 0
    %975 = vmatprep.subr.bf16.mxu0 0
    %976 = vmatpush1.bf16.xpose.msra.mxu0 %v959
    %977 = vmatprep.subr.bf16.mxu0 0
    %978 = vmatpush2.bf16.xpose.msra.mxu0 0
    %979 = vmatprep.subr.bf16.mxu0 0
    %980 = vmatpush2.bf16.xpose.msra.mxu0 0
    %981 = vmatprep.subr.bf16.mxu0 0
    %982 = vmatpush2.bf16.xpose.msra.mxu0 0
    %983 = vmatprep.subr.bf16.mxu0 0
    %984 = vmatpush2.bf16.xpose.msra.mxu0 0
    %985 = vmatprep.subr.bf16.mxu0 0
    %986 = vmatpush2.bf16.xpose.msra.mxu0 0
    %987 = vmatprep.subr.bf16.mxu0 0
    %988 = vmatpush2.bf16.xpose.msra.mxu0 0
    %989 = vmatprep.subr.bf16.mxu0 0
    %990 = vmatpush2.bf16.xpose.msra.mxu0 0
    %991 = vmatprep.subr.bf16.mxu0 0
    %992 = vmatpush2.bf16.xpose.msra.mxu0 0
    %993 = vmatprep.mubr.bf16.mxu0 0
    %994 = vmatmul.mubr.bf16.gmra.mxu0 %v956
    %v995 = vpop.f32.mrf.mxu0
    %v996 = vadd.f32 0.0, %v995
    %v997 = vpop.f32.mrf.mxu0
    %v998 = vpop.f32.mrf.mxu0
    %v999 = vadd.f32 0.0, %v998
    %v1000 = vpop.f32.mrf.mxu0
    %1001 = vdwg.mxu0
    %1002 = vrot.lane.b32.xlu0 %v215, 80
    %v1003 = vpop.permute.xlu0 %1002
    %1004 = vrot.lane.b32.xlu0 %v215, 16
    %v1005 = vpop.permute.xlu0 %1004
    %v1007 = vsel %vm219, %v1003, 0
    %v1010 = vsel %vm219, %v1005, 0
    %1012 = vmatprep.subr.bf16.mxu0 0
    %1013 = vmatpush1.bf16.xpose.msra.mxu0 0
    %1014 = vmatprep.subr.bf16.mxu0 0
    %1015 = vmatpush1.bf16.xpose.msra.mxu0 0
    %1016 = vmatprep.subr.bf16.mxu0 0
    %1017 = vmatpush1.bf16.xpose.msra.mxu0 0
    %1018 = vmatprep.subr.bf16.mxu0 0
    %1019 = vmatpush1.bf16.xpose.msra.mxu0 0
    %1020 = vmatprep.subr.bf16.mxu0 0
    %1021 = vmatpush1.bf16.xpose.msra.mxu0 0
    %1022 = vmatprep.subr.bf16.mxu0 0
    %1023 = vmatpush1.bf16.xpose.msra.mxu0 0
    %1024 = vmatprep.subr.bf16.mxu0 0
    %1025 = vmatpush1.bf16.xpose.msra.mxu0 0
    %1026 = vmatprep.subr.bf16.mxu0 0
    %1027 = vmatpush1.bf16.xpose.msra.mxu0 %v1010
    %1028 = vmatprep.subr.bf16.mxu0 0
    %1029 = vmatpush2.bf16.xpose.msra.mxu0 0
    %1030 = vmatprep.subr.bf16.mxu0 0
    %1031 = vmatpush2.bf16.xpose.msra.mxu0 0
    %1032 = vmatprep.subr.bf16.mxu0 0
    %1033 = vmatpush2.bf16.xpose.msra.mxu0 0
    %1034 = vmatprep.subr.bf16.mxu0 0
    %1035 = vmatpush2.bf16.xpose.msra.mxu0 0
    %1036 = vmatprep.subr.bf16.mxu0 0
    %1037 = vmatpush2.bf16.xpose.msra.mxu0 0
    %1038 = vmatprep.subr.bf16.mxu0 0
    %1039 = vmatpush2.bf16.xpose.msra.mxu0 0
    %1040 = vmatprep.subr.bf16.mxu0 0
    %1041 = vmatpush2.bf16.xpose.msra.mxu0 0
    %1042 = vmatprep.subr.bf16.mxu0 0
    %1043 = vmatpush2.bf16.xpose.msra.mxu0 0
    %1044 = vmatprep.mubr.bf16.mxu0 0
    %1045 = vmatmul.mubr.bf16.gmra.mxu0 %v1007
    %v1046 = vpop.f32.mrf.mxu0
    %v1047 = vadd.f32 0.0, %v1046
    %v1048 = vpop.f32.mrf.mxu0
    %v1049 = vpop.f32.mrf.mxu0
    %v1050 = vadd.f32 0.0, %v1049
    %v1051 = vpop.f32.mrf.mxu0
    %1052 = vdwg.mxu0
    %v1053 = vmul.f32 %v996, 0.25
    %v1054 = vmul.f32 %v999, 0.25
    %v1055 = vmul.f32 %v1047, 0.25
    %v1056 = vmul.f32 %v1050, 0.25
    %v1057 = vsel %vm219, %v1053, -inf
    %1058 = vmax.xlane.f32.xlu0 %v1057
    %v1059 = vpop.xlane.xlu0 %1058
    %v1060 = vsel %vm219, %v1054, -inf
    %1061 = vmax.xlane.f32.xlu0 %v1060
    %v1062 = vpop.xlane.xlu0 %1061
    %v1063 = vsel %vm219, %v1055, -inf
    %1064 = vmax.xlane.f32.xlu0 %v1063
    %v1065 = vpop.xlane.xlu0 %1064
    %v1066 = vsel %vm219, %v1056, -inf
    %1067 = vmax.xlane.f32.xlu0 %v1066
    %v1068 = vpop.xlane.xlu0 %1067
    %v1069 = vsub.f32 %v1053, %v1059
    %v1070 = vsub.f32 %v1054, %v1062
    %v1071 = vsub.f32 %v1055, %v1065
    %v1072 = vsub.f32 %v1056, %v1068
    %v1073 = vmul.f32 %v1069, 1.442695
    %v1074 = vpow.pop %v1073
    %v1075 = vmul.f32 %v1070, 1.442695
    %v1076 = vpow.pop %v1075
    %v1077 = vmul.f32 %v1071, 1.442695
    %v1078 = vpow.pop %v1077
    %v1079 = vmul.f32 %v1072, 1.442695
    %v1080 = vpow.pop %v1079
    %v1081 = vsel %vm219, %v1074, 0.0
    %1082 = vadd.xlane.f32.xlu0 %v1081
    %v1083 = vpop.xlane.xlu0 %1082
    %v1084 = vsel %vm219, %v1076, 0.0
    %1085 = vadd.xlane.f32.xlu0 %v1084
    %v1086 = vpop.xlane.xlu0 %1085
    %v1087 = vsel %vm219, %v1078, 0.0
    %1088 = vadd.xlane.f32.xlu0 %v1087
    %v1089 = vpop.xlane.xlu0 %1088
    %v1090 = vsel %vm219, %v1080, 0.0
    %1091 = vadd.xlane.f32.xlu0 %v1090
    %v1092 = vpop.xlane.xlu0 %1091
    %v1093 = vrcp.pop %v1083
    %v1094 = vmul.f32 %v1074, %v1093
    %v1095 = vrcp.pop %v1086
    %v1096 = vmul.f32 %v1076, %v1095
    %v1097 = vrcp.pop %v1089
    %v1098 = vmul.f32 %v1078, %v1097
    %v1099 = vrcp.pop %v1092
    %v1100 = vmul.f32 %v1080, %v1099
    %v1101 = vpack.c.bf16 %v1096, %v1094
    %v1102 = vpack.c.bf16 %v1100, %v1098
    %1103 = vrot.lane.b32.xlu0 %v367, 80
    %v1104 = vpop.permute.xlu0 %1103
    %v1107 = vsel %vm219, %v1101, 0
    %1109 = vmatprep.subr.bf16.mxu0 0
    %1110 = vmatpush1.bf16.msra.mxu0 0
    %1111 = vmatprep.subr.bf16.mxu0 0
    %1112 = vmatpush1.bf16.msra.mxu0 0
    %1113 = vmatprep.subr.bf16.mxu0 0
    %1114 = vmatpush1.bf16.msra.mxu0 0
    %1115 = vmatprep.subr.bf16.mxu0 0
    %1116 = vmatpush1.bf16.msra.mxu0 0
    %1117 = vmatprep.subr.bf16.mxu0 0
    %1118 = vmatpush1.bf16.msra.mxu0 0
    %1119 = vmatprep.subr.bf16.mxu0 0
    %1120 = vmatpush1.bf16.msra.mxu0 0
    %1121 = vmatprep.subr.bf16.mxu0 0
    %1122 = vmatpush1.bf16.msra.mxu0 0
    %1123 = vmatprep.subr.bf16.mxu0 0
    %1124 = vmatpush1.bf16.msra.mxu0 %v1104
    %1125 = vmatprep.subr.bf16.mxu0 0
    %1126 = vmatpush2.bf16.msra.mxu0 0
    %1127 = vmatprep.subr.bf16.mxu0 0
    %1128 = vmatpush2.bf16.msra.mxu0 0
    %1129 = vmatprep.subr.bf16.mxu0 0
    %1130 = vmatpush2.bf16.msra.mxu0 0
    %1131 = vmatprep.subr.bf16.mxu0 0
    %1132 = vmatpush2.bf16.msra.mxu0 0
    %1133 = vmatprep.subr.bf16.mxu0 0
    %1134 = vmatpush2.bf16.msra.mxu0 0
    %1135 = vmatprep.subr.bf16.mxu0 0
    %1136 = vmatpush2.bf16.msra.mxu0 0
    %1137 = vmatprep.subr.bf16.mxu0 0
    %1138 = vmatpush2.bf16.msra.mxu0 0
    %1139 = vmatprep.subr.bf16.mxu0 0
    %1140 = vmatpush2.bf16.msra.mxu0 0
    %1141 = vmatprep.mubr.bf16.mxu0 0
    %1142 = vmatmul.mubr.bf16.gmra.mxu0 %v1107
    %v1143 = vpop.f32.mrf.mxu0
    %v1144 = vadd.f32 0.0, %v1143
    %v1145 = vpop.f32.mrf.mxu0
    %v1146 = vpop.f32.mrf.mxu0
    %v1147 = vadd.f32 0.0, %v1146
    %v1148 = vpop.f32.mrf.mxu0
    %1149 = vdwg.mxu0
    %1150 = vrot.lane.b32.xlu0 %v368, 80
    %v1151 = vpop.permute.xlu0 %1150
    %v1154 = vsel %vm219, %v1102, 0
    %1156 = vmatprep.subr.bf16.mxu0 0
    %1157 = vmatpush1.bf16.msra.mxu0 0
    %1158 = vmatprep.subr.bf16.mxu0 0
    %1159 = vmatpush1.bf16.msra.mxu0 0
    %1160 = vmatprep.subr.bf16.mxu0 0
    %1161 = vmatpush1.bf16.msra.mxu0 0
    %1162 = vmatprep.subr.bf16.mxu0 0
    %1163 = vmatpush1.bf16.msra.mxu0 0
    %1164 = vmatprep.subr.bf16.mxu0 0
    %1165 = vmatpush1.bf16.msra.mxu0 0
    %1166 = vmatprep.subr.bf16.mxu0 0
    %1167 = vmatpush1.bf16.msra.mxu0 0
    %1168 = vmatprep.subr.bf16.mxu0 0
    %1169 = vmatpush1.bf16.msra.mxu0 0
    %1170 = vmatprep.subr.bf16.mxu0 0
    %1171 = vmatpush1.bf16.msra.mxu0 %v1151
    %1172 = vmatprep.subr.bf16.mxu0 0
    %1173 = vmatpush2.bf16.msra.mxu0 0
    %1174 = vmatprep.subr.bf16.mxu0 0
    %1175 = vmatpush2.bf16.msra.mxu0 0
    %1176 = vmatprep.subr.bf16.mxu0 0
    %1177 = vmatpush2.bf16.msra.mxu0 0
    %1178 = vmatprep.subr.bf16.mxu0 0
    %1179 = vmatpush2.bf16.msra.mxu0 0
    %1180 = vmatprep.subr.bf16.mxu0 0
    %1181 = vmatpush2.bf16.msra.mxu0 0
    %1182 = vmatprep.subr.bf16.mxu0 0
    %1183 = vmatpush2.bf16.msra.mxu0 0
    %1184 = vmatprep.subr.bf16.mxu0 0
    %1185 = vmatpush2.bf16.msra.mxu0 0
    %1186 = vmatprep.subr.bf16.mxu0 0
    %1187 = vmatpush2.bf16.msra.mxu0 0
    %1188 = vmatprep.mubr.bf16.mxu0 0
    %1189 = vmatmul.mubr.bf16.gmra.mxu0 %v1154
    %v1190 = vpop.f32.mrf.mxu0
    %v1191 = vadd.f32 0.0, %v1190
    %v1192 = vpop.f32.mrf.mxu0
    %v1193 = vpop.f32.mrf.mxu0
    %v1194 = vadd.f32 0.0, %v1193
    %v1195 = vpop.f32.mrf.mxu0
    %1196 = vdwg.mxu0
    %1201 = vrot.lane.b32.xlu0 %v651, 16
    %v1202 = vpop.permute.xlu0 %1201
    %1203 = vrot.lane.b32.xlu0 %v654, 16
    %v1204 = vpop.permute.xlu0 %1203
    %1205 = vrot.lane.b32.xlu0 %v699, 16
    %v1206 = vpop.permute.xlu0 %1205
    %1207 = vrot.lane.b32.xlu0 %v702, 16
    %v1208 = vpop.permute.xlu0 %1207
    %1217 = vrot.lane.b32.xlu0 %v898, 32
    %v1218 = vpop.permute.xlu0 %1217
    %1219 = vrot.lane.b32.xlu0 %v901, 32
    %v1220 = vpop.permute.xlu0 %1219
    %1221 = vrot.lane.b32.xlu0 %v945, 32
    %v1222 = vpop.permute.xlu0 %1221
    %1223 = vrot.lane.b32.xlu0 %v948, 32
    %v1224 = vpop.permute.xlu0 %1223
    %1233 = vrot.lane.b32.xlu0 %v1144, 48
    %v1234 = vpop.permute.xlu0 %1233
    %1235 = vrot.lane.b32.xlu0 %v1147, 48
    %v1236 = vpop.permute.xlu0 %1235
    %1237 = vrot.lane.b32.xlu0 %v1191, 48
    %v1238 = vpop.permute.xlu0 %1237
    %1239 = vrot.lane.b32.xlu0 %v1194, 48
    %v1240 = vpop.permute.xlu0 %1239
    %v1245 = vsel %vm219, %v407, %v1202
    %v1246 = vsel %vm219, %v410, %v1204
    %v1247 = vsel %vm219, %v451, %v1206
    %v1248 = vsel %vm219, %v454, %v1208
    %v1249 = vsel %vm55, %v1245, %v1218
    %v1250 = vsel %vm55, %v1246, %v1220
    %v1251 = vsel %vm55, %v1247, %v1222
    %v1252 = vsel %vm55, %v1248, %v1224
    %vm1253 = vcmask 392192
    %v1254 = vsel %vm1253, %v1249, %v1234
    %v1255 = vsel %vm1253, %v1250, %v1236
    %v1256 = vsel %vm1253, %v1251, %v1238
    %v1257 = vsel %vm1253, %v1252, %v1240
    %v1258 = vpack.c.bf16 %v1255, %v1254
    %v1259 = vpack.c.bf16 %v1257, %v1256
    %v1260 = vld [vmem:[%s4] sm:$0xf]
    %v1261 = vld [vmem:[%s4 + $0x4] sm:$0xf]
    %v1262 = vld [vmem:[%s4 + $0x8] sm:$0xf]
    %v1263 = vld [vmem:[%s4 + $0xc] sm:$0xf]
    %v1264 = vld [vmem:[%s4 + $0x10] sm:$0xf]
    %v1265 = vld [vmem:[%s4 + $0x14] sm:$0xf]
    %v1266 = vld [vmem:[%s4 + $0x18] sm:$0xf]
    %v1267 = vld [vmem:[%s4 + $0x1c] sm:$0xf]
    %v1268 = vld [vmem:[%s5] sm:$0x1]
    %v1270 = vlaneseq
    %v1271 = vshrl.u32 %v1270, 7
    %v1272 = vsub.s32 0, %v1271
    %v1273 = vrot.slane %v1268, %v1272
    %v1283 = vunpack.c.l.b16 %v1260
    %v1284 = vunpack.c.l.b16 %v1261
    %v1285 = vunpack.c.l.b16 %v1262
    %v1286 = vunpack.c.l.b16 %v1263
    %v1287 = vunpack.c.l.b16 %v1264
    %v1288 = vunpack.c.l.b16 %v1265
    %v1289 = vunpack.c.l.b16 %v1266
    %v1290 = vunpack.c.l.b16 %v1267
    %v1291 = vpack.c.b16 %v1284, %v1283
    %v1292 = vpack.c.b16 %v1286, %v1285
    %v1293 = vpack.c.b16 %v1288, %v1287
    %v1294 = vpack.c.b16 %v1290, %v1289
    %vm1299 = vcmask 523264
    %v1301 = vsel %vm1299, %v1258, 0
    %v1304 = vsel %vm1299, %v1259, 0
    %1306 = vmatprep.subr.bf16.mxu0 0
    %1307 = vmatpush1.bf16.msra.mxu0 0
    %1308 = vmatprep.subr.bf16.mxu0 0
    %1309 = vmatpush1.bf16.msra.mxu0 0
    %1310 = vmatprep.subr.bf16.mxu0 0
    %1311 = vmatpush1.bf16.msra.mxu0 0
    %1312 = vmatprep.subr.bf16.mxu0 0
    %1313 = vmatpush1.bf16.msra.mxu0 0
    %1314 = vmatprep.subr.bf16.mxu0 0
    %1315 = vmatpush1.bf16.msra.mxu0 %v1294
    %1316 = vmatprep.subr.bf16.mxu0 0
    %1317 = vmatpush1.bf16.msra.mxu0 %v1293
    %1318 = vmatprep.subr.bf16.mxu0 0
    %1319 = vmatpush1.bf16.msra.mxu0 %v1292
    %1320 = vmatprep.subr.bf16.mxu0 0
    %1321 = vmatpush1.bf16.msra.mxu0 %v1291
    %1322 = vmatprep.subr.bf16.mxu0 0
    %1323 = vmatpush2.bf16.msra.mxu0 0
    %1324 = vmatprep.subr.bf16.mxu0 0
    %1325 = vmatpush2.bf16.msra.mxu0 0
    %1326 = vmatprep.subr.bf16.mxu0 0
    %1327 = vmatpush2.bf16.msra.mxu0 0
    %1328 = vmatprep.subr.bf16.mxu0 0
    %1329 = vmatpush2.bf16.msra.mxu0 0
    %1330 = vmatprep.subr.bf16.mxu0 0
    %1331 = vmatpush2.bf16.msra.mxu0 0
    %1332 = vmatprep.subr.bf16.mxu0 0
    %1333 = vmatpush2.bf16.msra.mxu0 0
    %1334 = vmatprep.subr.bf16.mxu0 0
    %1335 = vmatpush2.bf16.msra.mxu0 0
    %1336 = vmatprep.subr.bf16.mxu0 0
    %1337 = vmatpush2.bf16.msra.mxu0 0
    %1338 = vmatprep.mubr.bf16.mxu0 0
    %1339 = vmatmul.mubr.bf16.gmra.mxu0 %v1301
    %v1340 = vpop.f32.mrf.mxu0
    %v1341 = vadd.f32 %v1273, %v1340
    %v1342 = vpop.f32.mrf.mxu0
    %v1343 = vpop.f32.mrf.mxu0
    %v1344 = vadd.f32 %v1273, %v1343
    %v1345 = vpop.f32.mrf.mxu0
    %1346 = vmatprep.mubr.bf16.mxu0 0
    %1347 = vmatmul.mubr.bf16.gmra.mxu0 %v1304
    %v1348 = vpop.f32.mrf.mxu0
    %v1349 = vadd.f32 %v1273, %v1348
    %v1350 = vpop.f32.mrf.mxu0
    %v1351 = vpop.f32.mrf.mxu0
    %v1352 = vadd.f32 %v1273, %v1351
    %v1353 = vpop.f32.mrf.mxu0
    %1354 = vdwg.mxu0
    %v1355 = vadd.f32 %v49, %v1341
    %v1356 = vadd.f32 %v50, %v1344
    %v1357 = vadd.f32 %v51, %v1349
    %v1358 = vadd.f32 %v52, %v1352
    %v1359 = vld [vmem:[%s6] sm:$0x1]
    %v1360 = vld [vmem:[%s7] sm:$0x1]
    %v1361 = vsel %vm55, %v1355, 0.0
    %1362 = vadd.xlane.f32.xlu0 %v1361
    %v1363 = vpop.xlane.xlu0 %1362
    %v1364 = vsel %vm55, %v1356, 0.0
    %1365 = vadd.xlane.f32.xlu0 %v1364
    %v1366 = vpop.xlane.xlu0 %1365
    %v1367 = vsel %vm55, %v1357, 0.0
    %1368 = vadd.xlane.f32.xlu0 %v1367
    %v1369 = vpop.xlane.xlu0 %1368
    %v1370 = vsel %vm55, %v1358, 0.0
    %1371 = vadd.xlane.f32.xlu0 %v1370
    %v1372 = vpop.xlane.xlu0 %1371
    %v1373 = vmul.f32 %v1363, %v68
    %v1374 = vmul.f32 %v1366, %v68
    %v1375 = vmul.f32 %v1369, %v68
    %v1376 = vmul.f32 %v1372, %v68
    %v1377 = vsub.f32 %v1355, %v1373
    %v1378 = vsub.f32 %v1356, %v1374
    %v1379 = vsub.f32 %v1357, %v1375
    %v1380 = vsub.f32 %v1358, %v1376
    %v1381 = vmul.f32 %v1377, %v1377
    %v1382 = vmul.f32 %v1378, %v1378
    %v1383 = vmul.f32 %v1379, %v1379
    %v1384 = vmul.f32 %v1380, %v1380
    %v1385 = vsel %vm55, %v1381, 0.0
    %1386 = vadd.xlane.f32.xlu0 %v1385
    %v1387 = vpop.xlane.xlu0 %1386
    %v1388 = vsel %vm55, %v1382, 0.0
    %1389 = vadd.xlane.f32.xlu0 %v1388
    %v1390 = vpop.xlane.xlu0 %1389
    %v1391 = vsel %vm55, %v1383, 0.0
    %1392 = vadd.xlane.f32.xlu0 %v1391
    %v1393 = vpop.xlane.xlu0 %1392
    %v1394 = vsel %vm55, %v1384, 0.0
    %1395 = vadd.xlane.f32.xlu0 %v1394
    %v1396 = vpop.xlane.xlu0 %1395
    %v1397 = vmul.f32 %v1387, %v68
    %v1398 = vmul.f32 %v1390, %v68
    %v1399 = vmul.f32 %v1393, %v68
    %v1400 = vmul.f32 %v1396, %v68
    %v1401 = vadd.f32 %v1397, 1e-05
    %v1402 = vadd.f32 %v1398, 1e-05
    %v1403 = vadd.f32 %v1399, 1e-05
    %v1404 = vadd.f32 %v1400, 1e-05
    %v1405 = vrsqrt.pop %v1401
    %v1406 = vrsqrt.pop %v1402
    %v1407 = vrsqrt.pop %v1403
    %v1408 = vrsqrt.pop %v1404
    %v1409 = vmul.f32 %v1377, %v1405
    %v1410 = vmul.f32 %v1378, %v1406
    %v1411 = vmul.f32 %v1379, %v1407
    %v1412 = vmul.f32 %v1380, %v1408
    %v1414 = vlaneseq
    %v1415 = vshrl.u32 %v1414, 7
    %v1416 = vsub.s32 0, %v1415
    %v1417 = vrot.slane %v1359, %v1416
    %v1419 = vmul.f32 %v1409, %v1417
    %v1420 = vmul.f32 %v1410, %v1417
    %v1421 = vmul.f32 %v1411, %v1417
    %v1422 = vmul.f32 %v1412, %v1417
    %v1424 = vlaneseq
    %v1425 = vshrl.u32 %v1424, 7
    %v1426 = vsub.s32 0, %v1425
    %v1427 = vrot.slane %v1360, %v1426
    %v1429 = vadd.f32 %v1419, %v1427
    %v1430 = vadd.f32 %v1420, %v1427
    %v1431 = vadd.f32 %v1421, %v1427
    %v1432 = vadd.f32 %v1422, %v1427
    %v1433 = vpack.c.bf16 %v1430, %v1429
    %v1434 = vpack.c.bf16 %v1432, %v1431
    %v1435 = vld [vmem:[%s8] sm:$0xf]
    %v1436 = vld [vmem:[%s8 + $0x4] sm:$0xf]
    %v1437 = vld [vmem:[%s8 + $0x8] sm:$0xf]
    %v1438 = vld [vmem:[%s8 + $0xc] sm:$0xf]
    %v1439 = vld [vmem:[%s9] sm:$0x1]
    %v1441 = vlaneseq
    %v1442 = vshrl.u32 %v1441, 7
    %v1443 = vsub.s32 0, %v1442
    %v1444 = vrot.slane %v1439, %v1443
    %v1450 = vunpack.c.l.b16 %v1435
    %v1451 = vunpack.c.l.b16 %v1436
    %v1452 = vunpack.c.l.b16 %v1437
    %v1453 = vunpack.c.l.b16 %v1438
    %v1454 = vpack.c.b16 %v1451, %v1450
    %v1455 = vpack.c.b16 %v1453, %v1452
    %v1459 = vsel %vm55, %v1433, 0
    %v1462 = vsel %vm55, %v1434, 0
    %1464 = vmatprep.subr.bf16.mxu0 0
    %1465 = vmatpush1.bf16.msra.mxu0 0
    %1466 = vmatprep.subr.bf16.mxu0 0
    %1467 = vmatpush1.bf16.msra.mxu0 0
    %1468 = vmatprep.subr.bf16.mxu0 0
    %1469 = vmatpush1.bf16.msra.mxu0 0
    %1470 = vmatprep.subr.bf16.mxu0 0
    %1471 = vmatpush1.bf16.msra.mxu0 0
    %1472 = vmatprep.subr.bf16.mxu0 0
    %1473 = vmatpush1.bf16.msra.mxu0 0
    %1474 = vmatprep.subr.bf16.mxu0 0
    %1475 = vmatpush1.bf16.msra.mxu0 0
    %1476 = vmatprep.subr.bf16.mxu0 0
    %1477 = vmatpush1.bf16.msra.mxu0 %v1455
    %1478 = vmatprep.subr.bf16.mxu0 0
    %1479 = vmatpush1.bf16.msra.mxu0 %v1454
    %1480 = vmatprep.subr.bf16.mxu0 0
    %1481 = vmatpush2.bf16.msra.mxu0 0
    %1482 = vmatprep.subr.bf16.mxu0 0
    %1483 = vmatpush2.bf16.msra.mxu0 0
    %1484 = vmatprep.subr.bf16.mxu0 0
    %1485 = vmatpush2.bf16.msra.mxu0 0
    %1486 = vmatprep.subr.bf16.mxu0 0
    %1487 = vmatpush2.bf16.msra.mxu0 0
    %1488 = vmatprep.subr.bf16.mxu0 0
    %1489 = vmatpush2.bf16.msra.mxu0 0
    %1490 = vmatprep.subr.bf16.mxu0 0
    %1491 = vmatpush2.bf16.msra.mxu0 0
    %1492 = vmatprep.subr.bf16.mxu0 0
    %1493 = vmatpush2.bf16.msra.mxu0 0
    %1494 = vmatprep.subr.bf16.mxu0 0
    %1495 = vmatpush2.bf16.msra.mxu0 0
    %1496 = vmatprep.mubr.bf16.mxu0 0
    %1497 = vmatmul.mubr.bf16.gmra.mxu0 %v1459
    %v1498 = vpop.f32.mrf.mxu0
    %v1499 = vadd.f32 %v1444, %v1498
    %v1500 = vpop.f32.mrf.mxu0
    %v1501 = vpop.f32.mrf.mxu0
    %v1502 = vadd.f32 %v1444, %v1501
    %v1503 = vpop.f32.mrf.mxu0
    %1504 = vmatprep.mubr.bf16.mxu0 0
    %1505 = vmatmul.mubr.bf16.gmra.mxu0 %v1462
    %v1506 = vpop.f32.mrf.mxu0
    %v1507 = vadd.f32 %v1444, %v1506
    %v1508 = vpop.f32.mrf.mxu0
    %v1509 = vpop.f32.mrf.mxu0
    %v1510 = vadd.f32 %v1444, %v1509
    %v1511 = vpop.f32.mrf.mxu0
    %1512 = vdwg.mxu0
    %v1513 = vtanh.pop %v1499
    %v1514 = vtanh.pop %v1502
    %v1515 = vtanh.pop %v1507
    %v1516 = vtanh.pop %v1510
    %v1517 = vpack.c.bf16 %v1514, %v1513
    %v1518 = vpack.c.bf16 %v1516, %v1515
    %v1519 = vld [vmem:[%s10] sm:$0xf]
    %v1520 = vld [vmem:[%s10 + $0x4] sm:$0xf]
    %v1521 = vld [vmem:[%s10 + $0x8] sm:$0xf]
    %v1522 = vld [vmem:[%s10 + $0xc] sm:$0xf]
    %v1523 = vld [vmem:[%s10 + $0x10] sm:$0xf]
    %v1524 = vld [vmem:[%s10 + $0x14] sm:$0xf]
    %v1525 = vld [vmem:[%s10 + $0x18] sm:$0xf]
    %v1526 = vld [vmem:[%s10 + $0x1c] sm:$0xf]
    %v1527 = vld [vmem:[%s10 + $0x20] sm:$0xf]
    %v1528 = vld [vmem:[%s10 + $0x24] sm:$0xf]
    %v1529 = vld [vmem:[%s10 + $0x28] sm:$0xf]
    %v1530 = vld [vmem:[%s10 + $0x2c] sm:$0xf]
    %v1531 = vld [vmem:[%s10 + $0x30] sm:$0xf]
    %v1532 = vld [vmem:[%s10 + $0x34] sm:$0xf]
    %v1533 = vld [vmem:[%s10 + $0x38] sm:$0xf]
    %v1534 = vld [vmem:[%s10 + $0x3c] sm:$0xf]
    %v1535 = vld [vmem:[%s11] sm:$0x1]
    %v1537 = vlaneseq
    %v1538 = vshrl.u32 %v1537, 7
    %v1539 = vsub.s32 0, %v1538
    %v1540 = vrot.slane %v1535, %v1539
    %v1558 = vunpack.c.l.b16 %v1519
    %v1559 = vunpack.c.l.b16 %v1520
    %v1560 = vunpack.c.l.b16 %v1521
    %v1561 = vunpack.c.l.b16 %v1522
    %v1562 = vunpack.c.l.b16 %v1523
    %v1563 = vunpack.c.l.b16 %v1524
    %v1564 = vunpack.c.l.b16 %v1525
    %v1565 = vunpack.c.l.b16 %v1526
    %v1566 = vunpack.c.l.b16 %v1527
    %v1567 = vunpack.c.l.b16 %v1528
    %v1568 = vunpack.c.l.b16 %v1529
    %v1569 = vunpack.c.l.b16 %v1530
    %v1570 = vunpack.c.l.b16 %v1531
    %v1571 = vunpack.c.l.b16 %v1532
    %v1572 = vunpack.c.l.b16 %v1533
    %v1573 = vunpack.c.l.b16 %v1534
    %v1574 = vpack.c.b16 %v1559, %v1558
    %v1575 = vpack.c.b16 %v1561, %v1560
    %v1576 = vpack.c.b16 %v1563, %v1562
    %v1577 = vpack.c.b16 %v1565, %v1564
    %v1578 = vpack.c.b16 %v1567, %v1566
    %v1579 = vpack.c.b16 %v1569, %v1568
    %v1580 = vpack.c.b16 %v1571, %v1570
    %v1581 = vpack.c.b16 %v1573, %v1572
    %1590 = vmatprep.subr.bf16.mxu0 0
    %1591 = vmatpush1.bf16.msra.mxu0 %v1581
    %1592 = vmatprep.subr.bf16.mxu0 0
    %1593 = vmatpush1.bf16.msra.mxu0 %v1580
    %1594 = vmatprep.subr.bf16.mxu0 0
    %1595 = vmatpush1.bf16.msra.mxu0 %v1579
    %1596 = vmatprep.subr.bf16.mxu0 0
    %1597 = vmatpush1.bf16.msra.mxu0 %v1578
    %1598 = vmatprep.subr.bf16.mxu0 0
    %1599 = vmatpush1.bf16.msra.mxu0 %v1577
    %1600 = vmatprep.subr.bf16.mxu0 0
    %1601 = vmatpush1.bf16.msra.mxu0 %v1576
    %1602 = vmatprep.subr.bf16.mxu0 0
    %1603 = vmatpush1.bf16.msra.mxu0 %v1575
    %1604 = vmatprep.subr.bf16.mxu0 0
    %1605 = vmatpush1.bf16.msra.mxu0 %v1574
    %1606 = vmatprep.subr.bf16.mxu0 0
    %1607 = vmatpush2.bf16.msra.mxu0 0
    %1608 = vmatprep.subr.bf16.mxu0 0
    %1609 = vmatpush2.bf16.msra.mxu0 0
    %1610 = vmatprep.subr.bf16.mxu0 0
    %1611 = vmatpush2.bf16.msra.mxu0 0
    %1612 = vmatprep.subr.bf16.mxu0 0
    %1613 = vmatpush2.bf16.msra.mxu0 0
    %1614 = vmatprep.subr.bf16.mxu0 0
    %1615 = vmatpush2.bf16.msra.mxu0 0
    %1616 = vmatprep.subr.bf16.mxu0 0
    %1617 = vmatpush2.bf16.msra.mxu0 0
    %1618 = vmatprep.subr.bf16.mxu0 0
    %1619 = vmatpush2.bf16.msra.mxu0 0
    %1620 = vmatprep.subr.bf16.mxu0 0
    %1621 = vmatpush2.bf16.msra.mxu0 0
    %1622 = vmatprep.mubr.bf16.mxu0 0
    %1623 = vmatmul.mubr.bf16.gmra.mxu0 %v1517
    %v1624 = vpop.f32.mrf.mxu0
    %v1625 = vadd.f32 %v1540, %v1624
    %v1626 = vpop.f32.mrf.mxu0
    %v1627 = vpop.f32.mrf.mxu0
    %v1628 = vadd.f32 %v1540, %v1627
    %v1629 = vpop.f32.mrf.mxu0
    %1630 = vmatprep.mubr.bf16.mxu0 0
    %1631 = vmatmul.mubr.bf16.gmra.mxu0 %v1518
    %v1632 = vpop.f32.mrf.mxu0
    %v1633 = vadd.f32 %v1540, %v1632
    %v1634 = vpop.f32.mrf.mxu0
    %v1635 = vpop.f32.mrf.mxu0
    %v1636 = vadd.f32 %v1540, %v1635
    %v1637 = vpop.f32.mrf.mxu0
    %1638 = vdwg.mxu0
    %v1639 = vadd.f32 %v1355, %v1625
    %v1640 = vadd.f32 %v1356, %v1628
    %v1641 = vadd.f32 %v1357, %v1633
    %v1642 = vadd.f32 %v1358, %v1636
    %s1643 = scalar_lea.vmem %s1, 1
    %v1644 = vld [vmem:[%s1643] sm:$0x1]
    %s1645 = scalar_lea.vmem %s2, 1
    %v1646 = vld [vmem:[%s1645] sm:$0x1]
    %v1647 = vsel %vm55, %v1639, 0.0
    %1648 = vadd.xlane.f32.xlu0 %v1647
    %v1649 = vpop.xlane.xlu0 %1648
    %v1650 = vsel %vm55, %v1640, 0.0
    %1651 = vadd.xlane.f32.xlu0 %v1650
    %v1652 = vpop.xlane.xlu0 %1651
    %v1653 = vsel %vm55, %v1641, 0.0
    %1654 = vadd.xlane.f32.xlu0 %v1653
    %v1655 = vpop.xlane.xlu0 %1654
    %v1656 = vsel %vm55, %v1642, 0.0
    %1657 = vadd.xlane.f32.xlu0 %v1656
    %v1658 = vpop.xlane.xlu0 %1657
    %v1659 = vmul.f32 %v1649, %v68
    %v1660 = vmul.f32 %v1652, %v68
    %v1661 = vmul.f32 %v1655, %v68
    %v1662 = vmul.f32 %v1658, %v68
    %v1663 = vsub.f32 %v1639, %v1659
    %v1664 = vsub.f32 %v1640, %v1660
    %v1665 = vsub.f32 %v1641, %v1661
    %v1666 = vsub.f32 %v1642, %v1662
    %v1667 = vmul.f32 %v1663, %v1663
    %v1668 = vmul.f32 %v1664, %v1664
    %v1669 = vmul.f32 %v1665, %v1665
    %v1670 = vmul.f32 %v1666, %v1666
    %v1671 = vsel %vm55, %v1667, 0.0
    %1672 = vadd.xlane.f32.xlu0 %v1671
    %v1673 = vpop.xlane.xlu0 %1672
    %v1674 = vsel %vm55, %v1668, 0.0
    %1675 = vadd.xlane.f32.xlu0 %v1674
    %v1676 = vpop.xlane.xlu0 %1675
    %v1677 = vsel %vm55, %v1669, 0.0
    %1678 = vadd.xlane.f32.xlu0 %v1677
    %v1679 = vpop.xlane.xlu0 %1678
    %v1680 = vsel %vm55, %v1670, 0.0
    %1681 = vadd.xlane.f32.xlu0 %v1680
    %v1682 = vpop.xlane.xlu0 %1681
    %v1683 = vmul.f32 %v1673, %v68
    %v1684 = vmul.f32 %v1676, %v68
    %v1685 = vmul.f32 %v1679, %v68
    %v1686 = vmul.f32 %v1682, %v68
    %v1687 = vadd.f32 %v1683, 1e-05
    %v1688 = vadd.f32 %v1684, 1e-05
    %v1689 = vadd.f32 %v1685, 1e-05
    %v1690 = vadd.f32 %v1686, 1e-05
    %v1691 = vrsqrt.pop %v1687
    %v1692 = vrsqrt.pop %v1688
    %v1693 = vrsqrt.pop %v1689
    %v1694 = vrsqrt.pop %v1690
    %v1695 = vmul.f32 %v1663, %v1691
    %v1696 = vmul.f32 %v1664, %v1692
    %v1697 = vmul.f32 %v1665, %v1693
    %v1698 = vmul.f32 %v1666, %v1694
    %v1700 = vlaneseq
    %v1701 = vshrl.u32 %v1700, 7
    %v1702 = vsub.s32 0, %v1701
    %v1703 = vrot.slane %v1644, %v1702
    %v1705 = vmul.f32 %v1695, %v1703
    %v1706 = vmul.f32 %v1696, %v1703
    %v1707 = vmul.f32 %v1697, %v1703
    %v1708 = vmul.f32 %v1698, %v1703
    %v1710 = vlaneseq
    %v1711 = vshrl.u32 %v1710, 7
    %v1712 = vsub.s32 0, %v1711
    %v1713 = vrot.slane %v1646, %v1712
    %v1715 = vadd.f32 %v1705, %v1713
    %v1716 = vadd.f32 %v1706, %v1713
    %v1717 = vadd.f32 %v1707, %v1713
    %v1718 = vadd.f32 %v1708, %v1713
    %v1719 = vpack.c.bf16 %v1716, %v1715
    %v1720 = vpack.c.bf16 %v1718, %v1717
    %s1721 = scalar_lea.vmem %s3, 32
    %v1722 = vld [vmem:[%s1721] sm:$0xff]
    %v1723 = vld [vmem:[%s1721 + $0x8] sm:$0xff]
    %v1724 = vld [vmem:[%s1721 + $0x10] sm:$0xff]
    %v1725 = vld [vmem:[%s1721 + $0x18] sm:$0xff]
    %v1730 = vunpack.c.l.b16 %v1722
    %v1731 = vunpack.c.h.b16 %v1722
    %v1732 = vunpack.c.l.b16 %v1723
    %v1733 = vunpack.c.h.b16 %v1723
    %v1734 = vunpack.c.l.b16 %v1724
    %v1735 = vunpack.c.h.b16 %v1724
    %v1736 = vunpack.c.l.b16 %v1725
    %v1737 = vunpack.c.h.b16 %v1725
    %v1738 = vpack.c.b16 %v1732, %v1730
    %v1739 = vpack.c.b16 %v1733, %v1731
    %v1740 = vpack.c.b16 %v1736, %v1734
    %v1741 = vpack.c.b16 %v1737, %v1735
    %v1747 = vsel %vm55, %v1719, 0
    %v1750 = vsel %vm55, %v1720, 0
    %1752 = vmatprep.subr.bf16.mxu0 0
    %1753 = vmatpush1.bf16.msra.mxu0 0
    %1754 = vmatprep.subr.bf16.mxu0 0
    %1755 = vmatpush1.bf16.msra.mxu0 0
    %1756 = vmatprep.subr.bf16.mxu0 0
    %1757 = vmatpush1.bf16.msra.mxu0 0
    %1758 = vmatprep.subr.bf16.mxu0 0
    %1759 = vmatpush1.bf16.msra.mxu0 0
    %1760 = vmatprep.subr.bf16.mxu0 0
    %1761 = vmatpush1.bf16.msra.mxu0 0
    %1762 = vmatprep.subr.bf16.mxu0 0
    %1763 = vmatpush1.bf16.msra.mxu0 0
    %1764 = vmatprep.subr.bf16.mxu0 %v1741
    %1765 = vmatpush1.bf16.msra.mxu0 %v1740
    %1766 = vmatprep.subr.bf16.mxu0 %v1739
    %1767 = vmatpush1.bf16.msra.mxu0 %v1738
    %1768 = vmatprep.subr.bf16.mxu0 0
    %1769 = vmatpush2.bf16.msra.mxu0 0
    %1770 = vmatprep.subr.bf16.mxu0 0
    %1771 = vmatpush2.bf16.msra.mxu0 0
    %1772 = vmatprep.subr.bf16.mxu0 0
    %1773 = vmatpush2.bf16.msra.mxu0 0
    %1774 = vmatprep.subr.bf16.mxu0 0
    %1775 = vmatpush2.bf16.msra.mxu0 0
    %1776 = vmatprep.subr.bf16.mxu0 0
    %1777 = vmatpush2.bf16.msra.mxu0 0
    %1778 = vmatprep.subr.bf16.mxu0 0
    %1779 = vmatpush2.bf16.msra.mxu0 0
    %1780 = vmatprep.subr.bf16.mxu0 0
    %1781 = vmatpush2.bf16.msra.mxu0 0
    %1782 = vmatprep.subr.bf16.mxu0 0
    %1783 = vmatpush2.bf16.msra.mxu0 0
    %1784 = vmatprep.mubr.bf16.mxu0 0
    %1785 = vmatmul.mubr.bf16.gmra.mxu0 %v1747
    %v1786 = vpop.f32.mrf.mxu0
    %v1787 = vadd.f32 0.0, %v1786
    %v1788 = vpop.f32.mrf.mxu0
    %v1789 = vadd.f32 0.0, %v1788
    %v1790 = vpop.f32.mrf.mxu0
    %v1791 = vadd.f32 0.0, %v1790
    %v1792 = vpop.f32.mrf.mxu0
    %v1793 = vadd.f32 0.0, %v1792
    %1794 = vmatprep.mubr.bf16.mxu0 0
    %1795 = vmatmul.mubr.bf16.gmra.mxu0 %v1750
    %v1796 = vpop.f32.mrf.mxu0
    %v1797 = vadd.f32 0.0, %v1796
    %v1798 = vpop.f32.mrf.mxu0
    %v1799 = vadd.f32 0.0, %v1798
    %v1800 = vpop.f32.mrf.mxu0
    %v1801 = vadd.f32 0.0, %v1800
    %v1802 = vpop.f32.mrf.mxu0
    %v1803 = vadd.f32 0.0, %v1802
    %1804 = vdwg.mxu0
    %v1805 = vpack.c.bf16 %v1791, %v1787
    %v1806 = vpack.c.bf16 %v1801, %v1797
    %1808 = vrot.lane.b32.xlu0 %v1805, 64
    %v1809 = vpop.permute.xlu0 %1808
    %v1811 = vsel %vm219, %v1805, 0
    %v1814 = vsel %vm219, %v1809, 0
    %1816 = vmatprep.subr.bf16.mxu0 0
    %1817 = vmatpush1.bf16.xpose.msra.mxu0 0
    %1818 = vmatprep.subr.bf16.mxu0 0
    %1819 = vmatpush1.bf16.xpose.msra.mxu0 0
    %1820 = vmatprep.subr.bf16.mxu0 0
    %1821 = vmatpush1.bf16.xpose.msra.mxu0 0
    %1822 = vmatprep.subr.bf16.mxu0 0
    %1823 = vmatpush1.bf16.xpose.msra.mxu0 0
    %1824 = vmatprep.subr.bf16.mxu0 0
    %1825 = vmatpush1.bf16.xpose.msra.mxu0 0
    %1826 = vmatprep.subr.bf16.mxu0 0
    %1827 = vmatpush1.bf16.xpose.msra.mxu0 0
    %1828 = vmatprep.subr.bf16.mxu0 0
    %1829 = vmatpush1.bf16.xpose.msra.mxu0 0
    %1830 = vmatprep.subr.bf16.mxu0 0
    %1831 = vmatpush1.bf16.xpose.msra.mxu0 %v1814
    %1832 = vmatprep.subr.bf16.mxu0 0
    %1833 = vmatpush2.bf16.xpose.msra.mxu0 0
    %1834 = vmatprep.subr.bf16.mxu0 0
    %1835 = vmatpush2.bf16.xpose.msra.mxu0 0
    %1836 = vmatprep.subr.bf16.mxu0 0
    %1837 = vmatpush2.bf16.xpose.msra.mxu0 0
    %1838 = vmatprep.subr.bf16.mxu0 0
    %1839 = vmatpush2.bf16.xpose.msra.mxu0 0
    %1840 = vmatprep.subr.bf16.mxu0 0
    %1841 = vmatpush2.bf16.xpose.msra.mxu0 0
    %1842 = vmatprep.subr.bf16.mxu0 0
    %1843 = vmatpush2.bf16.xpose.msra.mxu0 0
    %1844 = vmatprep.subr.bf16.mxu0 0
    %1845 = vmatpush2.bf16.xpose.msra.mxu0 0
    %1846 = vmatprep.subr.bf16.mxu0 0
    %1847 = vmatpush2.bf16.xpose.msra.mxu0 0
    %1848 = vmatprep.mubr.bf16.mxu0 0
    %1849 = vmatmul.mubr.bf16.gmra.mxu0 %v1811
    %v1850 = vpop.f32.mrf.mxu0
    %v1851 = vadd.f32 0.0, %v1850
    %v1852 = vpop.f32.mrf.mxu0
    %v1853 = vpop.f32.mrf.mxu0
    %v1854 = vadd.f32 0.0, %v1853
    %v1855 = vpop.f32.mrf.mxu0
    %1856 = vdwg.mxu0
    %1858 = vrot.lane.b32.xlu0 %v1806, 64
    %v1859 = vpop.permute.xlu0 %1858
    %v1861 = vsel %vm219, %v1806, 0
    %v1864 = vsel %vm219, %v1859, 0
    %1866 = vmatprep.subr.bf16.mxu0 0
    %1867 = vmatpush1.bf16.xpose.msra.mxu0 0
    %1868 = vmatprep.subr.bf16.mxu0 0
    %1869 = vmatpush1.bf16.xpose.msra.mxu0 0
    %1870 = vmatprep.subr.bf16.mxu0 0
    %1871 = vmatpush1.bf16.xpose.msra.mxu0 0
    %1872 = vmatprep.subr.bf16.mxu0 0
    %1873 = vmatpush1.bf16.xpose.msra.mxu0 0
    %1874 = vmatprep.subr.bf16.mxu0 0
    %1875 = vmatpush1.bf16.xpose.msra.mxu0 0
    %1876 = vmatprep.subr.bf16.mxu0 0
    %1877 = vmatpush1.bf16.xpose.msra.mxu0 0
    %1878 = vmatprep.subr.bf16.mxu0 0
    %1879 = vmatpush1.bf16.xpose.msra.mxu0 0
    %1880 = vmatprep.subr.bf16.mxu0 0
    %1881 = vmatpush1.bf16.xpose.msra.mxu0 %v1864
    %1882 = vmatprep.subr.bf16.mxu0 0
    %1883 = vmatpush2.bf16.xpose.msra.mxu0 0
    %1884 = vmatprep.subr.bf16.mxu0 0
    %1885 = vmatpush2.bf16.xpose.msra.mxu0 0
    %1886 = vmatprep.subr.bf16.mxu0 0
    %1887 = vmatpush2.bf16.xpose.msra.mxu0 0
    %1888 = vmatprep.subr.bf16.mxu0 0
    %1889 = vmatpush2.bf16.xpose.msra.mxu0 0
    %1890 = vmatprep.subr.bf16.mxu0 0
    %1891 = vmatpush2.bf16.xpose.msra.mxu0 0
    %1892 = vmatprep.subr.bf16.mxu0 0
    %1893 = vmatpush2.bf16.xpose.msra.mxu0 0
    %1894 = vmatprep.subr.bf16.mxu0 0
    %1895 = vmatpush2.bf16.xpose.msra.mxu0 0
    %1896 = vmatprep.subr.bf16.mxu0 0
    %1897 = vmatpush2.bf16.xpose.msra.mxu0 0
    %1898 = vmatprep.mubr.bf16.mxu0 0
    %1899 = vmatmul.mubr.bf16.gmra.mxu0 %v1861
    %v1900 = vpop.f32.mrf.mxu0
    %v1901 = vadd.f32 0.0, %v1900
    %v1902 = vpop.f32.mrf.mxu0
    %v1903 = vpop.f32.mrf.mxu0
    %v1904 = vadd.f32 0.0, %v1903
    %v1905 = vpop.f32.mrf.mxu0
    %1906 = vdwg.mxu0
    %v1907 = vmul.f32 %v1851, 0.25
    %v1908 = vmul.f32 %v1854, 0.25
    %v1909 = vmul.f32 %v1901, 0.25
    %v1910 = vmul.f32 %v1904, 0.25
    %v1911 = vsel %vm219, %v1907, -inf
    %1912 = vmax.xlane.f32.xlu0 %v1911
    %v1913 = vpop.xlane.xlu0 %1912
    %v1914 = vsel %vm219, %v1908, -inf
    %1915 = vmax.xlane.f32.xlu0 %v1914
    %v1916 = vpop.xlane.xlu0 %1915
    %v1917 = vsel %vm219, %v1909, -inf
    %1918 = vmax.xlane.f32.xlu0 %v1917
    %v1919 = vpop.xlane.xlu0 %1918
    %v1920 = vsel %vm219, %v1910, -inf
    %1921 = vmax.xlane.f32.xlu0 %v1920
    %v1922 = vpop.xlane.xlu0 %1921
    %v1923 = vsub.f32 %v1907, %v1913
    %v1924 = vsub.f32 %v1908, %v1916
    %v1925 = vsub.f32 %v1909, %v1919
    %v1926 = vsub.f32 %v1910, %v1922
    %v1927 = vmul.f32 %v1923, 1.442695
    %v1928 = vpow.pop %v1927
    %v1929 = vmul.f32 %v1924, 1.442695
    %v1930 = vpow.pop %v1929
    %v1931 = vmul.f32 %v1925, 1.442695
    %v1932 = vpow.pop %v1931
    %v1933 = vmul.f32 %v1926, 1.442695
    %v1934 = vpow.pop %v1933
    %v1935 = vsel %vm219, %v1928, 0.0
    %1936 = vadd.xlane.f32.xlu0 %v1935
    %v1937 = vpop.xlane.xlu0 %1936
    %v1938 = vsel %vm219, %v1930, 0.0
    %1939 = vadd.xlane.f32.xlu0 %v1938
    %v1940 = vpop.xlane.xlu0 %1939
    %v1941 = vsel %vm219, %v1932, 0.0
    %1942 = vadd.xlane.f32.xlu0 %v1941
    %v1943 = vpop.xlane.xlu0 %1942
    %v1944 = vsel %vm219, %v1934, 0.0
    %1945 = vadd.xlane.f32.xlu0 %v1944
    %v1946 = vpop.xlane.xlu0 %1945
    %v1947 = vrcp.pop %v1937
    %v1948 = vmul.f32 %v1928, %v1947
    %v1949 = vrcp.pop %v1940
    %v1950 = vmul.f32 %v1930, %v1949
    %v1951 = vrcp.pop %v1943
    %v1952 = vmul.f32 %v1932, %v1951
    %v1953 = vrcp.pop %v1946
    %v1954 = vmul.f32 %v1934, %v1953
    %v1955 = vpack.c.bf16 %v1950, %v1948
    %v1956 = vpack.c.bf16 %v1954, %v1952
    %v1957 = vpack.c.bf16 %v1793, %v1789
    %v1958 = vpack.c.bf16 %v1803, %v1799
    %v1960 = vsel %vm219, %v1955, 0
    %1962 = vmatprep.subr.bf16.mxu0 0
    %1963 = vmatpush1.bf16.msra.mxu0 0
    %1964 = vmatprep.subr.bf16.mxu0 0
    %1965 = vmatpush1.bf16.msra.mxu0 0
    %1966 = vmatprep.subr.bf16.mxu0 0
    %1967 = vmatpush1.bf16.msra.mxu0 0
    %1968 = vmatprep.subr.bf16.mxu0 0
    %1969 = vmatpush1.bf16.msra.mxu0 0
    %1970 = vmatprep.subr.bf16.mxu0 0
    %1971 = vmatpush1.bf16.msra.mxu0 0
    %1972 = vmatprep.subr.bf16.mxu0 0
    %1973 = vmatpush1.bf16.msra.mxu0 0
    %1974 = vmatprep.subr.bf16.mxu0 0
    %1975 = vmatpush1.bf16.msra.mxu0 0
    %1976 = vmatprep.subr.bf16.mxu0 0
    %1977 = vmatpush1.bf16.msra.mxu0 %v1957
    %1978 = vmatprep.subr.bf16.mxu0 0
    %1979 = vmatpush2.bf16.msra.mxu0 0
    %1980 = vmatprep.subr.bf16.mxu0 0
    %1981 = vmatpush2.bf16.msra.mxu0 0
    %1982 = vmatprep.subr.bf16.mxu0 0
    %1983 = vmatpush2.bf16.msra.mxu0 0
    %1984 = vmatprep.subr.bf16.mxu0 0
    %1985 = vmatpush2.bf16.msra.mxu0 0
    %1986 = vmatprep.subr.bf16.mxu0 0
    %1987 = vmatpush2.bf16.msra.mxu0 0
    %1988 = vmatprep.subr.bf16.mxu0 0
    %1989 = vmatpush2.bf16.msra.mxu0 0
    %1990 = vmatprep.subr.bf16.mxu0 0
    %1991 = vmatpush2.bf16.msra.mxu0 0
    %1992 = vmatprep.subr.bf16.mxu0 0
    %1993 = vmatpush2.bf16.msra.mxu0 0
    %1994 = vmatprep.mubr.bf16.mxu0 0
    %1995 = vmatmul.mubr.bf16.gmra.mxu0 %v1960
    %v1996 = vpop.f32.mrf.mxu0
    %v1997 = vadd.f32 0.0, %v1996
    %v1998 = vpop.f32.mrf.mxu0
    %v1999 = vpop.f32.mrf.mxu0
    %v2000 = vadd.f32 0.0, %v1999
    %v2001 = vpop.f32.mrf.mxu0
    %2002 = vdwg.mxu0
    %v2004 = vsel %vm219, %v1956, 0
    %2006 = vmatprep.subr.bf16.mxu0 0
    %2007 = vmatpush1.bf16.msra.mxu0 0
    %2008 = vmatprep.subr.bf16.mxu0 0
    %2009 = vmatpush1.bf16.msra.mxu0 0
    %2010 = vmatprep.subr.bf16.mxu0 0
    %2011 = vmatpush1.bf16.msra.mxu0 0
    %2012 = vmatprep.subr.bf16.mxu0 0
    %2013 = vmatpush1.bf16.msra.mxu0 0
    %2014 = vmatprep.subr.bf16.mxu0 0
    %2015 = vmatpush1.bf16.msra.mxu0 0
    %2016 = vmatprep.subr.bf16.mxu0 0
    %2017 = vmatpush1.bf16.msra.mxu0 0
    %2018 = vmatprep.subr.bf16.mxu0 0
    %2019 = vmatpush1.bf16.msra.mxu0 0
    %2020 = vmatprep.subr.bf16.mxu0 0
    %2021 = vmatpush1.bf16.msra.mxu0 %v1958
    %2022 = vmatprep.subr.bf16.mxu0 0
    %2023 = vmatpush2.bf16.msra.mxu0 0
    %2024 = vmatprep.subr.bf16.mxu0 0
    %2025 = vmatpush2.bf16.msra.mxu0 0
    %2026 = vmatprep.subr.bf16.mxu0 0
    %2027 = vmatpush2.bf16.msra.mxu0 0
    %2028 = vmatprep.subr.bf16.mxu0 0
    %2029 = vmatpush2.bf16.msra.mxu0 0
    %2030 = vmatprep.subr.bf16.mxu0 0
    %2031 = vmatpush2.bf16.msra.mxu0 0
    %2032 = vmatprep.subr.bf16.mxu0 0
    %2033 = vmatpush2.bf16.msra.mxu0 0
    %2034 = vmatprep.subr.bf16.mxu0 0
    %2035 = vmatpush2.bf16.msra.mxu0 0
    %2036 = vmatprep.subr.bf16.mxu0 0
    %2037 = vmatpush2.bf16.msra.mxu0 0
    %2038 = vmatprep.mubr.bf16.mxu0 0
    %2039 = vmatmul.mubr.bf16.gmra.mxu0 %v2004
    %v2040 = vpop.f32.mrf.mxu0
    %v2041 = vadd.f32 0.0, %v2040
    %v2042 = vpop.f32.mrf.mxu0
    %v2043 = vpop.f32.mrf.mxu0
    %v2044 = vadd.f32 0.0, %v2043
    %v2045 = vpop.f32.mrf.mxu0
    %2046 = vdwg.mxu0
    %2047 = vrot.lane.b32.xlu0 %v1805, 112
    %v2048 = vpop.permute.xlu0 %2047
    %2049 = vrot.lane.b32.xlu0 %v1805, 48
    %v2050 = vpop.permute.xlu0 %2049
    %v2052 = vsel %vm219, %v2048, 0
    %v2055 = vsel %vm219, %v2050, 0
    %2057 = vmatprep.subr.bf16.mxu0 0
    %2058 = vmatpush1.bf16.xpose.msra.mxu0 0
    %2059 = vmatprep.subr.bf16.mxu0 0
    %2060 = vmatpush1.bf16.xpose.msra.mxu0 0
    %2061 = vmatprep.subr.bf16.mxu0 0
    %2062 = vmatpush1.bf16.xpose.msra.mxu0 0
    %2063 = vmatprep.subr.bf16.mxu0 0
    %2064 = vmatpush1.bf16.xpose.msra.mxu0 0
    %2065 = vmatprep.subr.bf16.mxu0 0
    %2066 = vmatpush1.bf16.xpose.msra.mxu0 0
    %2067 = vmatprep.subr.bf16.mxu0 0
    %2068 = vmatpush1.bf16.xpose.msra.mxu0 0
    %2069 = vmatprep.subr.bf16.mxu0 0
    %2070 = vmatpush1.bf16.xpose.msra.mxu0 0
    %2071 = vmatprep.subr.bf16.mxu0 0
    %2072 = vmatpush1.bf16.xpose.msra.mxu0 %v2055
    %2073 = vmatprep.subr.bf16.mxu0 0
    %2074 = vmatpush2.bf16.xpose.msra.mxu0 0
    %2075 = vmatprep.subr.bf16.mxu0 0
    %2076 = vmatpush2.bf16.xpose.msra.mxu0 0
    %2077 = vmatprep.subr.bf16.mxu0 0
    %2078 = vmatpush2.bf16.xpose.msra.mxu0 0
    %2079 = vmatprep.subr.bf16.mxu0 0
    %2080 = vmatpush2.bf16.xpose.msra.mxu0 0
    %2081 = vmatprep.subr.bf16.mxu0 0
    %2082 = vmatpush2.bf16.xpose.msra.mxu0 0
    %2083 = vmatprep.subr.bf16.mxu0 0
    %2084 = vmatpush2.bf16.xpose.msra.mxu0 0
    %2085 = vmatprep.subr.bf16.mxu0 0
    %2086 = vmatpush2.bf16.xpose.msra.mxu0 0
    %2087 = vmatprep.subr.bf16.mxu0 0
    %2088 = vmatpush2.bf16.xpose.msra.mxu0 0
    %2089 = vmatprep.mubr.bf16.mxu0 0
    %2090 = vmatmul.mubr.bf16.gmra.mxu0 %v2052
    %v2091 = vpop.f32.mrf.mxu0
    %v2092 = vadd.f32 0.0, %v2091
    %v2093 = vpop.f32.mrf.mxu0
    %v2094 = vpop.f32.mrf.mxu0
    %v2095 = vadd.f32 0.0, %v2094
    %v2096 = vpop.f32.mrf.mxu0
    %2097 = vdwg.mxu0
    %2098 = vrot.lane.b32.xlu0 %v1806, 112
    %v2099 = vpop.permute.xlu0 %2098
    %2100 = vrot.lane.b32.xlu0 %v1806, 48
    %v2101 = vpop.permute.xlu0 %2100
    %v2103 = vsel %vm219, %v2099, 0
    %v2106 = vsel %vm219, %v2101, 0
    %2108 = vmatprep.subr.bf16.mxu0 0
    %2109 = vmatpush1.bf16.xpose.msra.mxu0 0
    %2110 = vmatprep.subr.bf16.mxu0 0
    %2111 = vmatpush1.bf16.xpose.msra.mxu0 0
    %2112 = vmatprep.subr.bf16.mxu0 0
    %2113 = vmatpush1.bf16.xpose.msra.mxu0 0
    %2114 = vmatprep.subr.bf16.mxu0 0
    %2115 = vmatpush1.bf16.xpose.msra.mxu0 0
    %2116 = vmatprep.subr.bf16.mxu0 0
    %2117 = vmatpush1.bf16.xpose.msra.mxu0 0
    %2118 = vmatprep.subr.bf16.mxu0 0
    %2119 = vmatpush1.bf16.xpose.msra.mxu0 0
    %2120 = vmatprep.subr.bf16.mxu0 0
    %2121 = vmatpush1.bf16.xpose.msra.mxu0 0
    %2122 = vmatprep.subr.bf16.mxu0 0
    %2123 = vmatpush1.bf16.xpose.msra.mxu0 %v2106
    %2124 = vmatprep.subr.bf16.mxu0 0
    %2125 = vmatpush2.bf16.xpose.msra.mxu0 0
    %2126 = vmatprep.subr.bf16.mxu0 0
    %2127 = vmatpush2.bf16.xpose.msra.mxu0 0
    %2128 = vmatprep.subr.bf16.mxu0 0
    %2129 = vmatpush2.bf16.xpose.msra.mxu0 0
    %2130 = vmatprep.subr.bf16.mxu0 0
    %2131 = vmatpush2.bf16.xpose.msra.mxu0 0
    %2132 = vmatprep.subr.bf16.mxu0 0
    %2133 = vmatpush2.bf16.xpose.msra.mxu0 0
    %2134 = vmatprep.subr.bf16.mxu0 0
    %2135 = vmatpush2.bf16.xpose.msra.mxu0 0
    %2136 = vmatprep.subr.bf16.mxu0 0
    %2137 = vmatpush2.bf16.xpose.msra.mxu0 0
    %2138 = vmatprep.subr.bf16.mxu0 0
    %2139 = vmatpush2.bf16.xpose.msra.mxu0 0
    %2140 = vmatprep.mubr.bf16.mxu0 0
    %2141 = vmatmul.mubr.bf16.gmra.mxu0 %v2103
    %v2142 = vpop.f32.mrf.mxu0
    %v2143 = vadd.f32 0.0, %v2142
    %v2144 = vpop.f32.mrf.mxu0
    %v2145 = vpop.f32.mrf.mxu0
    %v2146 = vadd.f32 0.0, %v2145
    %v2147 = vpop.f32.mrf.mxu0
    %2148 = vdwg.mxu0
    %v2149 = vmul.f32 %v2092, 0.25
    %v2150 = vmul.f32 %v2095, 0.25
    %v2151 = vmul.f32 %v2143, 0.25
    %v2152 = vmul.f32 %v2146, 0.25
    %v2153 = vsel %vm219, %v2149, -inf
    %2154 = vmax.xlane.f32.xlu0 %v2153
    %v2155 = vpop.xlane.xlu0 %2154
    %v2156 = vsel %vm219, %v2150, -inf
    %2157 = vmax.xlane.f32.xlu0 %v2156
    %v2158 = vpop.xlane.xlu0 %2157
    %v2159 = vsel %vm219, %v2151, -inf
    %2160 = vmax.xlane.f32.xlu0 %v2159
    %v2161 = vpop.xlane.xlu0 %2160
    %v2162 = vsel %vm219, %v2152, -inf
    %2163 = vmax.xlane.f32.xlu0 %v2162
    %v2164 = vpop.xlane.xlu0 %2163
    %v2165 = vsub.f32 %v2149, %v2155
    %v2166 = vsub.f32 %v2150, %v2158
    %v2167 = vsub.f32 %v2151, %v2161
    %v2168 = vsub.f32 %v2152, %v2164
    %v2169 = vmul.f32 %v2165, 1.442695
    %v2170 = vpow.pop %v2169
    %v2171 = vmul.f32 %v2166, 1.442695
    %v2172 = vpow.pop %v2171
    %v2173 = vmul.f32 %v2167, 1.442695
    %v2174 = vpow.pop %v2173
    %v2175 = vmul.f32 %v2168, 1.442695
    %v2176 = vpow.pop %v2175
    %v2177 = vsel %vm219, %v2170, 0.0
    %2178 = vadd.xlane.f32.xlu0 %v2177
    %v2179 = vpop.xlane.xlu0 %2178
    %v2180 = vsel %vm219, %v2172, 0.0
    %2181 = vadd.xlane.f32.xlu0 %v2180
    %v2182 = vpop.xlane.xlu0 %2181
    %v2183 = vsel %vm219, %v2174, 0.0
    %2184 = vadd.xlane.f32.xlu0 %v2183
    %v2185 = vpop.xlane.xlu0 %2184
    %v2186 = vsel %vm219, %v2176, 0.0
    %2187 = vadd.xlane.f32.xlu0 %v2186
    %v2188 = vpop.xlane.xlu0 %2187
    %v2189 = vrcp.pop %v2179
    %v2190 = vmul.f32 %v2170, %v2189
    %v2191 = vrcp.pop %v2182
    %v2192 = vmul.f32 %v2172, %v2191
    %v2193 = vrcp.pop %v2185
    %v2194 = vmul.f32 %v2174, %v2193
    %v2195 = vrcp.pop %v2188
    %v2196 = vmul.f32 %v2176, %v2195
    %v2197 = vpack.c.bf16 %v2192, %v2190
    %v2198 = vpack.c.bf16 %v2196, %v2194
    %2200 = vrot.lane.b32.xlu0 %v1957, 112
    %v2201 = vpop.permute.xlu0 %2200
    %v2204 = vsel %vm219, %v2197, 0
    %2206 = vmatprep.subr.bf16.mxu0 0
    %2207 = vmatpush1.bf16.msra.mxu0 0
    %2208 = vmatprep.subr.bf16.mxu0 0
    %2209 = vmatpush1.bf16.msra.mxu0 0
    %2210 = vmatprep.subr.bf16.mxu0 0
    %2211 = vmatpush1.bf16.msra.mxu0 0
    %2212 = vmatprep.subr.bf16.mxu0 0
    %2213 = vmatpush1.bf16.msra.mxu0 0
    %2214 = vmatprep.subr.bf16.mxu0 0
    %2215 = vmatpush1.bf16.msra.mxu0 0
    %2216 = vmatprep.subr.bf16.mxu0 0
    %2217 = vmatpush1.bf16.msra.mxu0 0
    %2218 = vmatprep.subr.bf16.mxu0 0
    %2219 = vmatpush1.bf16.msra.mxu0 0
    %2220 = vmatprep.subr.bf16.mxu0 0
    %2221 = vmatpush1.bf16.msra.mxu0 %v2201
    %2222 = vmatprep.subr.bf16.mxu0 0
    %2223 = vmatpush2.bf16.msra.mxu0 0
    %2224 = vmatprep.subr.bf16.mxu0 0
    %2225 = vmatpush2.bf16.msra.mxu0 0
    %2226 = vmatprep.subr.bf16.mxu0 0
    %2227 = vmatpush2.bf16.msra.mxu0 0
    %2228 = vmatprep.subr.bf16.mxu0 0
    %2229 = vmatpush2.bf16.msra.mxu0 0
    %2230 = vmatprep.subr.bf16.mxu0 0
    %2231 = vmatpush2.bf16.msra.mxu0 0
    %2232 = vmatprep.subr.bf16.mxu0 0
    %2233 = vmatpush2.bf16.msra.mxu0 0
    %2234 = vmatprep.subr.bf16.mxu0 0
    %2235 = vmatpush2.bf16.msra.mxu0 0
    %2236 = vmatprep.subr.bf16.mxu0 0
    %2237 = vmatpush2.bf16.msra.mxu0 0
    %2238 = vmatprep.mubr.bf16.mxu0 0
    %2239 = vmatmul.mubr.bf16.gmra.mxu0 %v2204
    %v2240 = vpop.f32.mrf.mxu0
    %v2241 = vadd.f32 0.0, %v2240
    %v2242 = vpop.f32.mrf.mxu0
    %v2243 = vpop.f32.mrf.mxu0
    %v2244 = vadd.f32 0.0, %v2243
    %v2245 = vpop.f32.mrf.mxu0
    %2246 = vdwg.mxu0
    %2248 = vrot.lane.b32.xlu0 %v1958, 112
    %v2249 = vpop.permute.xlu0 %2248
    %v2252 = vsel %vm219, %v2198, 0
    %2254 = vmatprep.subr.bf16.mxu0 0
    %2255 = vmatpush1.bf16.msra.mxu0 0
    %2256 = vmatprep.subr.bf16.mxu0 0
    %2257 = vmatpush1.bf16.msra.mxu0 0
    %2258 = vmatprep.subr.bf16.mxu0 0
    %2259 = vmatpush1.bf16.msra.mxu0 0
    %2260 = vmatprep.subr.bf16.mxu0 0
    %2261 = vmatpush1.bf16.msra.mxu0 0
    %2262 = vmatprep.subr.bf16.mxu0 0
    %2263 = vmatpush1.bf16.msra.mxu0 0
    %2264 = vmatprep.subr.bf16.mxu0 0
    %2265 = vmatpush1.bf16.msra.mxu0 0
    %2266 = vmatprep.subr.bf16.mxu0 0
    %2267 = vmatpush1.bf16.msra.mxu0 0
    %2268 = vmatprep.subr.bf16.mxu0 0
    %2269 = vmatpush1.bf16.msra.mxu0 %v2249
    %2270 = vmatprep.subr.bf16.mxu0 0
    %2271 = vmatpush2.bf16.msra.mxu0 0
    %2272 = vmatprep.subr.bf16.mxu0 0
    %2273 = vmatpush2.bf16.msra.mxu0 0
    %2274 = vmatprep.subr.bf16.mxu0 0
    %2275 = vmatpush2.bf16.msra.mxu0 0
    %2276 = vmatprep.subr.bf16.mxu0 0
    %2277 = vmatpush2.bf16.msra.mxu0 0
    %2278 = vmatprep.subr.bf16.mxu0 0
    %2279 = vmatpush2.bf16.msra.mxu0 0
    %2280 = vmatprep.subr.bf16.mxu0 0
    %2281 = vmatpush2.bf16.msra.mxu0 0
    %2282 = vmatprep.subr.bf16.mxu0 0
    %2283 = vmatpush2.bf16.msra.mxu0 0
    %2284 = vmatprep.subr.bf16.mxu0 0
    %2285 = vmatpush2.bf16.msra.mxu0 0
    %2286 = vmatprep.mubr.bf16.mxu0 0
    %2287 = vmatmul.mubr.bf16.gmra.mxu0 %v2252
    %v2288 = vpop.f32.mrf.mxu0
    %v2289 = vadd.f32 0.0, %v2288
    %v2290 = vpop.f32.mrf.mxu0
    %v2291 = vpop.f32.mrf.mxu0
    %v2292 = vadd.f32 0.0, %v2291
    %v2293 = vpop.f32.mrf.mxu0
    %2294 = vdwg.mxu0
    %2295 = vrot.lane.b32.xlu0 %v1805, 96
    %v2296 = vpop.permute.xlu0 %2295
    %2297 = vrot.lane.b32.xlu0 %v1805, 32
    %v2298 = vpop.permute.xlu0 %2297
    %v2300 = vsel %vm219, %v2296, 0
    %v2303 = vsel %vm219, %v2298, 0
    %2305 = vmatprep.subr.bf16.mxu0 0
    %2306 = vmatpush1.bf16.xpose.msra.mxu0 0
    %2307 = vmatprep.subr.bf16.mxu0 0
    %2308 = vmatpush1.bf16.xpose.msra.mxu0 0
    %2309 = vmatprep.subr.bf16.mxu0 0
    %2310 = vmatpush1.bf16.xpose.msra.mxu0 0
    %2311 = vmatprep.subr.bf16.mxu0 0
    %2312 = vmatpush1.bf16.xpose.msra.mxu0 0
    %2313 = vmatprep.subr.bf16.mxu0 0
    %2314 = vmatpush1.bf16.xpose.msra.mxu0 0
    %2315 = vmatprep.subr.bf16.mxu0 0
    %2316 = vmatpush1.bf16.xpose.msra.mxu0 0
    %2317 = vmatprep.subr.bf16.mxu0 0
    %2318 = vmatpush1.bf16.xpose.msra.mxu0 0
    %2319 = vmatprep.subr.bf16.mxu0 0
    %2320 = vmatpush1.bf16.xpose.msra.mxu0 %v2303
    %2321 = vmatprep.subr.bf16.mxu0 0
    %2322 = vmatpush2.bf16.xpose.msra.mxu0 0
    %2323 = vmatprep.subr.bf16.mxu0 0
    %2324 = vmatpush2.bf16.xpose.msra.mxu0 0
    %2325 = vmatprep.subr.bf16.mxu0 0
    %2326 = vmatpush2.bf16.xpose.msra.mxu0 0
    %2327 = vmatprep.subr.bf16.mxu0 0
    %2328 = vmatpush2.bf16.xpose.msra.mxu0 0
    %2329 = vmatprep.subr.bf16.mxu0 0
    %2330 = vmatpush2.bf16.xpose.msra.mxu0 0
    %2331 = vmatprep.subr.bf16.mxu0 0
    %2332 = vmatpush2.bf16.xpose.msra.mxu0 0
    %2333 = vmatprep.subr.bf16.mxu0 0
    %2334 = vmatpush2.bf16.xpose.msra.mxu0 0
    %2335 = vmatprep.subr.bf16.mxu0 0
    %2336 = vmatpush2.bf16.xpose.msra.mxu0 0
    %2337 = vmatprep.mubr.bf16.mxu0 0
    %2338 = vmatmul.mubr.bf16.gmra.mxu0 %v2300
    %v2339 = vpop.f32.mrf.mxu0
    %v2340 = vadd.f32 0.0, %v2339
    %v2341 = vpop.f32.mrf.mxu0
    %v2342 = vpop.f32.mrf.mxu0
    %v2343 = vadd.f32 0.0, %v2342
    %v2344 = vpop.f32.mrf.mxu0
    %2345 = vdwg.mxu0
    %2346 = vrot.lane.b32.xlu0 %v1806, 96
    %v2347 = vpop.permute.xlu0 %2346
    %2348 = vrot.lane.b32.xlu0 %v1806, 32
    %v2349 = vpop.permute.xlu0 %2348
    %v2351 = vsel %vm219, %v2347, 0
    %v2354 = vsel %vm219, %v2349, 0
    %2356 = vmatprep.subr.bf16.mxu0 0
    %2357 = vmatpush1.bf16.xpose.msra.mxu0 0
    %2358 = vmatprep.subr.bf16.mxu0 0
    %2359 = vmatpush1.bf16.xpose.msra.mxu0 0
    %2360 = vmatprep.subr.bf16.mxu0 0
    %2361 = vmatpush1.bf16.xpose.msra.mxu0 0
    %2362 = vmatprep.subr.bf16.mxu0 0
    %2363 = vmatpush1.bf16.xpose.msra.mxu0 0
    %2364 = vmatprep.subr.bf16.mxu0 0
    %2365 = vmatpush1.bf16.xpose.msra.mxu0 0
    %2366 = vmatprep.subr.bf16.mxu0 0
    %2367 = vmatpush1.bf16.xpose.msra.mxu0 0
    %2368 = vmatprep.subr.bf16.mxu0 0
    %2369 = vmatpush1.bf16.xpose.msra.mxu0 0
    %2370 = vmatprep.subr.bf16.mxu0 0
    %2371 = vmatpush1.bf16.xpose.msra.mxu0 %v2354
    %2372 = vmatprep.subr.bf16.mxu0 0
    %2373 = vmatpush2.bf16.xpose.msra.mxu0 0
    %2374 = vmatprep.subr.bf16.mxu0 0
    %2375 = vmatpush2.bf16.xpose.msra.mxu0 0
    %2376 = vmatprep.subr.bf16.mxu0 0
    %2377 = vmatpush2.bf16.xpose.msra.mxu0 0
    %2378 = vmatprep.subr.bf16.mxu0 0
    %2379 = vmatpush2.bf16.xpose.msra.mxu0 0
    %2380 = vmatprep.subr.bf16.mxu0 0
    %2381 = vmatpush2.bf16.xpose.msra.mxu0 0
    %2382 = vmatprep.subr.bf16.mxu0 0
    %2383 = vmatpush2.bf16.xpose.msra.mxu0 0
    %2384 = vmatprep.subr.bf16.mxu0 0
    %2385 = vmatpush2.bf16.xpose.msra.mxu0 0
    %2386 = vmatprep.subr.bf16.mxu0 0
    %2387 = vmatpush2.bf16.xpose.msra.mxu0 0
    %2388 = vmatprep.mubr.bf16.mxu0 0
    %2389 = vmatmul.mubr.bf16.gmra.mxu0 %v2351
    %v2390 = vpop.f32.mrf.mxu0
    %v2391 = vadd.f32 0.0, %v2390
    %v2392 = vpop.f32.mrf.mxu0
    %v2393 = vpop.f32.mrf.mxu0
    %v2394 = vadd.f32 0.0, %v2393
    %v2395 = vpop.f32.mrf.mxu0
    %2396 = vdwg.mxu0
    %v2397 = vmul.f32 %v2340, 0.25
    %v2398 = vmul.f32 %v2343, 0.25
    %v2399 = vmul.f32 %v2391, 0.25
    %v2400 = vmul.f32 %v2394, 0.25
    %v2401 = vsel %vm219, %v2397, -inf
    %2402 = vmax.xlane.f32.xlu0 %v2401
    %v2403 = vpop.xlane.xlu0 %2402
    %v2404 = vsel %vm219, %v2398, -inf
    %2405 = vmax.xlane.f32.xlu0 %v2404
    %v2406 = vpop.xlane.xlu0 %2405
    %v2407 = vsel %vm219, %v2399, -inf
    %2408 = vmax.xlane.f32.xlu0 %v2407
    %v2409 = vpop.xlane.xlu0 %2408
    %v2410 = vsel %vm219, %v2400, -inf
    %2411 = vmax.xlane.f32.xlu0 %v2410
    %v2412 = vpop.xlane.xlu0 %2411
    %v2413 = vsub.f32 %v2397, %v2403
    %v2414 = vsub.f32 %v2398, %v2406
    %v2415 = vsub.f32 %v2399, %v2409
    %v2416 = vsub.f32 %v2400, %v2412
    %v2417 = vmul.f32 %v2413, 1.442695
    %v2418 = vpow.pop %v2417
    %v2419 = vmul.f32 %v2414, 1.442695
    %v2420 = vpow.pop %v2419
    %v2421 = vmul.f32 %v2415, 1.442695
    %v2422 = vpow.pop %v2421
    %v2423 = vmul.f32 %v2416, 1.442695
    %v2424 = vpow.pop %v2423
    %v2425 = vsel %vm219, %v2418, 0.0
    %2426 = vadd.xlane.f32.xlu0 %v2425
    %v2427 = vpop.xlane.xlu0 %2426
    %v2428 = vsel %vm219, %v2420, 0.0
    %2429 = vadd.xlane.f32.xlu0 %v2428
    %v2430 = vpop.xlane.xlu0 %2429
    %v2431 = vsel %vm219, %v2422, 0.0
    %2432 = vadd.xlane.f32.xlu0 %v2431
    %v2433 = vpop.xlane.xlu0 %2432
    %v2434 = vsel %vm219, %v2424, 0.0
    %2435 = vadd.xlane.f32.xlu0 %v2434
    %v2436 = vpop.xlane.xlu0 %2435
    %v2437 = vrcp.pop %v2427
    %v2438 = vmul.f32 %v2418, %v2437
    %v2439 = vrcp.pop %v2430
    %v2440 = vmul.f32 %v2420, %v2439
    %v2441 = vrcp.pop %v2433
    %v2442 = vmul.f32 %v2422, %v2441
    %v2443 = vrcp.pop %v2436
    %v2444 = vmul.f32 %v2424, %v2443
    %v2445 = vpack.c.bf16 %v2440, %v2438
    %v2446 = vpack.c.bf16 %v2444, %v2442
    %2447 = vrot.lane.b32.xlu0 %v1957, 96
    %v2448 = vpop.permute.xlu0 %2447
    %v2451 = vsel %vm219, %v2445, 0
    %2453 = vmatprep.subr.bf16.mxu0 0
    %2454 = vmatpush1.bf16.msra.mxu0 0
    %2455 = vmatprep.subr.bf16.mxu0 0
    %2456 = vmatpush1.bf16.msra.mxu0 0
    %2457 = vmatprep.subr.bf16.mxu0 0
    %2458 = vmatpush1.bf16.msra.mxu0 0
    %2459 = vmatprep.subr.bf16.mxu0 0
    %2460 = vmatpush1.bf16.msra.mxu0 0
    %2461 = vmatprep.subr.bf16.mxu0 0
    %2462 = vmatpush1.bf16.msra.mxu0 0
    %2463 = vmatprep.subr.bf16.mxu0 0
    %2464 = vmatpush1.bf16.msra.mxu0 0
    %2465 = vmatprep.subr.bf16.mxu0 0
    %2466 = vmatpush1.bf16.msra.mxu0 0
    %2467 = vmatprep.subr.bf16.mxu0 0
    %2468 = vmatpush1.bf16.msra.mxu0 %v2448
    %2469 = vmatprep.subr.bf16.mxu0 0
    %2470 = vmatpush2.bf16.msra.mxu0 0
    %2471 = vmatprep.subr.bf16.mxu0 0
    %2472 = vmatpush2.bf16.msra.mxu0 0
    %2473 = vmatprep.subr.bf16.mxu0 0
    %2474 = vmatpush2.bf16.msra.mxu0 0
    %2475 = vmatprep.subr.bf16.mxu0 0
    %2476 = vmatpush2.bf16.msra.mxu0 0
    %2477 = vmatprep.subr.bf16.mxu0 0
    %2478 = vmatpush2.bf16.msra.mxu0 0
    %2479 = vmatprep.subr.bf16.mxu0 0
    %2480 = vmatpush2.bf16.msra.mxu0 0
    %2481 = vmatprep.subr.bf16.mxu0 0
    %2482 = vmatpush2.bf16.msra.mxu0 0
    %2483 = vmatprep.subr.bf16.mxu0 0
    %2484 = vmatpush2.bf16.msra.mxu0 0
    %2485 = vmatprep.mubr.bf16.mxu0 0
    %2486 = vmatmul.mubr.bf16.gmra.mxu0 %v2451
    %v2487 = vpop.f32.mrf.mxu0
    %v2488 = vadd.f32 0.0, %v2487
    %v2489 = vpop.f32.mrf.mxu0
    %v2490 = vpop.f32.mrf.mxu0
    %v2491 = vadd.f32 0.0, %v2490
    %v2492 = vpop.f32.mrf.mxu0
    %2493 = vdwg.mxu0
    %2494 = vrot.lane.b32.xlu0 %v1958, 96
    %v2495 = vpop.permute.xlu0 %2494
    %v2498 = vsel %vm219, %v2446, 0
    %2500 = vmatprep.subr.bf16.mxu0 0
    %2501 = vmatpush1.bf16.msra.mxu0 0
    %2502 = vmatprep.subr.bf16.mxu0 0
    %2503 = vmatpush1.bf16.msra.mxu0 0
    %2504 = vmatprep.subr.bf16.mxu0 0
    %2505 = vmatpush1.bf16.msra.mxu0 0
    %2506 = vmatprep.subr.bf16.mxu0 0
    %2507 = vmatpush1.bf16.msra.mxu0 0
    %2508 = vmatprep.subr.bf16.mxu0 0
    %2509 = vmatpush1.bf16.msra.mxu0 0
    %2510 = vmatprep.subr.bf16.mxu0 0
    %2511 = vmatpush1.bf16.msra.mxu0 0
    %2512 = vmatprep.subr.bf16.mxu0 0
    %2513 = vmatpush1.bf16.msra.mxu0 0
    %2514 = vmatprep.subr.bf16.mxu0 0
    %2515 = vmatpush1.bf16.msra.mxu0 %v2495
    %2516 = vmatprep.subr.bf16.mxu0 0
    %2517 = vmatpush2.bf16.msra.mxu0 0
    %2518 = vmatprep.subr.bf16.mxu0 0
    %2519 = vmatpush2.bf16.msra.mxu0 0
    %2520 = vmatprep.subr.bf16.mxu0 0
    %2521 = vmatpush2.bf16.msra.mxu0 0
    %2522 = vmatprep.subr.bf16.mxu0 0
    %2523 = vmatpush2.bf16.msra.mxu0 0
    %2524 = vmatprep.subr.bf16.mxu0 0
    %2525 = vmatpush2.bf16.msra.mxu0 0
    %2526 = vmatprep.subr.bf16.mxu0 0
    %2527 = vmatpush2.bf16.msra.mxu0 0
    %2528 = vmatprep.subr.bf16.mxu0 0
    %2529 = vmatpush2.bf16.msra.mxu0 0
    %2530 = vmatprep.subr.bf16.mxu0 0
    %2531 = vmatpush2.bf16.msra.mxu0 0
    %2532 = vmatprep.mubr.bf16.mxu0 0
    %2533 = vmatmul.mubr.bf16.gmra.mxu0 %v2498
    %v2534 = vpop.f32.mrf.mxu0
    %v2535 = vadd.f32 0.0, %v2534
    %v2536 = vpop.f32.mrf.mxu0
    %v2537 = vpop.f32.mrf.mxu0
    %v2538 = vadd.f32 0.0, %v2537
    %v2539 = vpop.f32.mrf.mxu0
    %2540 = vdwg.mxu0
    %2541 = vrot.lane.b32.xlu0 %v1805, 80
    %v2542 = vpop.permute.xlu0 %2541
    %2543 = vrot.lane.b32.xlu0 %v1805, 16
    %v2544 = vpop.permute.xlu0 %2543
    %v2546 = vsel %vm219, %v2542, 0
    %v2549 = vsel %vm219, %v2544, 0
    %2551 = vmatprep.subr.bf16.mxu0 0
    %2552 = vmatpush1.bf16.xpose.msra.mxu0 0
    %2553 = vmatprep.subr.bf16.mxu0 0
    %2554 = vmatpush1.bf16.xpose.msra.mxu0 0
    %2555 = vmatprep.subr.bf16.mxu0 0
    %2556 = vmatpush1.bf16.xpose.msra.mxu0 0
    %2557 = vmatprep.subr.bf16.mxu0 0
    %2558 = vmatpush1.bf16.xpose.msra.mxu0 0
    %2559 = vmatprep.subr.bf16.mxu0 0
    %2560 = vmatpush1.bf16.xpose.msra.mxu0 0
    %2561 = vmatprep.subr.bf16.mxu0 0
    %2562 = vmatpush1.bf16.xpose.msra.mxu0 0
    %2563 = vmatprep.subr.bf16.mxu0 0
    %2564 = vmatpush1.bf16.xpose.msra.mxu0 0
    %2565 = vmatprep.subr.bf16.mxu0 0
    %2566 = vmatpush1.bf16.xpose.msra.mxu0 %v2549
    %2567 = vmatprep.subr.bf16.mxu0 0
    %2568 = vmatpush2.bf16.xpose.msra.mxu0 0
    %2569 = vmatprep.subr.bf16.mxu0 0
    %2570 = vmatpush2.bf16.xpose.msra.mxu0 0
    %2571 = vmatprep.subr.bf16.mxu0 0
    %2572 = vmatpush2.bf16.xpose.msra.mxu0 0
    %2573 = vmatprep.subr.bf16.mxu0 0
    %2574 = vmatpush2.bf16.xpose.msra.mxu0 0
    %2575 = vmatprep.subr.bf16.mxu0 0
    %2576 = vmatpush2.bf16.xpose.msra.mxu0 0
    %2577 = vmatprep.subr.bf16.mxu0 0
    %2578 = vmatpush2.bf16.xpose.msra.mxu0 0
    %2579 = vmatprep.subr.bf16.mxu0 0
    %2580 = vmatpush2.bf16.xpose.msra.mxu0 0
    %2581 = vmatprep.subr.bf16.mxu0 0
    %2582 = vmatpush2.bf16.xpose.msra.mxu0 0
    %2583 = vmatprep.mubr.bf16.mxu0 0
    %2584 = vmatmul.mubr.bf16.gmra.mxu0 %v2546
    %v2585 = vpop.f32.mrf.mxu0
    %v2586 = vadd.f32 0.0, %v2585
    %v2587 = vpop.f32.mrf.mxu0
    %v2588 = vpop.f32.mrf.mxu0
    %v2589 = vadd.f32 0.0, %v2588
    %v2590 = vpop.f32.mrf.mxu0
    %2591 = vdwg.mxu0
    %2592 = vrot.lane.b32.xlu0 %v1806, 80
    %v2593 = vpop.permute.xlu0 %2592
    %2594 = vrot.lane.b32.xlu0 %v1806, 16
    %v2595 = vpop.permute.xlu0 %2594
    %v2597 = vsel %vm219, %v2593, 0
    %v2600 = vsel %vm219, %v2595, 0
    %2602 = vmatprep.subr.bf16.mxu0 0
    %2603 = vmatpush1.bf16.xpose.msra.mxu0 0
    %2604 = vmatprep.subr.bf16.mxu0 0
    %2605 = vmatpush1.bf16.xpose.msra.mxu0 0
    %2606 = vmatprep.subr.bf16.mxu0 0
    %2607 = vmatpush1.bf16.xpose.msra.mxu0 0
    %2608 = vmatprep.subr.bf16.mxu0 0
    %2609 = vmatpush1.bf16.xpose.msra.mxu0 0
    %2610 = vmatprep.subr.bf16.mxu0 0
    %2611 = vmatpush1.bf16.xpose.msra.mxu0 0
    %2612 = vmatprep.subr.bf16.mxu0 0
    %2613 = vmatpush1.bf16.xpose.msra.mxu0 0
    %2614 = vmatprep.subr.bf16.mxu0 0
    %2615 = vmatpush1.bf16.xpose.msra.mxu0 0
    %2616 = vmatprep.subr.bf16.mxu0 0
    %2617 = vmatpush1.bf16.xpose.msra.mxu0 %v2600
    %2618 = vmatprep.subr.bf16.mxu0 0
    %2619 = vmatpush2.bf16.xpose.msra.mxu0 0
    %2620 = vmatprep.subr.bf16.mxu0 0
    %2621 = vmatpush2.bf16.xpose.msra.mxu0 0
    %2622 = vmatprep.subr.bf16.mxu0 0
    %2623 = vmatpush2.bf16.xpose.msra.mxu0 0
    %2624 = vmatprep.subr.bf16.mxu0 0
    %2625 = vmatpush2.bf16.xpose.msra.mxu0 0
    %2626 = vmatprep.subr.bf16.mxu0 0
    %2627 = vmatpush2.bf16.xpose.msra.mxu0 0
    %2628 = vmatprep.subr.bf16.mxu0 0
    %2629 = vmatpush2.bf16.xpose.msra.mxu0 0
    %2630 = vmatprep.subr.bf16.mxu0 0
    %2631 = vmatpush2.bf16.xpose.msra.mxu0 0
    %2632 = vmatprep.subr.bf16.mxu0 0
    %2633 = vmatpush2.bf16.xpose.msra.mxu0 0
    %2634 = vmatprep.mubr.bf16.mxu0 0
    %2635 = vmatmul.mubr.bf16.gmra.mxu0 %v2597
    %v2636 = vpop.f32.mrf.mxu0
    %v2637 = vadd.f32 0.0, %v2636
    %v2638 = vpop.f32.mrf.mxu0
    %v2639 = vpop.f32.mrf.mxu0
    %v2640 = vadd.f32 0.0, %v2639
    %v2641 = vpop.f32.mrf.mxu0
    %2642 = vdwg.mxu0
    %v2643 = vmul.f32 %v2586, 0.25
    %v2644 = vmul.f32 %v2589, 0.25
    %v2645 = vmul.f32 %v2637, 0.25
    %v2646 = vmul.f32 %v2640, 0.25
    %v2647 = vsel %vm219, %v2643, -inf
    %2648 = vmax.xlane.f32.xlu0 %v2647
    %v2649 = vpop.xlane.xlu0 %2648
    %v2650 = vsel %vm219, %v2644, -inf
    %2651 = vmax.xlane.f32.xlu0 %v2650
    %v2652 = vpop.xlane.xlu0 %2651
    %v2653 = vsel %vm219, %v2645, -inf
    %2654 = vmax.xlane.f32.xlu0 %v2653
    %v2655 = vpop.xlane.xlu0 %2654
    %v2656 = vsel %vm219, %v2646, -inf
    %2657 = vmax.xlane.f32.xlu0 %v2656
    %v2658 = vpop.xlane.xlu0 %2657
    %v2659 = vsub.f32 %v2643, %v2649
    %v2660 = vsub.f32 %v2644, %v2652
    %v2661 = vsub.f32 %v2645, %v2655
    %v2662 = vsub.f32 %v2646, %v2658
    %v2663 = vmul.f32 %v2659, 1.442695
    %v2664 = vpow.pop %v2663
    %v2665 = vmul.f32 %v2660, 1.442695
    %v2666 = vpow.pop %v2665
    %v2667 = vmul.f32 %v2661, 1.442695
    %v2668 = vpow.pop %v2667
    %v2669 = vmul.f32 %v2662, 1.442695
    %v2670 = vpow.pop %v2669
    %v2671 = vsel %vm219, %v2664, 0.0
    %2672 = vadd.xlane.f32.xlu0 %v2671
    %v2673 = vpop.xlane.xlu0 %2672
    %v2674 = vsel %vm219, %v2666, 0.0
    %2675 = vadd.xlane.f32.xlu0 %v2674
    %v2676 = vpop.xlane.xlu0 %2675
    %v2677 = vsel %vm219, %v2668, 0.0
    %2678 = vadd.xlane.f32.xlu0 %v2677
    %v2679 = vpop.xlane.xlu0 %2678
    %v2680 = vsel %vm219, %v2670, 0.0
    %2681 = vadd.xlane.f32.xlu0 %v2680
    %v2682 = vpop.xlane.xlu0 %2681
    %v2683 = vrcp.pop %v2673
    %v2684 = vmul.f32 %v2664, %v2683
    %v2685 = vrcp.pop %v2676
    %v2686 = vmul.f32 %v2666, %v2685
    %v2687 = vrcp.pop %v2679
    %v2688 = vmul.f32 %v2668, %v2687
    %v2689 = vrcp.pop %v2682
    %v2690 = vmul.f32 %v2670, %v2689
    %v2691 = vpack.c.bf16 %v2686, %v2684
    %v2692 = vpack.c.bf16 %v2690, %v2688
    %2693 = vrot.lane.b32.xlu0 %v1957, 80
    %v2694 = vpop.permute.xlu0 %2693
    %v2697 = vsel %vm219, %v2691, 0
    %2699 = vmatprep.subr.bf16.mxu0 0
    %2700 = vmatpush1.bf16.msra.mxu0 0
    %2701 = vmatprep.subr.bf16.mxu0 0
    %2702 = vmatpush1.bf16.msra.mxu0 0
    %2703 = vmatprep.subr.bf16.mxu0 0
    %2704 = vmatpush1.bf16.msra.mxu0 0
    %2705 = vmatprep.subr.bf16.mxu0 0
    %2706 = vmatpush1.bf16.msra.mxu0 0
    %2707 = vmatprep.subr.bf16.mxu0 0
    %2708 = vmatpush1.bf16.msra.mxu0 0
    %2709 = vmatprep.subr.bf16.mxu0 0
    %2710 = vmatpush1.bf16.msra.mxu0 0
    %2711 = vmatprep.subr.bf16.mxu0 0
    %2712 = vmatpush1.bf16.msra.mxu0 0
    %2713 = vmatprep.subr.bf16.mxu0 0
    %2714 = vmatpush1.bf16.msra.mxu0 %v2694
    %2715 = vmatprep.subr.bf16.mxu0 0
    %2716 = vmatpush2.bf16.msra.mxu0 0
    %2717 = vmatprep.subr.bf16.mxu0 0
    %2718 = vmatpush2.bf16.msra.mxu0 0
    %2719 = vmatprep.subr.bf16.mxu0 0
    %2720 = vmatpush2.bf16.msra.mxu0 0
    %2721 = vmatprep.subr.bf16.mxu0 0
    %2722 = vmatpush2.bf16.msra.mxu0 0
    %2723 = vmatprep.subr.bf16.mxu0 0
    %2724 = vmatpush2.bf16.msra.mxu0 0
    %2725 = vmatprep.subr.bf16.mxu0 0
    %2726 = vmatpush2.bf16.msra.mxu0 0
    %2727 = vmatprep.subr.bf16.mxu0 0
    %2728 = vmatpush2.bf16.msra.mxu0 0
    %2729 = vmatprep.subr.bf16.mxu0 0
    %2730 = vmatpush2.bf16.msra.mxu0 0
    %2731 = vmatprep.mubr.bf16.mxu0 0
    %2732 = vmatmul.mubr.bf16.gmra.mxu0 %v2697
    %v2733 = vpop.f32.mrf.mxu0
    %v2734 = vadd.f32 0.0, %v2733
    %v2735 = vpop.f32.mrf.mxu0
    %v2736 = vpop.f32.mrf.mxu0
    %v2737 = vadd.f32 0.0, %v2736
    %v2738 = vpop.f32.mrf.mxu0
    %2739 = vdwg.mxu0
    %2740 = vrot.lane.b32.xlu0 %v1958, 80
    %v2741 = vpop.permute.xlu0 %2740
    %v2744 = vsel %vm219, %v2692, 0
    %2746 = vmatprep.subr.bf16.mxu0 0
    %2747 = vmatpush1.bf16.msra.mxu0 0
    %2748 = vmatprep.subr.bf16.mxu0 0
    %2749 = vmatpush1.bf16.msra.mxu0 0
    %2750 = vmatprep.subr.bf16.mxu0 0
    %2751 = vmatpush1.bf16.msra.mxu0 0
    %2752 = vmatprep.subr.bf16.mxu0 0
    %2753 = vmatpush1.bf16.msra.mxu0 0
    %2754 = vmatprep.subr.bf16.mxu0 0
    %2755 = vmatpush1.bf16.msra.mxu0 0
    %2756 = vmatprep.subr.bf16.mxu0 0
    %2757 = vmatpush1.bf16.msra.mxu0 0
    %2758 = vmatprep.subr.bf16.mxu0 0
    %2759 = vmatpush1.bf16.msra.mxu0 0
    %2760 = vmatprep.subr.bf16.mxu0 0
    %2761 = vmatpush1.bf16.msra.mxu0 %v2741
    %2762 = vmatprep.subr.bf16.mxu0 0
    %2763 = vmatpush2.bf16.msra.mxu0 0
    %2764 = vmatprep.subr.bf16.mxu0 0
    %2765 = vmatpush2.bf16.msra.mxu0 0
    %2766 = vmatprep.subr.bf16.mxu0 0
    %2767 = vmatpush2.bf16.msra.mxu0 0
    %2768 = vmatprep.subr.bf16.mxu0 0
    %2769 = vmatpush2.bf16.msra.mxu0 0
    %2770 = vmatprep.subr.bf16.mxu0 0
    %2771 = vmatpush2.bf16.msra.mxu0 0
    %2772 = vmatprep.subr.bf16.mxu0 0
    %2773 = vmatpush2.bf16.msra.mxu0 0
    %2774 = vmatprep.subr.bf16.mxu0 0
    %2775 = vmatpush2.bf16.msra.mxu0 0
    %2776 = vmatprep.subr.bf16.mxu0 0
    %2777 = vmatpush2.bf16.msra.mxu0 0
    %2778 = vmatprep.mubr.bf16.mxu0 0
    %2779 = vmatmul.mubr.bf16.gmra.mxu0 %v2744
    %v2780 = vpop.f32.mrf.mxu0
    %v2781 = vadd.f32 0.0, %v2780
    %v2782 = vpop.f32.mrf.mxu0
    %v2783 = vpop.f32.mrf.mxu0
    %v2784 = vadd.f32 0.0, %v2783
    %v2785 = vpop.f32.mrf.mxu0
    %2786 = vdwg.mxu0
    %2791 = vrot.lane.b32.xlu0 %v2241, 16
    %v2792 = vpop.permute.xlu0 %2791
    %2793 = vrot.lane.b32.xlu0 %v2244, 16
    %v2794 = vpop.permute.xlu0 %2793
    %2795 = vrot.lane.b32.xlu0 %v2289, 16
    %v2796 = vpop.permute.xlu0 %2795
    %2797 = vrot.lane.b32.xlu0 %v2292, 16
    %v2798 = vpop.permute.xlu0 %2797
    %2807 = vrot.lane.b32.xlu0 %v2488, 32
    %v2808 = vpop.permute.xlu0 %2807
    %2809 = vrot.lane.b32.xlu0 %v2491, 32
    %v2810 = vpop.permute.xlu0 %2809
    %2811 = vrot.lane.b32.xlu0 %v2535, 32
    %v2812 = vpop.permute.xlu0 %2811
    %2813 = vrot.lane.b32.xlu0 %v2538, 32
    %v2814 = vpop.permute.xlu0 %2813
    %2823 = vrot.lane.b32.xlu0 %v2734, 48
    %v2824 = vpop.permute.xlu0 %2823
    %2825 = vrot.lane.b32.xlu0 %v2737, 48
    %v2826 = vpop.permute.xlu0 %2825
    %2827 = vrot.lane.b32.xlu0 %v2781, 48
    %v2828 = vpop.permute.xlu0 %2827
    %2829 = vrot.lane.b32.xlu0 %v2784, 48
    %v2830 = vpop.permute.xlu0 %2829
    %v2835 = vsel %vm219, %v1997, %v2792
    %v2836 = vsel %vm219, %v2000, %v2794
    %v2837 = vsel %vm219, %v2041, %v2796
    %v2838 = vsel %vm219, %v2044, %v2798
    %v2839 = vsel %vm55, %v2835, %v2808
    %v2840 = vsel %vm55, %v2836, %v2810
    %v2841 = vsel %vm55, %v2837, %v2812
    %v2842 = vsel %vm55, %v2838, %v2814
    %v2843 = vsel %vm1253, %v2839, %v2824
    %v2844 = vsel %vm1253, %v2840, %v2826
    %v2845 = vsel %vm1253, %v2841, %v2828
    %v2846 = vsel %vm1253, %v2842, %v2830
    %v2847 = vpack.c.bf16 %v2844, %v2843
    %v2848 = vpack.c.bf16 %v2846, %v2845
    %s2849 = scalar_lea.vmem %s4, 32
    %v2850 = vld [vmem:[%s2849] sm:$0xf]
    %v2851 = vld [vmem:[%s2849 + $0x4] sm:$0xf]
    %v2852 = vld [vmem:[%s2849 + $0x8] sm:$0xf]
    %v2853 = vld [vmem:[%s2849 + $0xc] sm:$0xf]
    %v2854 = vld [vmem:[%s2849 + $0x10] sm:$0xf]
    %v2855 = vld [vmem:[%s2849 + $0x14] sm:$0xf]
    %v2856 = vld [vmem:[%s2849 + $0x18] sm:$0xf]
    %v2857 = vld [vmem:[%s2849 + $0x1c] sm:$0xf]
    %s2858 = scalar_lea.vmem %s5, 1
    %v2859 = vld [vmem:[%s2858] sm:$0x1]
    %v2861 = vlaneseq
    %v2862 = vshrl.u32 %v2861, 7
    %v2863 = vsub.s32 0, %v2862
    %v2864 = vrot.slane %v2859, %v2863
    %v2874 = vunpack.c.l.b16 %v2850
    %v2875 = vunpack.c.l.b16 %v2851
    %v2876 = vunpack.c.l.b16 %v2852
    %v2877 = vunpack.c.l.b16 %v2853
    %v2878 = vunpack.c.l.b16 %v2854
    %v2879 = vunpack.c.l.b16 %v2855
    %v2880 = vunpack.c.l.b16 %v2856
    %v2881 = vunpack.c.l.b16 %v2857
    %v2882 = vpack.c.b16 %v2875, %v2874
    %v2883 = vpack.c.b16 %v2877, %v2876
    %v2884 = vpack.c.b16 %v2879, %v2878
    %v2885 = vpack.c.b16 %v2881, %v2880
    %v2891 = vsel %vm1299, %v2847, 0
    %v2894 = vsel %vm1299, %v2848, 0
    %2896 = vmatprep.subr.bf16.mxu0 0
    %2897 = vmatpush1.bf16.msra.mxu0 0
    %2898 = vmatprep.subr.bf16.mxu0 0
    %2899 = vmatpush1.bf16.msra.mxu0 0
    %2900 = vmatprep.subr.bf16.mxu0 0
    %2901 = vmatpush1.bf16.msra.mxu0 0
    %2902 = vmatprep.subr.bf16.mxu0 0
    %2903 = vmatpush1.bf16.msra.mxu0 0
    %2904 = vmatprep.subr.bf16.mxu0 0
    %2905 = vmatpush1.bf16.msra.mxu0 %v2885
    %2906 = vmatprep.subr.bf16.mxu0 0
    %2907 = vmatpush1.bf16.msra.mxu0 %v2884
    %2908 = vmatprep.subr.bf16.mxu0 0
    %2909 = vmatpush1.bf16.msra.mxu0 %v2883
    %2910 = vmatprep.subr.bf16.mxu0 0
    %2911 = vmatpush1.bf16.msra.mxu0 %v2882
    %2912 = vmatprep.subr.bf16.mxu0 0
    %2913 = vmatpush2.bf16.msra.mxu0 0
    %2914 = vmatprep.subr.bf16.mxu0 0
    %2915 = vmatpush2.bf16.msra.mxu0 0
    %2916 = vmatprep.subr.bf16.mxu0 0
    %2917 = vmatpush2.bf16.msra.mxu0 0
    %2918 = vmatprep.subr.bf16.mxu0 0
    %2919 = vmatpush2.bf16.msra.mxu0 0
    %2920 = vmatprep.subr.bf16.mxu0 0
    %2921 = vmatpush2.bf16.msra.mxu0 0
    %2922 = vmatprep.subr.bf16.mxu0 0
    %2923 = vmatpush2.bf16.msra.mxu0 0
    %2924 = vmatprep.subr.bf16.mxu0 0
    %2925 = vmatpush2.bf16.msra.mxu0 0
    %2926 = vmatprep.subr.bf16.mxu0 0
    %2927 = vmatpush2.bf16.msra.mxu0 0
    %2928 = vmatprep.mubr.bf16.mxu0 0
    %2929 = vmatmul.mubr.bf16.gmra.mxu0 %v2891
    %v2930 = vpop.f32.mrf.mxu0
    %v2931 = vadd.f32 %v2864, %v2930
    %v2932 = vpop.f32.mrf.mxu0
    %v2933 = vpop.f32.mrf.mxu0
    %v2934 = vadd.f32 %v2864, %v2933
    %v2935 = vpop.f32.mrf.mxu0
    %2936 = vmatprep.mubr.bf16.mxu0 0
    %2937 = vmatmul.mubr.bf16.gmra.mxu0 %v2894
    %v2938 = vpop.f32.mrf.mxu0
    %v2939 = vadd.f32 %v2864, %v2938
    %v2940 = vpop.f32.mrf.mxu0
    %v2941 = vpop.f32.mrf.mxu0
    %v2942 = vadd.f32 %v2864, %v2941
    %v2943 = vpop.f32.mrf.mxu0
    %2944 = vdwg.mxu0
    %v2945 = vadd.f32 %v1639, %v2931
    %v2946 = vadd.f32 %v1640, %v2934
    %v2947 = vadd.f32 %v1641, %v2939
    %v2948 = vadd.f32 %v1642, %v2942
    %s2949 = scalar_lea.vmem %s6, 1
    %v2950 = vld [vmem:[%s2949] sm:$0x1]
    %s2951 = scalar_lea.vmem %s7, 1
    %v2952 = vld [vmem:[%s2951] sm:$0x1]
    %v2953 = vsel %vm55, %v2945, 0.0
    %2954 = vadd.xlane.f32.xlu0 %v2953
    %v2955 = vpop.xlane.xlu0 %2954
    %v2956 = vsel %vm55, %v2946, 0.0
    %2957 = vadd.xlane.f32.xlu0 %v2956
    %v2958 = vpop.xlane.xlu0 %2957
    %v2959 = vsel %vm55, %v2947, 0.0
    %2960 = vadd.xlane.f32.xlu0 %v2959
    %v2961 = vpop.xlane.xlu0 %2960
    %v2962 = vsel %vm55, %v2948, 0.0
    %2963 = vadd.xlane.f32.xlu0 %v2962
    %v2964 = vpop.xlane.xlu0 %2963
    %v2965 = vmul.f32 %v2955, %v68
    %v2966 = vmul.f32 %v2958, %v68
    %v2967 = vmul.f32 %v2961, %v68
    %v2968 = vmul.f32 %v2964, %v68
    %v2969 = vsub.f32 %v2945, %v2965
    %v2970 = vsub.f32 %v2946, %v2966
    %v2971 = vsub.f32 %v2947, %v2967
    %v2972 = vsub.f32 %v2948, %v2968
    %v2973 = vmul.f32 %v2969, %v2969
    %v2974 = vmul.f32 %v2970, %v2970
    %v2975 = vmul.f32 %v2971, %v2971
    %v2976 = vmul.f32 %v2972, %v2972
    %v2977 = vsel %vm55, %v2973, 0.0
    %2978 = vadd.xlane.f32.xlu0 %v2977
    %v2979 = vpop.xlane.xlu0 %2978
    %v2980 = vsel %vm55, %v2974, 0.0
    %2981 = vadd.xlane.f32.xlu0 %v2980
    %v2982 = vpop.xlane.xlu0 %2981
    %v2983 = vsel %vm55, %v2975, 0.0
    %2984 = vadd.xlane.f32.xlu0 %v2983
    %v2985 = vpop.xlane.xlu0 %2984
    %v2986 = vsel %vm55, %v2976, 0.0
    %2987 = vadd.xlane.f32.xlu0 %v2986
    %v2988 = vpop.xlane.xlu0 %2987
    %v2989 = vmul.f32 %v2979, %v68
    %v2990 = vmul.f32 %v2982, %v68
    %v2991 = vmul.f32 %v2985, %v68
    %v2992 = vmul.f32 %v2988, %v68
    %v2993 = vadd.f32 %v2989, 1e-05
    %v2994 = vadd.f32 %v2990, 1e-05
    %v2995 = vadd.f32 %v2991, 1e-05
    %v2996 = vadd.f32 %v2992, 1e-05
    %v2997 = vrsqrt.pop %v2993
    %v2998 = vrsqrt.pop %v2994
    %v2999 = vrsqrt.pop %v2995
    %v3000 = vrsqrt.pop %v2996
    %v3001 = vmul.f32 %v2969, %v2997
    %v3002 = vmul.f32 %v2970, %v2998
    %v3003 = vmul.f32 %v2971, %v2999
    %v3004 = vmul.f32 %v2972, %v3000
    %v3006 = vlaneseq
    %v3007 = vshrl.u32 %v3006, 7
    %v3008 = vsub.s32 0, %v3007
    %v3009 = vrot.slane %v2950, %v3008
    %v3011 = vmul.f32 %v3001, %v3009
    %v3012 = vmul.f32 %v3002, %v3009
    %v3013 = vmul.f32 %v3003, %v3009
    %v3014 = vmul.f32 %v3004, %v3009
    %v3016 = vlaneseq
    %v3017 = vshrl.u32 %v3016, 7
    %v3018 = vsub.s32 0, %v3017
    %v3019 = vrot.slane %v2952, %v3018
    %v3021 = vadd.f32 %v3011, %v3019
    %v3022 = vadd.f32 %v3012, %v3019
    %v3023 = vadd.f32 %v3013, %v3019
    %v3024 = vadd.f32 %v3014, %v3019
    %v3025 = vpack.c.bf16 %v3022, %v3021
    %v3026 = vpack.c.bf16 %v3024, %v3023
    %s3027 = scalar_lea.vmem %s8, 16
    %v3028 = vld [vmem:[%s3027] sm:$0xf]
    %v3029 = vld [vmem:[%s3027 + $0x4] sm:$0xf]
    %v3030 = vld [vmem:[%s3027 + $0x8] sm:$0xf]
    %v3031 = vld [vmem:[%s3027 + $0xc] sm:$0xf]
    %s3032 = scalar_lea.vmem %s9, 1
    %v3033 = vld [vmem:[%s3032] sm:$0x1]
    %v3035 = vlaneseq
    %v3036 = vshrl.u32 %v3035, 7
    %v3037 = vsub.s32 0, %v3036
    %v3038 = vrot.slane %v3033, %v3037
    %v3044 = vunpack.c.l.b16 %v3028
    %v3045 = vunpack.c.l.b16 %v3029
    %v3046 = vunpack.c.l.b16 %v3030
    %v3047 = vunpack.c.l.b16 %v3031
    %v3048 = vpack.c.b16 %v3045, %v3044
    %v3049 = vpack.c.b16 %v3047, %v3046
    %v3053 = vsel %vm55, %v3025, 0
    %v3056 = vsel %vm55, %v3026, 0
    %3058 = vmatprep.subr.bf16.mxu0 0
    %3059 = vmatpush1.bf16.msra.mxu0 0
    %3060 = vmatprep.subr.bf16.mxu0 0
    %3061 = vmatpush1.bf16.msra.mxu0 0
    %3062 = vmatprep.subr.bf16.mxu0 0
    %3063 = vmatpush1.bf16.msra.mxu0 0
    %3064 = vmatprep.subr.bf16.mxu0 0
    %3065 = vmatpush1.bf16.msra.mxu0 0
    %3066 = vmatprep.subr.bf16.mxu0 0
    %3067 = vmatpush1.bf16.msra.mxu0 0
    %3068 = vmatprep.subr.bf16.mxu0 0
    %3069 = vmatpush1.bf16.msra.mxu0 0
    %3070 = vmatprep.subr.bf16.mxu0 0
    %3071 = vmatpush1.bf16.msra.mxu0 %v3049
    %3072 = vmatprep.subr.bf16.mxu0 0
    %3073 = vmatpush1.bf16.msra.mxu0 %v3048
    %3074 = vmatprep.subr.bf16.mxu0 0
    %3075 = vmatpush2.bf16.msra.mxu0 0
    %3076 = vmatprep.subr.bf16.mxu0 0
    %3077 = vmatpush2.bf16.msra.mxu0 0
    %3078 = vmatprep.subr.bf16.mxu0 0
    %3079 = vmatpush2.bf16.msra.mxu0 0
    %3080 = vmatprep.subr.bf16.mxu0 0
    %3081 = vmatpush2.bf16.msra.mxu0 0
    %3082 = vmatprep.subr.bf16.mxu0 0
    %3083 = vmatpush2.bf16.msra.mxu0 0
    %3084 = vmatprep.subr.bf16.mxu0 0
    %3085 = vmatpush2.bf16.msra.mxu0 0
    %3086 = vmatprep.subr.bf16.mxu0 0
    %3087 = vmatpush2.bf16.msra.mxu0 0
    %3088 = vmatprep.subr.bf16.mxu0 0
    %3089 = vmatpush2.bf16.msra.mxu0 0
    %3090 = vmatprep.mubr.bf16.mxu0 0
    %3091 = vmatmul.mubr.bf16.gmra.mxu0 %v3053
    %v3092 = vpop.f32.mrf.mxu0
    %v3093 = vadd.f32 %v3038, %v3092
    %v3094 = vpop.f32.mrf.mxu0
    %v3095 = vpop.f32.mrf.mxu0
    %v3096 = vadd.f32 %v3038, %v3095
    %v3097 = vpop.f32.mrf.mxu0
    %3098 = vmatprep.mubr.bf16.mxu0 0
    %3099 = vmatmul.mubr.bf16.gmra.mxu0 %v3056
    %v3100 = vpop.f32.mrf.mxu0
    %v3101 = vadd.f32 %v3038, %v3100
    %v3102 = vpop.f32.mrf.mxu0
    %v3103 = vpop.f32.mrf.mxu0
    %v3104 = vadd.f32 %v3038, %v3103
    %v3105 = vpop.f32.mrf.mxu0
    %3106 = vdwg.mxu0
    %v3107 = vtanh.pop %v3093
    %v3108 = vtanh.pop %v3096
    %v3109 = vtanh.pop %v3101
    %v3110 = vtanh.pop %v3104
    %v3111 = vpack.c.bf16 %v3108, %v3107
    %v3112 = vpack.c.bf16 %v3110, %v3109
    %s3113 = scalar_lea.vmem %s10, 64
    %v3114 = vld [vmem:[%s3113] sm:$0xf]
    %v3115 = vld [vmem:[%s3113 + $0x4] sm:$0xf]
    %v3116 = vld [vmem:[%s3113 + $0x8] sm:$0xf]
    %v3117 = vld [vmem:[%s3113 + $0xc] sm:$0xf]
    %v3118 = vld [vmem:[%s3113 + $0x10] sm:$0xf]
    %v3119 = vld [vmem:[%s3113 + $0x14] sm:$0xf]
    %v3120 = vld [vmem:[%s3113 + $0x18] sm:$0xf]
    %v3121 = vld [vmem:[%s3113 + $0x1c] sm:$0xf]
    %v3122 = vld [vmem:[%s3113 + $0x20] sm:$0xf]
    %v3123 = vld [vmem:[%s3113 + $0x24] sm:$0xf]
    %v3124 = vld [vmem:[%s3113 + $0x28] sm:$0xf]
    %v3125 = vld [vmem:[%s3113 + $0x2c] sm:$0xf]
    %v3126 = vld [vmem:[%s3113 + $0x30] sm:$0xf]
    %v3127 = vld [vmem:[%s3113 + $0x34] sm:$0xf]
    %v3128 = vld [vmem:[%s3113 + $0x38] sm:$0xf]
    %v3129 = vld [vmem:[%s3113 + $0x3c] sm:$0xf]
    %s3130 = scalar_lea.vmem %s11, 1
    %v3131 = vld [vmem:[%s3130] sm:$0x1]
    %v3133 = vlaneseq
    %v3134 = vshrl.u32 %v3133, 7
    %v3135 = vsub.s32 0, %v3134
    %v3136 = vrot.slane %v3131, %v3135
    %v3154 = vunpack.c.l.b16 %v3114
    %v3155 = vunpack.c.l.b16 %v3115
    %v3156 = vunpack.c.l.b16 %v3116
    %v3157 = vunpack.c.l.b16 %v3117
    %v3158 = vunpack.c.l.b16 %v3118
    %v3159 = vunpack.c.l.b16 %v3119
    %v3160 = vunpack.c.l.b16 %v3120
    %v3161 = vunpack.c.l.b16 %v3121
    %v3162 = vunpack.c.l.b16 %v3122
    %v3163 = vunpack.c.l.b16 %v3123
    %v3164 = vunpack.c.l.b16 %v3124
    %v3165 = vunpack.c.l.b16 %v3125
    %v3166 = vunpack.c.l.b16 %v3126
    %v3167 = vunpack.c.l.b16 %v3127
    %v3168 = vunpack.c.l.b16 %v3128
    %v3169 = vunpack.c.l.b16 %v3129
    %v3170 = vpack.c.b16 %v3155, %v3154
    %v3171 = vpack.c.b16 %v3157, %v3156
    %v3172 = vpack.c.b16 %v3159, %v3158
    %v3173 = vpack.c.b16 %v3161, %v3160
    %v3174 = vpack.c.b16 %v3163, %v3162
    %v3175 = vpack.c.b16 %v3165, %v3164
    %v3176 = vpack.c.b16 %v3167, %v3166
    %v3177 = vpack.c.b16 %v3169, %v3168
    %3186 = vmatprep.subr.bf16.mxu0 0
    %3187 = vmatpush1.bf16.msra.mxu0 %v3177
    %3188 = vmatprep.subr.bf16.mxu0 0
    %3189 = vmatpush1.bf16.msra.mxu0 %v3176
    %3190 = vmatprep.subr.bf16.mxu0 0
    %3191 = vmatpush1.bf16.msra.mxu0 %v3175
    %3192 = vmatprep.subr.bf16.mxu0 0
    %3193 = vmatpush1.bf16.msra.mxu0 %v3174
    %3194 = vmatprep.subr.bf16.mxu0 0
    %3195 = vmatpush1.bf16.msra.mxu0 %v3173
    %3196 = vmatprep.subr.bf16.mxu0 0
    %3197 = vmatpush1.bf16.msra.mxu0 %v3172
    %3198 = vmatprep.subr.bf16.mxu0 0
    %3199 = vmatpush1.bf16.msra.mxu0 %v3171
    %3200 = vmatprep.subr.bf16.mxu0 0
    %3201 = vmatpush1.bf16.msra.mxu0 %v3170
    %3202 = vmatprep.subr.bf16.mxu0 0
    %3203 = vmatpush2.bf16.msra.mxu0 0
    %3204 = vmatprep.subr.bf16.mxu0 0
    %3205 = vmatpush2.bf16.msra.mxu0 0
    %3206 = vmatprep.subr.bf16.mxu0 0
    %3207 = vmatpush2.bf16.msra.mxu0 0
    %3208 = vmatprep.subr.bf16.mxu0 0
    %3209 = vmatpush2.bf16.msra.mxu0 0
    %3210 = vmatprep.subr.bf16.mxu0 0
    %3211 = vmatpush2.bf16.msra.mxu0 0
    %3212 = vmatprep.subr.bf16.mxu0 0
    %3213 = vmatpush2.bf16.msra.mxu0 0
    %3214 = vmatprep.subr.bf16.mxu0 0
    %3215 = vmatpush2.bf16.msra.mxu0 0
    %3216 = vmatprep.subr.bf16.mxu0 0
    %3217 = vmatpush2.bf16.msra.mxu0 0
    %3218 = vmatprep.mubr.bf16.mxu0 0
    %3219 = vmatmul.mubr.bf16.gmra.mxu0 %v3111
    %v3220 = vpop.f32.mrf.mxu0
    %v3221 = vadd.f32 %v3136, %v3220
    %v3222 = vpop.f32.mrf.mxu0
    %v3223 = vpop.f32.mrf.mxu0
    %v3224 = vadd.f32 %v3136, %v3223
    %v3225 = vpop.f32.mrf.mxu0
    %3226 = vmatprep.mubr.bf16.mxu0 0
    %3227 = vmatmul.mubr.bf16.gmra.mxu0 %v3112
    %v3228 = vpop.f32.mrf.mxu0
    %v3229 = vadd.f32 %v3136, %v3228
    %v3230 = vpop.f32.mrf.mxu0
    %v3231 = vpop.f32.mrf.mxu0
    %v3232 = vadd.f32 %v3136, %v3231
    %v3233 = vpop.f32.mrf.mxu0
    %3234 = vdwg.mxu0
    %v3235 = vadd.f32 %v2945, %v3221
    %v3236 = vadd.f32 %v2946, %v3224
    %v3237 = vadd.f32 %v2947, %v3229
    %v3238 = vadd.f32 %v2948, %v3232
    %v3239 = vld [vmem:[%s12] sm:$0x1]
    %v3240 = vld [vmem:[%s13] sm:$0x1]
    %v3241 = vsel %vm55, %v3235, 0.0
    %3242 = vadd.xlane.f32.xlu0 %v3241
    %v3243 = vpop.xlane.xlu0 %3242
    %v3244 = vsel %vm55, %v3236, 0.0
    %3245 = vadd.xlane.f32.xlu0 %v3244
    %v3246 = vpop.xlane.xlu0 %3245
    %v3247 = vsel %vm55, %v3237, 0.0
    %3248 = vadd.xlane.f32.xlu0 %v3247
    %v3249 = vpop.xlane.xlu0 %3248
    %v3250 = vsel %vm55, %v3238, 0.0
    %3251 = vadd.xlane.f32.xlu0 %v3250
    %v3252 = vpop.xlane.xlu0 %3251
    %v3253 = vmul.f32 %v3243, %v68
    %v3254 = vmul.f32 %v3246, %v68
    %v3255 = vmul.f32 %v3249, %v68
    %v3256 = vmul.f32 %v3252, %v68
    %v3257 = vsub.f32 %v3235, %v3253
    %v3258 = vsub.f32 %v3236, %v3254
    %v3259 = vsub.f32 %v3237, %v3255
    %v3260 = vsub.f32 %v3238, %v3256
    %v3261 = vmul.f32 %v3257, %v3257
    %v3262 = vmul.f32 %v3258, %v3258
    %v3263 = vmul.f32 %v3259, %v3259
    %v3264 = vmul.f32 %v3260, %v3260
    %v3265 = vsel %vm55, %v3261, 0.0
    %3266 = vadd.xlane.f32.xlu0 %v3265
    %v3267 = vpop.xlane.xlu0 %3266
    %v3268 = vsel %vm55, %v3262, 0.0
    %3269 = vadd.xlane.f32.xlu0 %v3268
    %v3270 = vpop.xlane.xlu0 %3269
    %v3271 = vsel %vm55, %v3263, 0.0
    %3272 = vadd.xlane.f32.xlu0 %v3271
    %v3273 = vpop.xlane.xlu0 %3272
    %v3274 = vsel %vm55, %v3264, 0.0
    %3275 = vadd.xlane.f32.xlu0 %v3274
    %v3276 = vpop.xlane.xlu0 %3275
    %v3277 = vmul.f32 %v3267, %v68
    %v3278 = vmul.f32 %v3270, %v68
    %v3279 = vmul.f32 %v3273, %v68
    %v3280 = vmul.f32 %v3276, %v68
    %v3281 = vadd.f32 %v3277, 1e-05
    %v3282 = vadd.f32 %v3278, 1e-05
    %v3283 = vadd.f32 %v3279, 1e-05
    %v3284 = vadd.f32 %v3280, 1e-05
    %v3285 = vrsqrt.pop %v3281
    %v3286 = vrsqrt.pop %v3282
    %v3287 = vrsqrt.pop %v3283
    %v3288 = vrsqrt.pop %v3284
    %v3289 = vmul.f32 %v3257, %v3285
    %v3290 = vmul.f32 %v3258, %v3286
    %v3291 = vmul.f32 %v3259, %v3287
    %v3292 = vmul.f32 %v3260, %v3288
    %v3294 = vlaneseq
    %v3295 = vshrl.u32 %v3294, 7
    %v3296 = vsub.s32 0, %v3295
    %v3297 = vrot.slane %v3239, %v3296
    %v3299 = vmul.f32 %v3289, %v3297
    %v3300 = vmul.f32 %v3290, %v3297
    %v3301 = vmul.f32 %v3291, %v3297
    %v3302 = vmul.f32 %v3292, %v3297
    %v3304 = vlaneseq
    %v3305 = vshrl.u32 %v3304, 7
    %v3306 = vsub.s32 0, %v3305
    %v3307 = vrot.slane %v3240, %v3306
    %v3309 = vadd.f32 %v3299, %v3307
    %v3310 = vadd.f32 %v3300, %v3307
    %v3311 = vadd.f32 %v3301, %v3307
    %v3312 = vadd.f32 %v3302, %v3307
    %3313 = vst.msk [vmem:[#allocation2] sm:$0xff] %vm55, %v3309
    %3314 = vst.msk [vmem:[#allocation2 + $0x8] sm:$0xff] %vm55, %v3310
    %3315 = vst.msk [vmem:[#allocation2 + $0x10] sm:$0xff] %vm55, %v3311
    %3316 = vst.msk [vmem:[#allocation2 + $0x18] sm:$0xff] %vm55, %v3312
    // Predicated region
    $region58: #{tpu_custom_call.1} parent=1 // pred_check
      _
    $region59: #{tpu_custom_call.1} parent=1 // pred_check_branch
      %3318 = sbr.rel (0) target = $region61
    $region60: #{tpu_custom_call.1} parent=1 // pred_region
      %s3320 = ssub.s32 512, 512
      %3321 = vsyncadd [#allocation3], %s3320
      %s3322 = sshll.u32 [#allocation2], 4
      %s3323 = int_to_ptr.vmem [resolvable:$true] %s3322
      %3328 = dma.vmem_to_hbm [thread:$0]  %s3323, 512, %s14, [#allocation3], 128, 128, 8
    $region61: #{tpu_custom_call.1} parent=1 // pred_fallthru
      _
    // Predicated region
    $region62: #{tpu_custom_call.1} parent=1 // pred_check
      _
    $region63: #{tpu_custom_call.1} parent=1 // pred_check_branch
      %3330 = sbr.rel (0) target = $region65
    $region64: #{tpu_custom_call.1} parent=1 // pred_region
      %3331 = dma.done [#allocation3], 512
    $region65: #{tpu_custom_call.1} parent=1 // pred_fallthru
      _
    %3332 = vsyncpa [#allocation3], 1

</llo_original>
